<compile_context>
chip_gen: v6e
topology: v6e:2x2x1
jax: 0.10.0
libtpu: 0.0.40
codegen_flags: <defaults>
</compile_context>

<pallas_src>
import jax
import jax.numpy as jnp
from jax.experimental import pallas as pl
from jax.experimental.pallas import tpu as pltpu


# ---------------------------------------------------------------------------
# Kernel 1: fused GRU timeline model — single invocation, everything in VMEM.
# ---------------------------------------------------------------------------
def gru_fused_kernel(x_ref, wih_ref, whh_ref, bih_ref, bhh_ref, out_ref):
    B, T, D = x_ref.shape
    H = whh_ref.shape[0]

    # Hoisted input projection: ONE big MXU matmul over all B*T rows (bf16
    # operands, f32 accumulation), instead of T tiny per-step matmuls.
    x2d = x_ref[...].reshape(B * T, D)                                  # b-major rows
    gx_all = jnp.dot(x2d, wih_ref[...],
                     preferred_element_type=jnp.float32) + bih_ref[...]  # (B*T, 3H) f32
    gx_all = gx_all.reshape(B, T, 3 * H)

    # Statically-unrolled recurrence (T is small & static). Only the
    # h @ W_hh matmul remains inside the loop.  Gate slice offsets are
    # multiples of 128 because H == 128 (keep per-gate weights if H changes).
    h = jnp.zeros((B, H), jnp.float32)
    for t in range(T):
        gx = gx_all[:, t, :]                                            # (B, 3H) f32
        gh = jnp.dot(h.astype(jnp.bfloat16), whh_ref[...],
                     preferred_element_type=jnp.float32) + bhh_ref[...]  # (B, 3H) f32
        r = jax.nn.sigmoid(gx[:, :H] + gh[:, :H])
        z = jax.nn.sigmoid(gx[:, H:2 * H] + gh[:, H:2 * H])
        n = jnp.tanh(gx[:, 2 * H:] + r * gh[:, 2 * H:])                  # b_hn inside r*(...)
        h = (1.0 - z) * n + z * h
        out_ref[t] = h                                                   # time-major store


def patient_rnn_gru(x_btd, w_ih, w_hh, b_ih, b_hh):
    """x_btd: (B, T, D) -> time-major embedding (T, B, H)."""
    B, T, D = x_btd.shape
    H = w_hh.shape[0]

    vmem = pl.BlockSpec(memory_space=pltpu.MemorySpace.VMEM)
    out_tbh = pl.pallas_call(
        gru_fused_kernel,
        out_shape=jax.ShapeDtypeStruct((T, B, H), jnp.float32),
        in_specs=[vmem, vmem, vmem, vmem, vmem],
        out_specs=vmem,
    )(
        x_btd.astype(jnp.bfloat16),        # bf16 MXU operand, halves DMA
        w_ih.astype(jnp.bfloat16),
        w_hh.astype(jnp.bfloat16),
        b_ih.astype(jnp.float32),
        b_hh.astype(jnp.float32),
    )
    return out_tbh                          # (T, B, H) time-major (no HBM transpose)


# ---------------------------------------------------------------------------
# Kernel 2: classifier head — single grid step, fully vectorized over N.
#   gather(flat_emb, indices) -> linear(H->1) -> sigmoid + BCE-with-logits(sum)
# ---------------------------------------------------------------------------
def head_kernel(idx_ref, labels_ref, emb_ref, w_ref, b_ref, probs_ref, loss_ref):
    N = idx_ref.shape[0]
    # Gather all N rows from the VMEM-resident flat embedding (SMEM indices).
    rows = [emb_ref[pl.ds(idx_ref[i], 1), :] for i in range(N)]          # each (1, H)
    gathered = jnp.concatenate(rows, axis=0)                             # (N, H)

    # Linear head, vectorized over all rows, then reshape to lane-dense (1, N).
    logits = jnp.sum(gathered * w_ref[...], axis=-1, keepdims=True)      # (N, 1)
    logits = logits.reshape(1, N) + b_ref[...]                           # (1, N)

    probs_ref[...] = jax.nn.sigmoid(logits)

    # Stable binary_cross_entropy_with_logits, reduction='sum'.
    y = labels_ref[...]                                                  # (1, N)
    loss = (jnp.maximum(logits, 0.0) - logits * y
            + jnp.log1p(jnp.exp(-jnp.abs(logits))))                      # (1, N)
    loss_ref[...] = jnp.sum(loss, axis=1, keepdims=True)                 # (1, 1)


def classifier_head(flat_emb, label_indices, label_values, w_lin, b_lin):
    N = label_indices.shape[0]
    M, H = flat_emb.shape
    labels_1n = label_values.reshape(1, N).astype(jnp.float32)
    w2d = w_lin.reshape(1, H).astype(jnp.float32)
    b2d = b_lin.reshape(1, 1).astype(jnp.float32)

    vmem = pl.BlockSpec(memory_space=pltpu.MemorySpace.VMEM)
    smem = pl.BlockSpec(memory_space=pltpu.MemorySpace.SMEM)

    probs, loss = pl.pallas_call(
        head_kernel,
        out_shape=(
            jax.ShapeDtypeStruct((1, N), jnp.float32),   # lane-dense probs
            jax.ShapeDtypeStruct((1, 1), jnp.float32),   # summed loss
        ),
        in_specs=[smem, vmem, vmem, vmem, vmem],
        out_specs=(vmem, vmem),
    )(label_indices.astype(jnp.int32), labels_1n, flat_emb, w2d, b2d)

    return probs.reshape(N), loss.reshape(())


# ---------------------------------------------------------------------------
# Full forward (mirrors BinaryLinearCLMBRClassifier.forward)
# ---------------------------------------------------------------------------
def binary_linear_clmbr_forward(batch, params):
    x = batch['rnn']                                     # (B, T, D)
    B, T, _ = x.shape
    H = params['w_hh'].shape[0]

    emb_tm = patient_rnn_gru(
        x, params['w_ih'], params['w_hh'], params['b_ih'], params['b_hh'])  # (T, B, H)
    flat_embeddings = emb_tm.reshape(T * B, H)           # time-major flat: row = t*B + b

    label_indices, label_values = batch['label']
    # PyTorch's embedding.view(-1, H) is b-major (idx = b*T + t); remap to the
    # kernel's time-major layout instead of transposing the embedding in HBM.
    idx = jnp.clip(label_indices.astype(jnp.int32), 0, B * T - 1)  # OOB guard
    remapped = (idx % T) * B + (idx // T)

    pred_probs, loss = classifier_head(
        flat_embeddings, remapped, label_values,
        params['w_lin'], params['b_lin'])

    return {
        'pids': batch['pid'],
        'pred_probs': pred_probs,
        'labels': label_values,
        'loss': loss,
    }


# ---------------------------------------------------------------------------
# Pure-JAX reference (for a loose numerical sanity check vs. bf16 kernels)
# ---------------------------------------------------------------------------
def reference_forward(x, params, label_indices, label_values):
    B, T, D = x.shape
    H = params['w_hh'].shape[0]
    h = jnp.zeros((B, H), jnp.float32)
    outs = []
    for t in range(T):
        gx = x[:, t, :] @ params['w_ih'] + params['b_ih']
        gh = h @ params['w_hh'] + params['b_hh']
        r = jax.nn.sigmoid(gx[:, :H] + gh[:, :H])
        z = jax.nn.sigmoid(gx[:, H:2 * H] + gh[:, H:2 * H])
        n = jnp.tanh(gx[:, 2 * H:] + r * gh[:, 2 * H:])
        h = (1.0 - z) * n + z * h
        outs.append(h)
    emb = jnp.stack(outs, axis=1)                        # (B, T, H) b-major
    flat = emb.reshape(-1, H)
    tgt = flat[label_indices]
    logits = tgt @ params['w_lin'] + params['b_lin'][0]
    probs = jax.nn.sigmoid(logits)
    y = label_values.astype(jnp.float32)
    loss = jnp.sum(jnp.maximum(logits, 0.0) - logits * y
                   + jnp.log1p(jnp.exp(-jnp.abs(logits))))
    return probs, loss


if __name__ == "__main__":
    B, T, D, H, N = 8, 8, 128, 128, 16                   # config['size'] == H

    key = jax.random.PRNGKey(0)
    ks = jax.random.split(key, 9)

    x = 0.5 * jax.random.normal(ks[0], (B, T, D), jnp.float32)
    params = {
        'w_ih': 0.05 * jax.random.normal(ks[1], (D, 3 * H), jnp.float32),
        'w_hh': 0.05 * jax.random.normal(ks[2], (H, 3 * H), jnp.float32),
        'b_ih': 0.01 * jax.random.normal(ks[3], (1, 3 * H), jnp.float32),
        'b_hh': 0.01 * jax.random.normal(ks[4], (1, 3 * H), jnp.float32),
        'w_lin': 0.1 * jax.random.normal(ks[5], (H,), jnp.float32),
        'b_lin': 0.1 * jax.random.normal(ks[6], (1,), jnp.float32),
    }

    label_indices = jax.random.randint(ks[7], (N,), 0, B * T, jnp.int32)
    label_values = (jax.random.uniform(ks[8], (N,)) > 0.5).astype(jnp.float32)

    batch = {
        'rnn': x,
        'label': (label_indices, label_values),
        'pid': jnp.arange(B, dtype=jnp.int32),
    }

    outputs = binary_linear_clmbr_forward(batch, params)
    outputs = jax.block_until_ready(outputs)

    assert outputs['pred_probs'].shape == (N,)
    assert outputs['loss'].shape == ()
    assert bool(jnp.all(jnp.isfinite(outputs['pred_probs'])))
    assert bool(jnp.isfinite(outputs['loss']))
    assert bool(jnp.all((outputs['pred_probs'] >= 0.0) & (outputs['pred_probs'] <= 1.0)))

    # Loose numerical check against an f32 pure-JAX reference (kernel uses
    # bf16 MXU operands, so allow generous tolerance).
    ref_probs, ref_loss = reference_forward(x, params, label_indices, label_values)
    max_prob_err = float(jnp.max(jnp.abs(outputs['pred_probs'] - ref_probs)))
    loss_err = float(jnp.abs(outputs['loss'] - ref_loss))
    assert max_prob_err < 5e-2, f"prob mismatch: {max_prob_err}"
    assert loss_err < 5e-2 * max(1.0, float(ref_loss)), f"loss mismatch: {loss_err}"

    print("KERNEL_OK")
</pallas_src>

<mosaic_0001>
module attributes {stable_mosaic.version = 11 : i64} {
  func.func @gru_fused_kernel(%arg0: memref<8x8x128xbf16, #tpu.memory_space<vmem>>, %arg1: memref<128x384xbf16, #tpu.memory_space<vmem>>, %arg2: memref<128x384xbf16, #tpu.memory_space<vmem>>, %arg3: memref<1x384xf32, #tpu.memory_space<vmem>>, %arg4: memref<1x384xf32, #tpu.memory_space<vmem>>, %arg5: memref<8x8x128xf32, #tpu.memory_space<vmem>>) attributes {dimension_semantics = [], scalar_prefetch = 0 : i64, scratch_operands = 0 : i64, tpu.core_type = #tpu.core_type<tc>} {
    %c0 = arith.constant 0 : index
    %c0_0 = arith.constant 0 : index
    %c0_1 = arith.constant 0 : index
    %0 = vector.load %arg0[%c0, %c0_0, %c0_1] : memref<8x8x128xbf16, #tpu.memory_space<vmem>>, vector<8x8x128xbf16>
    %1 = vector.shape_cast %0 : vector<8x8x128xbf16> to vector<64x128xbf16>
    %c0_2 = arith.constant 0 : index
    %c0_3 = arith.constant 0 : index
    %2 = vector.load %arg1[%c0_2, %c0_3] : memref<128x384xbf16, #tpu.memory_space<vmem>>, vector<128x384xbf16>
    %cst = arith.constant dense<0.000000e+00> : vector<64x384xf32>
    %3 = tpu.matmul %1, %2, %cst {dimension_numbers = #tpu.dot_dimension_numbers<[1], [0], [0], [1], [0, 0, 1, 1], [], []>} : vector<64x128xbf16>, vector<128x384xbf16>, vector<64x384xf32> -> vector<64x384xf32>
    %c0_4 = arith.constant 0 : index
    %c0_5 = arith.constant 0 : index
    %4 = vector.load %arg3[%c0_4, %c0_5] : memref<1x384xf32, #tpu.memory_space<vmem>>, vector<1x384xf32>
    %5 = vector.broadcast %4 : vector<1x384xf32> to vector<64x384xf32>
    %6 = arith.addf %3, %5 : vector<64x384xf32>
    %7 = vector.shape_cast %6 : vector<64x384xf32> to vector<8x8x384xf32>
    %cst_6 = arith.constant 0.000000e+00 : f32
    %8 = vector.broadcast %cst_6 : f32 to vector<8x128xf32>
    %9 = vector.extract_strided_slice %7 {offsets = [0, 0, 0], sizes = [8, 1, 384], strides = [1, 1, 1]} : vector<8x8x384xf32> to vector<8x1x384xf32>
    %10 = vector.shape_cast %9 : vector<8x1x384xf32> to vector<8x384xf32>
    %11 = arith.truncf %8 : vector<8x128xf32> to vector<8x128xbf16>
    %c0_7 = arith.constant 0 : index
    %c0_8 = arith.constant 0 : index
    %12 = vector.load %arg2[%c0_7, %c0_8] : memref<128x384xbf16, #tpu.memory_space<vmem>>, vector<128x384xbf16>
    %cst_9 = arith.constant dense<0.000000e+00> : vector<8x384xf32>
    %13 = tpu.matmul %11, %12, %cst_9 {dimension_numbers = #tpu.dot_dimension_numbers<[1], [0], [0], [1], [0, 0, 1, 1], [], []>} : vector<8x128xbf16>, vector<128x384xbf16>, vector<8x384xf32> -> vector<8x384xf32>
    %c0_10 = arith.constant 0 : index
    %c0_11 = arith.constant 0 : index
    %14 = vector.load %arg4[%c0_10, %c0_11] : memref<1x384xf32, #tpu.memory_space<vmem>>, vector<1x384xf32>
    %15 = vector.broadcast %14 : vector<1x384xf32> to vector<8x384xf32>
    %16 = arith.addf %13, %15 : vector<8x384xf32>
    %17 = vector.extract_strided_slice %10 {offsets = [0, 0], sizes = [8, 128], strides = [1, 1]} : vector<8x384xf32> to vector<8x128xf32>
    %18 = vector.extract_strided_slice %16 {offsets = [0, 0], sizes = [8, 128], strides = [1, 1]} : vector<8x384xf32> to vector<8x128xf32>
    %19 = arith.addf %17, %18 : vector<8x128xf32>
    %20 = arith.negf %19 : vector<8x128xf32>
    %21 = math.exp %20 : vector<8x128xf32>
    %cst_12 = arith.constant 1.000000e+00 : f32
    %22 = vector.broadcast %cst_12 : f32 to vector<8x128xf32>
    %23 = arith.addf %22, %21 : vector<8x128xf32>
    %24 = arith.divf %22, %23 : vector<8x128xf32>
    %25 = vector.extract_strided_slice %10 {offsets = [0, 128], sizes = [8, 128], strides = [1, 1]} : vector<8x384xf32> to vector<8x128xf32>
    %26 = vector.extract_strided_slice %16 {offsets = [0, 128], sizes = [8, 128], strides = [1, 1]} : vector<8x384xf32> to vector<8x128xf32>
    %27 = arith.addf %25, %26 : vector<8x128xf32>
    %28 = arith.negf %27 : vector<8x128xf32>
    %29 = math.exp %28 : vector<8x128xf32>
    %cst_13 = arith.constant 1.000000e+00 : f32
    %30 = vector.broadcast %cst_13 : f32 to vector<8x128xf32>
    %31 = arith.addf %30, %29 : vector<8x128xf32>
    %32 = arith.divf %30, %31 : vector<8x128xf32>
    %33 = vector.extract_strided_slice %10 {offsets = [0, 256], sizes = [8, 128], strides = [1, 1]} : vector<8x384xf32> to vector<8x128xf32>
    %34 = vector.extract_strided_slice %16 {offsets = [0, 256], sizes = [8, 128], strides = [1, 1]} : vector<8x384xf32> to vector<8x128xf32>
    %35 = arith.mulf %24, %34 : vector<8x128xf32>
    %36 = arith.addf %33, %35 : vector<8x128xf32>
    %37 = math.tanh %36 : vector<8x128xf32>
    %cst_14 = arith.constant 1.000000e+00 : f32
    %38 = vector.broadcast %cst_14 : f32 to vector<8x128xf32>
    %39 = arith.subf %38, %32 : vector<8x128xf32>
    %40 = arith.mulf %39, %37 : vector<8x128xf32>
    %41 = arith.mulf %32, %8 : vector<8x128xf32>
    %42 = arith.addf %40, %41 : vector<8x128xf32>
    %c0_15 = arith.constant 0 : index
    %c0_16 = arith.constant 0 : index
    %c0_17 = arith.constant 0 : index
    %43 = vector.load %arg5[%c0_15, %c0_16, %c0_17] : memref<8x8x128xf32, #tpu.memory_space<vmem>>, vector<1x8x128xf32>
    %44 = vector.shape_cast %43 : vector<1x8x128xf32> to vector<8x128xf32>
    %45 = vector.shape_cast %42 : vector<8x128xf32> to vector<1x8x128xf32>
    tpu.vector_store %arg5[%c0_15, %c0_16, %c0_17], %45 {strides = array<i32>} : memref<8x8x128xf32, #tpu.memory_space<vmem>>, vector<1x8x128xf32>,
    %46 = vector.extract_strided_slice %7 {offsets = [0, 1, 0], sizes = [8, 1, 384], strides = [1, 1, 1]} : vector<8x8x384xf32> to vector<8x1x384xf32>
    %47 = vector.shape_cast %46 : vector<8x1x384xf32> to vector<8x384xf32>
    %48 = arith.truncf %42 : vector<8x128xf32> to vector<8x128xbf16>
    %c0_18 = arith.constant 0 : index
    %c0_19 = arith.constant 0 : index
    %49 = vector.load %arg2[%c0_18, %c0_19] : memref<128x384xbf16, #tpu.memory_space<vmem>>, vector<128x384xbf16>
    %cst_20 = arith.constant dense<0.000000e+00> : vector<8x384xf32>
    %50 = tpu.matmul %48, %49, %cst_20 {dimension_numbers = #tpu.dot_dimension_numbers<[1], [0], [0], [1], [0, 0, 1, 1], [], []>} : vector<8x128xbf16>, vector<128x384xbf16>, vector<8x384xf32> -> vector<8x384xf32>
    %c0_21 = arith.constant 0 : index
    %c0_22 = arith.constant 0 : index
    %51 = vector.load %arg4[%c0_21, %c0_22] : memref<1x384xf32, #tpu.memory_space<vmem>>, vector<1x384xf32>
    %52 = vector.broadcast %51 : vector<1x384xf32> to vector<8x384xf32>
    %53 = arith.addf %50, %52 : vector<8x384xf32>
    %54 = vector.extract_strided_slice %47 {offsets = [0, 0], sizes = [8, 128], strides = [1, 1]} : vector<8x384xf32> to vector<8x128xf32>
    %55 = vector.extract_strided_slice %53 {offsets = [0, 0], sizes = [8, 128], strides = [1, 1]} : vector<8x384xf32> to vector<8x128xf32>
    %56 = arith.addf %54, %55 : vector<8x128xf32>
    %57 = arith.negf %56 : vector<8x128xf32>
    %58 = math.exp %57 : vector<8x128xf32>
    %cst_23 = arith.constant 1.000000e+00 : f32
    %59 = vector.broadcast %cst_23 : f32 to vector<8x128xf32>
    %60 = arith.addf %59, %58 : vector<8x128xf32>
    %61 = arith.divf %59, %60 : vector<8x128xf32>
    %62 = vector.extract_strided_slice %47 {offsets = [0, 128], sizes = [8, 128], strides = [1, 1]} : vector<8x384xf32> to vector<8x128xf32>
    %63 = vector.extract_strided_slice %53 {offsets = [0, 128], sizes = [8, 128], strides = [1, 1]} : vector<8x384xf32> to vector<8x128xf32>
    %64 = arith.addf %62, %63 : vector<8x128xf32>
    %65 = arith.negf %64 : vector<8x128xf32>
    %66 = math.exp %65 : vector<8x128xf32>
    %cst_24 = arith.constant 1.000000e+00 : f32
    %67 = vector.broadcast %cst_24 : f32 to vector<8x128xf32>
    %68 = arith.addf %67, %66 : vector<8x128xf32>
    %69 = arith.divf %67, %68 : vector<8x128xf32>
    %70 = vector.extract_strided_slice %47 {offsets = [0, 256], sizes = [8, 128], strides = [1, 1]} : vector<8x384xf32> to vector<8x128xf32>
    %71 = vector.extract_strided_slice %53 {offsets = [0, 256], sizes = [8, 128], strides = [1, 1]} : vector<8x384xf32> to vector<8x128xf32>
    %72 = arith.mulf %61, %71 : vector<8x128xf32>
    %73 = arith.addf %70, %72 : vector<8x128xf32>
    %74 = math.tanh %73 : vector<8x128xf32>
    %cst_25 = arith.constant 1.000000e+00 : f32
    %75 = vector.broadcast %cst_25 : f32 to vector<8x128xf32>
    %76 = arith.subf %75, %69 : vector<8x128xf32>
    %77 = arith.mulf %76, %74 : vector<8x128xf32>
    %78 = arith.mulf %69, %42 : vector<8x128xf32>
    %79 = arith.addf %77, %78 : vector<8x128xf32>
    %c1 = arith.constant 1 : index
    %c0_26 = arith.constant 0 : index
    %c0_27 = arith.constant 0 : index
    %80 = vector.load %arg5[%c1, %c0_26, %c0_27] : memref<8x8x128xf32, #tpu.memory_space<vmem>>, vector<1x8x128xf32>
    %81 = vector.shape_cast %80 : vector<1x8x128xf32> to vector<8x128xf32>
    %82 = vector.shape_cast %79 : vector<8x128xf32> to vector<1x8x128xf32>
    tpu.vector_store %arg5[%c1, %c0_26, %c0_27], %82 {strides = array<i32>} : memref<8x8x128xf32, #tpu.memory_space<vmem>>, vector<1x8x128xf32>,
    %83 = vector.extract_strided_slice %7 {offsets = [0, 2, 0], sizes = [8, 1, 384], strides = [1, 1, 1]} : vector<8x8x384xf32> to vector<8x1x384xf32>
    %84 = vector.shape_cast %83 : vector<8x1x384xf32> to vector<8x384xf32>
    %85 = arith.truncf %79 : vector<8x128xf32> to vector<8x128xbf16>
    %c0_28 = arith.constant 0 : index
    %c0_29 = arith.constant 0 : index
    %86 = vector.load %arg2[%c0_28, %c0_29] : memref<128x384xbf16, #tpu.memory_space<vmem>>, vector<128x384xbf16>
    %cst_30 = arith.constant dense<0.000000e+00> : vector<8x384xf32>
    %87 = tpu.matmul %85, %86, %cst_30 {dimension_numbers = #tpu.dot_dimension_numbers<[1], [0], [0], [1], [0, 0, 1, 1], [], []>} : vector<8x128xbf16>, vector<128x384xbf16>, vector<8x384xf32> -> vector<8x384xf32>
    %c0_31 = arith.constant 0 : index
    %c0_32 = arith.constant 0 : index
    %88 = vector.load %arg4[%c0_31, %c0_32] : memref<1x384xf32, #tpu.memory_space<vmem>>, vector<1x384xf32>
    %89 = vector.broadcast %88 : vector<1x384xf32> to vector<8x384xf32>
    %90 = arith.addf %87, %89 : vector<8x384xf32>
    %91 = vector.extract_strided_slice %84 {offsets = [0, 0], sizes = [8, 128], strides = [1, 1]} : vector<8x384xf32> to vector<8x128xf32>
    %92 = vector.extract_strided_slice %90 {offsets = [0, 0], sizes = [8, 128], strides = [1, 1]} : vector<8x384xf32> to vector<8x128xf32>
    %93 = arith.addf %91, %92 : vector<8x128xf32>
    %94 = arith.negf %93 : vector<8x128xf32>
    %95 = math.exp %94 : vector<8x128xf32>
    %cst_33 = arith.constant 1.000000e+00 : f32
    %96 = vector.broadcast %cst_33 : f32 to vector<8x128xf32>
    %97 = arith.addf %96, %95 : vector<8x128xf32>
    %98 = arith.divf %96, %97 : vector<8x128xf32>
    %99 = vector.extract_strided_slice %84 {offsets = [0, 128], sizes = [8, 128], strides = [1, 1]} : vector<8x384xf32> to vector<8x128xf32>
    %100 = vector.extract_strided_slice %90 {offsets = [0, 128], sizes = [8, 128], strides = [1, 1]} : vector<8x384xf32> to vector<8x128xf32>
    %101 = arith.addf %99, %100 : vector<8x128xf32>
    %102 = arith.negf %101 : vector<8x128xf32>
    %103 = math.exp %102 : vector<8x128xf32>
    %cst_34 = arith.constant 1.000000e+00 : f32
    %104 = vector.broadcast %cst_34 : f32 to vector<8x128xf32>
    %105 = arith.addf %104, %103 : vector<8x128xf32>
    %106 = arith.divf %104, %105 : vector<8x128xf32>
    %107 = vector.extract_strided_slice %84 {offsets = [0, 256], sizes = [8, 128], strides = [1, 1]} : vector<8x384xf32> to vector<8x128xf32>
    %108 = vector.extract_strided_slice %90 {offsets = [0, 256], sizes = [8, 128], strides = [1, 1]} : vector<8x384xf32> to vector<8x128xf32>
    %109 = arith.mulf %98, %108 : vector<8x128xf32>
    %110 = arith.addf %107, %109 : vector<8x128xf32>
    %111 = math.tanh %110 : vector<8x128xf32>
    %cst_35 = arith.constant 1.000000e+00 : f32
    %112 = vector.broadcast %cst_35 : f32 to vector<8x128xf32>
    %113 = arith.subf %112, %106 : vector<8x128xf32>
    %114 = arith.mulf %113, %111 : vector<8x128xf32>
    %115 = arith.mulf %106, %79 : vector<8x128xf32>
    %116 = arith.addf %114, %115 : vector<8x128xf32>
    %c2 = arith.constant 2 : index
    %c0_36 = arith.constant 0 : index
    %c0_37 = arith.constant 0 : index
    %117 = vector.load %arg5[%c2, %c0_36, %c0_37] : memref<8x8x128xf32, #tpu.memory_space<vmem>>, vector<1x8x128xf32>
    %118 = vector.shape_cast %117 : vector<1x8x128xf32> to vector<8x128xf32>
    %119 = vector.shape_cast %116 : vector<8x128xf32> to vector<1x8x128xf32>
    tpu.vector_store %arg5[%c2, %c0_36, %c0_37], %119 {strides = array<i32>} : memref<8x8x128xf32, #tpu.memory_space<vmem>>, vector<1x8x128xf32>,
    %120 = vector.extract_strided_slice %7 {offsets = [0, 3, 0], sizes = [8, 1, 384], strides = [1, 1, 1]} : vector<8x8x384xf32> to vector<8x1x384xf32>
    %121 = vector.shape_cast %120 : vector<8x1x384xf32> to vector<8x384xf32>
    %122 = arith.truncf %116 : vector<8x128xf32> to vector<8x128xbf16>
    %c0_38 = arith.constant 0 : index
    %c0_39 = arith.constant 0 : index
    %123 = vector.load %arg2[%c0_38, %c0_39] : memref<128x384xbf16, #tpu.memory_space<vmem>>, vector<128x384xbf16>
    %cst_40 = arith.constant dense<0.000000e+00> : vector<8x384xf32>
    %124 = tpu.matmul %122, %123, %cst_40 {dimension_numbers = #tpu.dot_dimension_numbers<[1], [0], [0], [1], [0, 0, 1, 1], [], []>} : vector<8x128xbf16>, vector<128x384xbf16>, vector<8x384xf32> -> vector<8x384xf32>
    %c0_41 = arith.constant 0 : index
    %c0_42 = arith.constant 0 : index
    %125 = vector.load %arg4[%c0_41, %c0_42] : memref<1x384xf32, #tpu.memory_space<vmem>>, vector<1x384xf32>
    %126 = vector.broadcast %125 : vector<1x384xf32> to vector<8x384xf32>
    %127 = arith.addf %124, %126 : vector<8x384xf32>
    %128 = vector.extract_strided_slice %121 {offsets = [0, 0], sizes = [8, 128], strides = [1, 1]} : vector<8x384xf32> to vector<8x128xf32>
    %129 = vector.extract_strided_slice %127 {offsets = [0, 0], sizes = [8, 128], strides = [1, 1]} : vector<8x384xf32> to vector<8x128xf32>
    %130 = arith.addf %128, %129 : vector<8x128xf32>
    %131 = arith.negf %130 : vector<8x128xf32>
    %132 = math.exp %131 : vector<8x128xf32>
    %cst_43 = arith.constant 1.000000e+00 : f32
    %133 = vector.broadcast %cst_43 : f32 to vector<8x128xf32>
    %134 = arith.addf %133, %132 : vector<8x128xf32>
    %135 = arith.divf %133, %134 : vector<8x128xf32>
    %136 = vector.extract_strided_slice %121 {offsets = [0, 128], sizes = [8, 128], strides = [1, 1]} : vector<8x384xf32> to vector<8x128xf32>
    %137 = vector.extract_strided_slice %127 {offsets = [0, 128], sizes = [8, 128], strides = [1, 1]} : vector<8x384xf32> to vector<8x128xf32>
    %138 = arith.addf %136, %137 : vector<8x128xf32>
    %139 = arith.negf %138 : vector<8x128xf32>
    %140 = math.exp %139 : vector<8x128xf32>
    %cst_44 = arith.constant 1.000000e+00 : f32
    %141 = vector.broadcast %cst_44 : f32 to vector<8x128xf32>
    %142 = arith.addf %141, %140 : vector<8x128xf32>
    %143 = arith.divf %141, %142 : vector<8x128xf32>
    %144 = vector.extract_strided_slice %121 {offsets = [0, 256], sizes = [8, 128], strides = [1, 1]} : vector<8x384xf32> to vector<8x128xf32>
    %145 = vector.extract_strided_slice %127 {offsets = [0, 256], sizes = [8, 128], strides = [1, 1]} : vector<8x384xf32> to vector<8x128xf32>
    %146 = arith.mulf %135, %145 : vector<8x128xf32>
    %147 = arith.addf %144, %146 : vector<8x128xf32>
    %148 = math.tanh %147 : vector<8x128xf32>
    %cst_45 = arith.constant 1.000000e+00 : f32
    %149 = vector.broadcast %cst_45 : f32 to vector<8x128xf32>
    %150 = arith.subf %149, %143 : vector<8x128xf32>
    %151 = arith.mulf %150, %148 : vector<8x128xf32>
    %152 = arith.mulf %143, %116 : vector<8x128xf32>
    %153 = arith.addf %151, %152 : vector<8x128xf32>
    %c3 = arith.constant 3 : index
    %c0_46 = arith.constant 0 : index
    %c0_47 = arith.constant 0 : index
    %154 = vector.load %arg5[%c3, %c0_46, %c0_47] : memref<8x8x128xf32, #tpu.memory_space<vmem>>, vector<1x8x128xf32>
    %155 = vector.shape_cast %154 : vector<1x8x128xf32> to vector<8x128xf32>
    %156 = vector.shape_cast %153 : vector<8x128xf32> to vector<1x8x128xf32>
    tpu.vector_store %arg5[%c3, %c0_46, %c0_47], %156 {strides = array<i32>} : memref<8x8x128xf32, #tpu.memory_space<vmem>>, vector<1x8x128xf32>,
    %157 = vector.extract_strided_slice %7 {offsets = [0, 4, 0], sizes = [8, 1, 384], strides = [1, 1, 1]} : vector<8x8x384xf32> to vector<8x1x384xf32>
    %158 = vector.shape_cast %157 : vector<8x1x384xf32> to vector<8x384xf32>
    %159 = arith.truncf %153 : vector<8x128xf32> to vector<8x128xbf16>
    %c0_48 = arith.constant 0 : index
    %c0_49 = arith.constant 0 : index
    %160 = vector.load %arg2[%c0_48, %c0_49] : memref<128x384xbf16, #tpu.memory_space<vmem>>, vector<128x384xbf16>
    %cst_50 = arith.constant dense<0.000000e+00> : vector<8x384xf32>
    %161 = tpu.matmul %159, %160, %cst_50 {dimension_numbers = #tpu.dot_dimension_numbers<[1], [0], [0], [1], [0, 0, 1, 1], [], []>} : vector<8x128xbf16>, vector<128x384xbf16>, vector<8x384xf32> -> vector<8x384xf32>
    %c0_51 = arith.constant 0 : index
    %c0_52 = arith.constant 0 : index
    %162 = vector.load %arg4[%c0_51, %c0_52] : memref<1x384xf32, #tpu.memory_space<vmem>>, vector<1x384xf32>
    %163 = vector.broadcast %162 : vector<1x384xf32> to vector<8x384xf32>
    %164 = arith.addf %161, %163 : vector<8x384xf32>
    %165 = vector.extract_strided_slice %158 {offsets = [0, 0], sizes = [8, 128], strides = [1, 1]} : vector<8x384xf32> to vector<8x128xf32>
    %166 = vector.extract_strided_slice %164 {offsets = [0, 0], sizes = [8, 128], strides = [1, 1]} : vector<8x384xf32> to vector<8x128xf32>
    %167 = arith.addf %165, %166 : vector<8x128xf32>
    %168 = arith.negf %167 : vector<8x128xf32>
    %169 = math.exp %168 : vector<8x128xf32>
    %cst_53 = arith.constant 1.000000e+00 : f32
    %170 = vector.broadcast %cst_53 : f32 to vector<8x128xf32>
    %171 = arith.addf %170, %169 : vector<8x128xf32>
    %172 = arith.divf %170, %171 : vector<8x128xf32>
    %173 = vector.extract_strided_slice %158 {offsets = [0, 128], sizes = [8, 128], strides = [1, 1]} : vector<8x384xf32> to vector<8x128xf32>
    %174 = vector.extract_strided_slice %164 {offsets = [0, 128], sizes = [8, 128], strides = [1, 1]} : vector<8x384xf32> to vector<8x128xf32>
    %175 = arith.addf %173, %174 : vector<8x128xf32>
    %176 = arith.negf %175 : vector<8x128xf32>
    %177 = math.exp %176 : vector<8x128xf32>
    %cst_54 = arith.constant 1.000000e+00 : f32
    %178 = vector.broadcast %cst_54 : f32 to vector<8x128xf32>
    %179 = arith.addf %178, %177 : vector<8x128xf32>
    %180 = arith.divf %178, %179 : vector<8x128xf32>
    %181 = vector.extract_strided_slice %158 {offsets = [0, 256], sizes = [8, 128], strides = [1, 1]} : vector<8x384xf32> to vector<8x128xf32>
    %182 = vector.extract_strided_slice %164 {offsets = [0, 256], sizes = [8, 128], strides = [1, 1]} : vector<8x384xf32> to vector<8x128xf32>
    %183 = arith.mulf %172, %182 : vector<8x128xf32>
    %184 = arith.addf %181, %183 : vector<8x128xf32>
    %185 = math.tanh %184 : vector<8x128xf32>
    %cst_55 = arith.constant 1.000000e+00 : f32
    %186 = vector.broadcast %cst_55 : f32 to vector<8x128xf32>
    %187 = arith.subf %186, %180 : vector<8x128xf32>
    %188 = arith.mulf %187, %185 : vector<8x128xf32>
    %189 = arith.mulf %180, %153 : vector<8x128xf32>
    %190 = arith.addf %188, %189 : vector<8x128xf32>
    %c4 = arith.constant 4 : index
    %c0_56 = arith.constant 0 : index
    %c0_57 = arith.constant 0 : index
    %191 = vector.load %arg5[%c4, %c0_56, %c0_57] : memref<8x8x128xf32, #tpu.memory_space<vmem>>, vector<1x8x128xf32>
    %192 = vector.shape_cast %191 : vector<1x8x128xf32> to vector<8x128xf32>
    %193 = vector.shape_cast %190 : vector<8x128xf32> to vector<1x8x128xf32>
    tpu.vector_store %arg5[%c4, %c0_56, %c0_57], %193 {strides = array<i32>} : memref<8x8x128xf32, #tpu.memory_space<vmem>>, vector<1x8x128xf32>,
    %194 = vector.extract_strided_slice %7 {offsets = [0, 5, 0], sizes = [8, 1, 384], strides = [1, 1, 1]} : vector<8x8x384xf32> to vector<8x1x384xf32>
    %195 = vector.shape_cast %194 : vector<8x1x384xf32> to vector<8x384xf32>
    %196 = arith.truncf %190 : vector<8x128xf32> to vector<8x128xbf16>
    %c0_58 = arith.constant 0 : index
    %c0_59 = arith.constant 0 : index
    %197 = vector.load %arg2[%c0_58, %c0_59] : memref<128x384xbf16, #tpu.memory_space<vmem>>, vector<128x384xbf16>
    %cst_60 = arith.constant dense<0.000000e+00> : vector<8x384xf32>
    %198 = tpu.matmul %196, %197, %cst_60 {dimension_numbers = #tpu.dot_dimension_numbers<[1], [0], [0], [1], [0, 0, 1, 1], [], []>} : vector<8x128xbf16>, vector<128x384xbf16>, vector<8x384xf32> -> vector<8x384xf32>
    %c0_61 = arith.constant 0 : index
    %c0_62 = arith.constant 0 : index
    %199 = vector.load %arg4[%c0_61, %c0_62] : memref<1x384xf32, #tpu.memory_space<vmem>>, vector<1x384xf32>
    %200 = vector.broadcast %199 : vector<1x384xf32> to vector<8x384xf32>
    %201 = arith.addf %198, %200 : vector<8x384xf32>
    %202 = vector.extract_strided_slice %195 {offsets = [0, 0], sizes = [8, 128], strides = [1, 1]} : vector<8x384xf32> to vector<8x128xf32>
    %203 = vector.extract_strided_slice %201 {offsets = [0, 0], sizes = [8, 128], strides = [1, 1]} : vector<8x384xf32> to vector<8x128xf32>
    %204 = arith.addf %202, %203 : vector<8x128xf32>
    %205 = arith.negf %204 : vector<8x128xf32>
    %206 = math.exp %205 : vector<8x128xf32>
    %cst_63 = arith.constant 1.000000e+00 : f32
    %207 = vector.broadcast %cst_63 : f32 to vector<8x128xf32>
    %208 = arith.addf %207, %206 : vector<8x128xf32>
    %209 = arith.divf %207, %208 : vector<8x128xf32>
    %210 = vector.extract_strided_slice %195 {offsets = [0, 128], sizes = [8, 128], strides = [1, 1]} : vector<8x384xf32> to vector<8x128xf32>
    %211 = vector.extract_strided_slice %201 {offsets = [0, 128], sizes = [8, 128], strides = [1, 1]} : vector<8x384xf32> to vector<8x128xf32>
    %212 = arith.addf %210, %211 : vector<8x128xf32>
    %213 = arith.negf %212 : vector<8x128xf32>
    %214 = math.exp %213 : vector<8x128xf32>
    %cst_64 = arith.constant 1.000000e+00 : f32
    %215 = vector.broadcast %cst_64 : f32 to vector<8x128xf32>
    %216 = arith.addf %215, %214 : vector<8x128xf32>
    %217 = arith.divf %215, %216 : vector<8x128xf32>
    %218 = vector.extract_strided_slice %195 {offsets = [0, 256], sizes = [8, 128], strides = [1, 1]} : vector<8x384xf32> to vector<8x128xf32>
    %219 = vector.extract_strided_slice %201 {offsets = [0, 256], sizes = [8, 128], strides = [1, 1]} : vector<8x384xf32> to vector<8x128xf32>
    %220 = arith.mulf %209, %219 : vector<8x128xf32>
    %221 = arith.addf %218, %220 : vector<8x128xf32>
    %222 = math.tanh %221 : vector<8x128xf32>
    %cst_65 = arith.constant 1.000000e+00 : f32
    %223 = vector.broadcast %cst_65 : f32 to vector<8x128xf32>
    %224 = arith.subf %223, %217 : vector<8x128xf32>
    %225 = arith.mulf %224, %222 : vector<8x128xf32>
    %226 = arith.mulf %217, %190 : vector<8x128xf32>
    %227 = arith.addf %225, %226 : vector<8x128xf32>
    %c5 = arith.constant 5 : index
    %c0_66 = arith.constant 0 : index
    %c0_67 = arith.constant 0 : index
    %228 = vector.load %arg5[%c5, %c0_66, %c0_67] : memref<8x8x128xf32, #tpu.memory_space<vmem>>, vector<1x8x128xf32>
    %229 = vector.shape_cast %228 : vector<1x8x128xf32> to vector<8x128xf32>
    %230 = vector.shape_cast %227 : vector<8x128xf32> to vector<1x8x128xf32>
    tpu.vector_store %arg5[%c5, %c0_66, %c0_67], %230 {strides = array<i32>} : memref<8x8x128xf32, #tpu.memory_space<vmem>>, vector<1x8x128xf32>,
    %231 = vector.extract_strided_slice %7 {offsets = [0, 6, 0], sizes = [8, 1, 384], strides = [1, 1, 1]} : vector<8x8x384xf32> to vector<8x1x384xf32>
    %232 = vector.shape_cast %231 : vector<8x1x384xf32> to vector<8x384xf32>
    %233 = arith.truncf %227 : vector<8x128xf32> to vector<8x128xbf16>
    %c0_68 = arith.constant 0 : index
    %c0_69 = arith.constant 0 : index
    %234 = vector.load %arg2[%c0_68, %c0_69] : memref<128x384xbf16, #tpu.memory_space<vmem>>, vector<128x384xbf16>
    %cst_70 = arith.constant dense<0.000000e+00> : vector<8x384xf32>
    %235 = tpu.matmul %233, %234, %cst_70 {dimension_numbers = #tpu.dot_dimension_numbers<[1], [0], [0], [1], [0, 0, 1, 1], [], []>} : vector<8x128xbf16>, vector<128x384xbf16>, vector<8x384xf32> -> vector<8x384xf32>
    %c0_71 = arith.constant 0 : index
    %c0_72 = arith.constant 0 : index
    %236 = vector.load %arg4[%c0_71, %c0_72] : memref<1x384xf32, #tpu.memory_space<vmem>>, vector<1x384xf32>
    %237 = vector.broadcast %236 : vector<1x384xf32> to vector<8x384xf32>
    %238 = arith.addf %235, %237 : vector<8x384xf32>
    %239 = vector.extract_strided_slice %232 {offsets = [0, 0], sizes = [8, 128], strides = [1, 1]} : vector<8x384xf32> to vector<8x128xf32>
    %240 = vector.extract_strided_slice %238 {offsets = [0, 0], sizes = [8, 128], strides = [1, 1]} : vector<8x384xf32> to vector<8x128xf32>
    %241 = arith.addf %239, %240 : vector<8x128xf32>
    %242 = arith.negf %241 : vector<8x128xf32>
    %243 = math.exp %242 : vector<8x128xf32>
    %cst_73 = arith.constant 1.000000e+00 : f32
    %244 = vector.broadcast %cst_73 : f32 to vector<8x128xf32>
    %245 = arith.addf %244, %243 : vector<8x128xf32>
    %246 = arith.divf %244, %245 : vector<8x128xf32>
    %247 = vector.extract_strided_slice %232 {offsets = [0, 128], sizes = [8, 128], strides = [1, 1]} : vector<8x384xf32> to vector<8x128xf32>
    %248 = vector.extract_strided_slice %238 {offsets = [0, 128], sizes = [8, 128], strides = [1, 1]} : vector<8x384xf32> to vector<8x128xf32>
    %249 = arith.addf %247, %248 : vector<8x128xf32>
    %250 = arith.negf %249 : vector<8x128xf32>
    %251 = math.exp %250 : vector<8x128xf32>
    %cst_74 = arith.constant 1.000000e+00 : f32
    %252 = vector.broadcast %cst_74 : f32 to vector<8x128xf32>
    %253 = arith.addf %252, %251 : vector<8x128xf32>
    %254 = arith.divf %252, %253 : vector<8x128xf32>
    %255 = vector.extract_strided_slice %232 {offsets = [0, 256], sizes = [8, 128], strides = [1, 1]} : vector<8x384xf32> to vector<8x128xf32>
    %256 = vector.extract_strided_slice %238 {offsets = [0, 256], sizes = [8, 128], strides = [1, 1]} : vector<8x384xf32> to vector<8x128xf32>
    %257 = arith.mulf %246, %256 : vector<8x128xf32>
    %258 = arith.addf %255, %257 : vector<8x128xf32>
    %259 = math.tanh %258 : vector<8x128xf32>
    %cst_75 = arith.constant 1.000000e+00 : f32
    %260 = vector.broadcast %cst_75 : f32 to vector<8x128xf32>
    %261 = arith.subf %260, %254 : vector<8x128xf32>
    %262 = arith.mulf %261, %259 : vector<8x128xf32>
    %263 = arith.mulf %254, %227 : vector<8x128xf32>
    %264 = arith.addf %262, %263 : vector<8x128xf32>
    %c6 = arith.constant 6 : index
    %c0_76 = arith.constant 0 : index
    %c0_77 = arith.constant 0 : index
    %265 = vector.load %arg5[%c6, %c0_76, %c0_77] : memref<8x8x128xf32, #tpu.memory_space<vmem>>, vector<1x8x128xf32>
    %266 = vector.shape_cast %265 : vector<1x8x128xf32> to vector<8x128xf32>
    %267 = vector.shape_cast %264 : vector<8x128xf32> to vector<1x8x128xf32>
    tpu.vector_store %arg5[%c6, %c0_76, %c0_77], %267 {strides = array<i32>} : memref<8x8x128xf32, #tpu.memory_space<vmem>>, vector<1x8x128xf32>,
    %268 = vector.extract_strided_slice %7 {offsets = [0, 7, 0], sizes = [8, 1, 384], strides = [1, 1, 1]} : vector<8x8x384xf32> to vector<8x1x384xf32>
    %269 = vector.shape_cast %268 : vector<8x1x384xf32> to vector<8x384xf32>
    %270 = arith.truncf %264 : vector<8x128xf32> to vector<8x128xbf16>
    %c0_78 = arith.constant 0 : index
    %c0_79 = arith.constant 0 : index
    %271 = vector.load %arg2[%c0_78, %c0_79] : memref<128x384xbf16, #tpu.memory_space<vmem>>, vector<128x384xbf16>
    %cst_80 = arith.constant dense<0.000000e+00> : vector<8x384xf32>
    %272 = tpu.matmul %270, %271, %cst_80 {dimension_numbers = #tpu.dot_dimension_numbers<[1], [0], [0], [1], [0, 0, 1, 1], [], []>} : vector<8x128xbf16>, vector<128x384xbf16>, vector<8x384xf32> -> vector<8x384xf32>
    %c0_81 = arith.constant 0 : index
    %c0_82 = arith.constant 0 : index
    %273 = vector.load %arg4[%c0_81, %c0_82] : memref<1x384xf32, #tpu.memory_space<vmem>>, vector<1x384xf32>
    %274 = vector.broadcast %273 : vector<1x384xf32> to vector<8x384xf32>
    %275 = arith.addf %272, %274 : vector<8x384xf32>
    %276 = vector.extract_strided_slice %269 {offsets = [0, 0], sizes = [8, 128], strides = [1, 1]} : vector<8x384xf32> to vector<8x128xf32>
    %277 = vector.extract_strided_slice %275 {offsets = [0, 0], sizes = [8, 128], strides = [1, 1]} : vector<8x384xf32> to vector<8x128xf32>
    %278 = arith.addf %276, %277 : vector<8x128xf32>
    %279 = arith.negf %278 : vector<8x128xf32>
    %280 = math.exp %279 : vector<8x128xf32>
    %cst_83 = arith.constant 1.000000e+00 : f32
    %281 = vector.broadcast %cst_83 : f32 to vector<8x128xf32>
    %282 = arith.addf %281, %280 : vector<8x128xf32>
    %283 = arith.divf %281, %282 : vector<8x128xf32>
    %284 = vector.extract_strided_slice %269 {offsets = [0, 128], sizes = [8, 128], strides = [1, 1]} : vector<8x384xf32> to vector<8x128xf32>
    %285 = vector.extract_strided_slice %275 {offsets = [0, 128], sizes = [8, 128], strides = [1, 1]} : vector<8x384xf32> to vector<8x128xf32>
    %286 = arith.addf %284, %285 : vector<8x128xf32>
    %287 = arith.negf %286 : vector<8x128xf32>
    %288 = math.exp %287 : vector<8x128xf32>
    %cst_84 = arith.constant 1.000000e+00 : f32
    %289 = vector.broadcast %cst_84 : f32 to vector<8x128xf32>
    %290 = arith.addf %289, %288 : vector<8x128xf32>
    %291 = arith.divf %289, %290 : vector<8x128xf32>
    %292 = vector.extract_strided_slice %269 {offsets = [0, 256], sizes = [8, 128], strides = [1, 1]} : vector<8x384xf32> to vector<8x128xf32>
    %293 = vector.extract_strided_slice %275 {offsets = [0, 256], sizes = [8, 128], strides = [1, 1]} : vector<8x384xf32> to vector<8x128xf32>
    %294 = arith.mulf %283, %293 : vector<8x128xf32>
    %295 = arith.addf %292, %294 : vector<8x128xf32>
    %296 = math.tanh %295 : vector<8x128xf32>
    %cst_85 = arith.constant 1.000000e+00 : f32
    %297 = vector.broadcast %cst_85 : f32 to vector<8x128xf32>
    %298 = arith.subf %297, %291 : vector<8x128xf32>
    %299 = arith.mulf %298, %296 : vector<8x128xf32>
    %300 = arith.mulf %291, %264 : vector<8x128xf32>
    %301 = arith.addf %299, %300 : vector<8x128xf32>
    %c7 = arith.constant 7 : index
    %c0_86 = arith.constant 0 : index
    %c0_87 = arith.constant 0 : index
    %302 = vector.load %arg5[%c7, %c0_86, %c0_87] : memref<8x8x128xf32, #tpu.memory_space<vmem>>, vector<1x8x128xf32>
    %303 = vector.shape_cast %302 : vector<1x8x128xf32> to vector<8x128xf32>
    %304 = vector.shape_cast %301 : vector<8x128xf32> to vector<1x8x128xf32>
    tpu.vector_store %arg5[%c7, %c0_86, %c0_87], %304 {strides = array<i32>} : memref<8x8x128xf32, #tpu.memory_space<vmem>>, vector<1x8x128xf32>,
    return
  }
}

</mosaic_0001>

<llo_original>
// kernel: tpu_custom_call.1
$region0: #{tpu_custom_call.1}
  #allocation0 [shape = 'u32[]', space=smem, size = 0x4, offset = 0x4, fixed_abs, tag = 'smem constant byte address 0x4 - core index']
  #allocation1 [shape = 'u32[144,128]{1,0:T(1,128)}', space=vmem, size = 0x12000, scoped, tag = 'internal scratch']
  %s0 = inlined_call_operand.hbm [shape: bf16[8,8,128], index: 0, kind: input, shape index: {}]
  %s1 = inlined_call_operand.hbm [shape: bf16[128,384], index: 1, kind: input, shape index: {}]
  %s2 = inlined_call_operand.hbm [shape: bf16[128,384], index: 2, kind: input, shape index: {}]
  %s3 = inlined_call_operand.vmem [shape: f32[1,384], index: 3, kind: input, shape index: {}]
  %s4 = inlined_call_operand.vmem [shape: f32[1,384], index: 4, kind: input, shape index: {}]
  %s5 = inlined_call_operand.hbm [shape: f32[8,8,128], index: 5, kind: output, shape index: {}]
  %s6 = sld [smem:[#allocation0]]
  $region42: #{tpu_custom_call.1} parent=0
    _
  %s8 = ssub.s32 1, %s6
  %s9 = scalar_select 0, %s8, %s6
  $region1: #{tpu_custom_call.1} parent=0
    #allocation2 [shape = 'u8[16384]{0}', space=vmem, size = 0x4000, scoped, tag = 'input window, operand 0, single buffered']
    #allocation3 [shape = 's32[1]{0}', space=sflag, size = 0x4, scoped, tag = 'scoped memory for tpu_custom_call.1']
    #allocation4 [shape = 's32[1]{0}', space=sflag, size = 0x4, scoped, tag = 'scoped memory for tpu_custom_call.1']
    #allocation5 [shape = 'u8[98304]{0}', space=vmem, size = 0x18000, scoped, tag = 'input window, operand 1, single buffered']
    #allocation6 [shape = 's32[1]{0}', space=sflag, size = 0x4, scoped, tag = 'scoped memory for tpu_custom_call.1']
    #allocation7 [shape = 'u8[98304]{0}', space=vmem, size = 0x18000, scoped, tag = 'input window, operand 2, single buffered']
    #allocation8 [shape = 'u8[32768]{0}', space=vmem, size = 0x8000, scoped, tag = 'output window, operand 0, single buffered']
    %10 = vsyncpa [#allocation3], 0
    %11 = vsyncpa [#allocation6], 0
    %12 = vsyncpa [#allocation4], 0
    // Predicated region
    $region2: #{tpu_custom_call.1} parent=1 // pred_check
      _
    $region3: #{tpu_custom_call.1} parent=1 // pred_check_branch
      %14 = sbr.rel (0) target = $region5
    $region4: #{tpu_custom_call.1} parent=1 // pred_region
      %s16 = ssub.s32 512, 512
      %17 = vsyncadd [#allocation3], %s16
      %s18 = sshll.u32 [#allocation2], 4
      %s19 = int_to_ptr.vmem [resolvable:$true] %s18
      %24 = dma.hbm_to_vmem [thread:$0]  %s0, 512, %s19, [#allocation3], 64, 64, 4
    $region5: #{tpu_custom_call.1} parent=1 // pred_fallthru
      _
    // Predicated region
    $region6: #{tpu_custom_call.1} parent=1 // pred_check
      _
    $region7: #{tpu_custom_call.1} parent=1 // pred_check_branch
      %26 = sbr.rel (0) target = $region9
    $region8: #{tpu_custom_call.1} parent=1 // pred_region
      %s28 = ssub.s32 3072, 3072
      %29 = vsyncadd [#allocation6], %s28
      %s30 = sshll.u32 [#allocation5], 4
      %s31 = int_to_ptr.vmem [resolvable:$true] %s30
      %36 = dma.hbm_to_vmem [thread:$0]  %s1, 3072, %s31, [#allocation6], 192, 192, 12
    $region9: #{tpu_custom_call.1} parent=1 // pred_fallthru
      _
    // Predicated region
    $region10: #{tpu_custom_call.1} parent=1 // pred_check
      _
    $region11: #{tpu_custom_call.1} parent=1 // pred_check_branch
      %38 = sbr.rel (0) target = $region13
    $region12: #{tpu_custom_call.1} parent=1 // pred_region
      %s40 = ssub.s32 3072, 3072
      %41 = vsyncadd [#allocation6], %s40
      %s42 = sshll.u32 [#allocation7], 4
      %s43 = int_to_ptr.vmem [resolvable:$true] %s42
      %48 = dma.hbm_to_vmem [thread:$0]  %s2, 3072, %s43, [#allocation6], 192, 192, 12
    $region13: #{tpu_custom_call.1} parent=1 // pred_fallthru
      _
    // Predicated region
    $region14: #{tpu_custom_call.1} parent=1 // pred_check
      _
    $region15: #{tpu_custom_call.1} parent=1 // pred_check_branch
      %50 = sbr.rel (0) target = $region17
    $region16: #{tpu_custom_call.1} parent=1 // pred_region
      _
    $region17: #{tpu_custom_call.1} parent=1 // pred_fallthru
      _
    // Predicated region
    $region18: #{tpu_custom_call.1} parent=1 // pred_check
      _
    $region19: #{tpu_custom_call.1} parent=1 // pred_check_branch
      %52 = sbr.rel (0) target = $region21
    $region20: #{tpu_custom_call.1} parent=1 // pred_region
      _
    $region21: #{tpu_custom_call.1} parent=1 // pred_fallthru
      _
    // Predicated region
    $region22: #{tpu_custom_call.1} parent=1 // pred_check
      _
    $region23: #{tpu_custom_call.1} parent=1 // pred_check_branch
      %54 = sbr.rel (0) target = $region25
    $region24: #{tpu_custom_call.1} parent=1 // pred_region
      %55 = dma.done [#allocation3], 512
    $region25: #{tpu_custom_call.1} parent=1 // pred_fallthru
      _
    // Predicated region
    $region26: #{tpu_custom_call.1} parent=1 // pred_check
      _
    $region27: #{tpu_custom_call.1} parent=1 // pred_check_branch
      %57 = sbr.rel (0) target = $region29
    $region28: #{tpu_custom_call.1} parent=1 // pred_region
      %58 = dma.done [#allocation6], 3072
    $region29: #{tpu_custom_call.1} parent=1 // pred_fallthru
      _
    // Predicated region
    $region30: #{tpu_custom_call.1} parent=1 // pred_check
      _
    $region31: #{tpu_custom_call.1} parent=1 // pred_check_branch
      %60 = sbr.rel (0) target = $region33
    $region32: #{tpu_custom_call.1} parent=1 // pred_region
      %61 = dma.done [#allocation6], 3072
    $region33: #{tpu_custom_call.1} parent=1 // pred_fallthru
      _
    %v63 = vld [vmem:[#allocation2] sm:$0xf]
    %v64 = vld [vmem:[#allocation2 + $0x4] sm:$0xf]
    %v65 = vld [vmem:[#allocation2 + $0x8] sm:$0xf]
    %v66 = vld [vmem:[#allocation2 + $0xc] sm:$0xf]
    %v67 = vld [vmem:[#allocation2 + $0x10] sm:$0xf]
    %v68 = vld [vmem:[#allocation2 + $0x14] sm:$0xf]
    %v69 = vld [vmem:[#allocation2 + $0x18] sm:$0xf]
    %v70 = vld [vmem:[#allocation2 + $0x1c] sm:$0xf]
    %v71 = vld [vmem:[#allocation5] sm:$0xff]
    %v72 = vld [vmem:[#allocation5 + $0x8] sm:$0xf]
    %v73 = vld [vmem:[#allocation5 + $0xc] sm:$0xff]
    %v74 = vld [vmem:[#allocation5 + $0x14] sm:$0xf]
    %v75 = vld [vmem:[#allocation5 + $0x18] sm:$0xff]
    %v76 = vld [vmem:[#allocation5 + $0x20] sm:$0xf]
    %v77 = vld [vmem:[#allocation5 + $0x24] sm:$0xff]
    %v78 = vld [vmem:[#allocation5 + $0x2c] sm:$0xf]
    %v79 = vld [vmem:[#allocation5 + $0x30] sm:$0xff]
    %v80 = vld [vmem:[#allocation5 + $0x38] sm:$0xf]
    %v81 = vld [vmem:[#allocation5 + $0x3c] sm:$0xff]
    %v82 = vld [vmem:[#allocation5 + $0x44] sm:$0xf]
    %v83 = vld [vmem:[#allocation5 + $0x48] sm:$0xff]
    %v84 = vld [vmem:[#allocation5 + $0x50] sm:$0xf]
    %v85 = vld [vmem:[#allocation5 + $0x54] sm:$0xff]
    %v86 = vld [vmem:[#allocation5 + $0x5c] sm:$0xf]
    %v87 = vld [vmem:[#allocation5 + $0x60] sm:$0xff]
    %v88 = vld [vmem:[#allocation5 + $0x68] sm:$0xf]
    %v89 = vld [vmem:[#allocation5 + $0x6c] sm:$0xff]
    %v90 = vld [vmem:[#allocation5 + $0x74] sm:$0xf]
    %v91 = vld [vmem:[#allocation5 + $0x78] sm:$0xff]
    %v92 = vld [vmem:[#allocation5 + $0x80] sm:$0xf]
    %v93 = vld [vmem:[#allocation5 + $0x84] sm:$0xff]
    %v94 = vld [vmem:[#allocation5 + $0x8c] sm:$0xf]
    %v95 = vld [vmem:[#allocation5 + $0x90] sm:$0xff]
    %v96 = vld [vmem:[#allocation5 + $0x98] sm:$0xf]
    %v97 = vld [vmem:[#allocation5 + $0x9c] sm:$0xff]
    %v98 = vld [vmem:[#allocation5 + $0xa4] sm:$0xf]
    %v99 = vld [vmem:[#allocation5 + $0xa8] sm:$0xff]
    %v100 = vld [vmem:[#allocation5 + $0xb0] sm:$0xf]
    %v101 = vld [vmem:[#allocation5 + $0xb4] sm:$0xff]
    %v102 = vld [vmem:[#allocation5 + $0xbc] sm:$0xf]
    %v103 = vld [vmem:[%s3] sm:$0x7]
    %v105 = vlaneseq
    %v106 = vshrl.u32 %v105, 7
    %v107 = vsub.s32 0, %v106
    %v108 = vrot.slane %v103, %v107
    %v109 = vlaneseq
    %v110 = vshrl.u32 %v109, 7
    %v111 = vsub.s32 1, %v110
    %v112 = vrot.slane %v103, %v111
    %v113 = vlaneseq
    %v114 = vshrl.u32 %v113, 7
    %v115 = vsub.s32 2, %v114
    %v116 = vrot.slane %v103, %v115
    %v128 = vunpack.c.l.b16 %v63
    %v129 = vunpack.c.l.b16 %v64
    %v130 = vunpack.c.l.b16 %v65
    %v131 = vunpack.c.l.b16 %v66
    %v132 = vunpack.c.l.b16 %v67
    %v133 = vunpack.c.l.b16 %v68
    %v134 = vunpack.c.l.b16 %v69
    %v135 = vunpack.c.l.b16 %v70
    %v136 = vpack.c.b16 %v129, %v128
    %v137 = vpack.c.b16 %v131, %v130
    %v138 = vpack.c.b16 %v133, %v132
    %v139 = vpack.c.b16 %v135, %v134
    %v176 = vunpack.c.l.b16 %v71
    %v177 = vunpack.c.h.b16 %v71
    %v178 = vunpack.c.l.b16 %v72
    %v179 = vunpack.c.l.b16 %v73
    %v180 = vunpack.c.h.b16 %v73
    %v181 = vunpack.c.l.b16 %v74
    %v182 = vunpack.c.l.b16 %v75
    %v183 = vunpack.c.h.b16 %v75
    %v184 = vunpack.c.l.b16 %v76
    %v185 = vunpack.c.l.b16 %v77
    %v186 = vunpack.c.h.b16 %v77
    %v187 = vunpack.c.l.b16 %v78
    %v188 = vunpack.c.l.b16 %v79
    %v189 = vunpack.c.h.b16 %v79
    %v190 = vunpack.c.l.b16 %v80
    %v191 = vunpack.c.l.b16 %v81
    %v192 = vunpack.c.h.b16 %v81
    %v193 = vunpack.c.l.b16 %v82
    %v194 = vunpack.c.l.b16 %v83
    %v195 = vunpack.c.h.b16 %v83
    %v196 = vunpack.c.l.b16 %v84
    %v197 = vunpack.c.l.b16 %v85
    %v198 = vunpack.c.h.b16 %v85
    %v199 = vunpack.c.l.b16 %v86
    %v200 = vunpack.c.l.b16 %v87
    %v201 = vunpack.c.h.b16 %v87
    %v202 = vunpack.c.l.b16 %v88
    %v203 = vunpack.c.l.b16 %v89
    %v204 = vunpack.c.h.b16 %v89
    %v205 = vunpack.c.l.b16 %v90
    %v206 = vunpack.c.l.b16 %v91
    %v207 = vunpack.c.h.b16 %v91
    %v208 = vunpack.c.l.b16 %v92
    %v209 = vunpack.c.l.b16 %v93
    %v210 = vunpack.c.h.b16 %v93
    %v211 = vunpack.c.l.b16 %v94
    %v212 = vunpack.c.l.b16 %v95
    %v213 = vunpack.c.h.b16 %v95
    %v214 = vunpack.c.l.b16 %v96
    %v215 = vunpack.c.l.b16 %v97
    %v216 = vunpack.c.h.b16 %v97
    %v217 = vunpack.c.l.b16 %v98
    %v218 = vunpack.c.l.b16 %v99
    %v219 = vunpack.c.h.b16 %v99
    %v220 = vunpack.c.l.b16 %v100
    %v221 = vunpack.c.l.b16 %v101
    %v222 = vunpack.c.h.b16 %v101
    %v223 = vunpack.c.l.b16 %v102
    %v224 = vpack.c.b16 %v179, %v176
    %v225 = vpack.c.b16 %v180, %v177
    %v226 = vpack.c.b16 %v181, %v178
    %v227 = vpack.c.b16 %v185, %v182
    %v228 = vpack.c.b16 %v186, %v183
    %v229 = vpack.c.b16 %v187, %v184
    %v230 = vpack.c.b16 %v191, %v188
    %v231 = vpack.c.b16 %v192, %v189
    %v232 = vpack.c.b16 %v193, %v190
    %v233 = vpack.c.b16 %v197, %v194
    %v234 = vpack.c.b16 %v198, %v195
    %v235 = vpack.c.b16 %v199, %v196
    %v236 = vpack.c.b16 %v203, %v200
    %v237 = vpack.c.b16 %v204, %v201
    %v238 = vpack.c.b16 %v205, %v202
    %v239 = vpack.c.b16 %v209, %v206
    %v240 = vpack.c.b16 %v210, %v207
    %v241 = vpack.c.b16 %v211, %v208
    %v242 = vpack.c.b16 %v215, %v212
    %v243 = vpack.c.b16 %v216, %v213
    %v244 = vpack.c.b16 %v217, %v214
    %v245 = vpack.c.b16 %v221, %v218
    %v246 = vpack.c.b16 %v222, %v219
    %v247 = vpack.c.b16 %v223, %v220
    %272 = vmatprep.subr.bf16.mxu0 %v246
    %273 = vmatpush1.bf16.msra.mxu0 %v245
    %274 = vmatprep.subr.bf16.mxu0 %v243
    %275 = vmatpush1.bf16.msra.mxu0 %v242
    %276 = vmatprep.subr.bf16.mxu0 %v240
    %277 = vmatpush1.bf16.msra.mxu0 %v239
    %278 = vmatprep.subr.bf16.mxu0 %v237
    %279 = vmatpush1.bf16.msra.mxu0 %v236
    %280 = vmatprep.subr.bf16.mxu0 %v234
    %281 = vmatpush1.bf16.msra.mxu0 %v233
    %282 = vmatprep.subr.bf16.mxu0 %v231
    %283 = vmatpush1.bf16.msra.mxu0 %v230
    %284 = vmatprep.subr.bf16.mxu0 %v228
    %285 = vmatpush1.bf16.msra.mxu0 %v227
    %286 = vmatprep.subr.bf16.mxu0 %v225
    %287 = vmatpush1.bf16.msra.mxu0 %v224
    %288 = vmatprep.subr.bf16.mxu0 0
    %289 = vmatpush2.bf16.msra.mxu0 0
    %290 = vmatprep.subr.bf16.mxu0 0
    %291 = vmatpush2.bf16.msra.mxu0 0
    %292 = vmatprep.subr.bf16.mxu0 0
    %293 = vmatpush2.bf16.msra.mxu0 0
    %294 = vmatprep.subr.bf16.mxu0 0
    %295 = vmatpush2.bf16.msra.mxu0 0
    %296 = vmatprep.subr.bf16.mxu0 0
    %297 = vmatpush2.bf16.msra.mxu0 0
    %298 = vmatprep.subr.bf16.mxu0 0
    %299 = vmatpush2.bf16.msra.mxu0 0
    %300 = vmatprep.subr.bf16.mxu0 0
    %301 = vmatpush2.bf16.msra.mxu0 0
    %302 = vmatprep.subr.bf16.mxu0 0
    %303 = vmatpush2.bf16.msra.mxu0 0
    %304 = vmatprep.mubr.bf16.mxu0 0
    %305 = vmatmul.mubr.bf16.gmra.mxu0 %v136
    %v306 = vpop.f32.mrf.mxu0
    %v307 = vadd.f32 %v108, %v306
    %v308 = vpop.f32.mrf.mxu0
    %v309 = vadd.f32 %v112, %v308
    %v310 = vpop.f32.mrf.mxu0
    %v311 = vadd.f32 %v108, %v310
    %v312 = vpop.f32.mrf.mxu0
    %v313 = vadd.f32 %v112, %v312
    %314 = vmatprep.mubr.bf16.mxu0 0
    %315 = vmatmul.mubr.bf16.gmra.mxu0 %v137
    %v316 = vpop.f32.mrf.mxu0
    %v317 = vadd.f32 %v108, %v316
    %v318 = vpop.f32.mrf.mxu0
    %v319 = vadd.f32 %v112, %v318
    %v320 = vpop.f32.mrf.mxu0
    %v321 = vadd.f32 %v108, %v320
    %v322 = vpop.f32.mrf.mxu0
    %v323 = vadd.f32 %v112, %v322
    %324 = vmatprep.mubr.bf16.mxu0 0
    %325 = vmatmul.mubr.bf16.gmra.mxu0 %v138
    %v326 = vpop.f32.mrf.mxu0
    %v327 = vadd.f32 %v108, %v326
    %v328 = vpop.f32.mrf.mxu0
    %v329 = vadd.f32 %v112, %v328
    %v330 = vpop.f32.mrf.mxu0
    %v331 = vadd.f32 %v108, %v330
    %v332 = vpop.f32.mrf.mxu0
    %v333 = vadd.f32 %v112, %v332
    %334 = vmatprep.mubr.bf16.mxu0 0
    %335 = vmatmul.mubr.bf16.gmra.mxu0 %v139
    %v336 = vpop.f32.mrf.mxu0
    %v337 = vadd.f32 %v108, %v336
    %v338 = vpop.f32.mrf.mxu0
    %v339 = vadd.f32 %v112, %v338
    %v340 = vpop.f32.mrf.mxu0
    %v341 = vadd.f32 %v108, %v340
    %v342 = vpop.f32.mrf.mxu0
    %v343 = vadd.f32 %v112, %v342
    %344 = vdwg.mxu0
    %345 = vmatprep.subr.bf16.mxu0 0
    %346 = vmatpush1.bf16.msra.mxu0 %v247
    %347 = vmatprep.subr.bf16.mxu0 0
    %348 = vmatpush1.bf16.msra.mxu0 %v244
    %349 = vmatprep.subr.bf16.mxu0 0
    %350 = vmatpush1.bf16.msra.mxu0 %v241
    %351 = vmatprep.subr.bf16.mxu0 0
    %352 = vmatpush1.bf16.msra.mxu0 %v238
    %353 = vmatprep.subr.bf16.mxu0 0
    %354 = vmatpush1.bf16.msra.mxu0 %v235
    %355 = vmatprep.subr.bf16.mxu0 0
    %356 = vmatpush1.bf16.msra.mxu0 %v232
    %357 = vmatprep.subr.bf16.mxu0 0
    %358 = vmatpush1.bf16.msra.mxu0 %v229
    %359 = vmatprep.subr.bf16.mxu0 0
    %360 = vmatpush1.bf16.msra.mxu0 %v226
    %361 = vmatprep.subr.bf16.mxu0 0
    %362 = vmatpush2.bf16.msra.mxu0 0
    %363 = vmatprep.subr.bf16.mxu0 0
    %364 = vmatpush2.bf16.msra.mxu0 0
    %365 = vmatprep.subr.bf16.mxu0 0
    %366 = vmatpush2.bf16.msra.mxu0 0
    %367 = vmatprep.subr.bf16.mxu0 0
    %368 = vmatpush2.bf16.msra.mxu0 0
    %369 = vmatprep.subr.bf16.mxu0 0
    %370 = vmatpush2.bf16.msra.mxu0 0
    %371 = vmatprep.subr.bf16.mxu0 0
    %372 = vmatpush2.bf16.msra.mxu0 0
    %373 = vmatprep.subr.bf16.mxu0 0
    %374 = vmatpush2.bf16.msra.mxu0 0
    %375 = vmatprep.subr.bf16.mxu0 0
    %376 = vmatpush2.bf16.msra.mxu0 0
    %377 = vmatprep.mubr.bf16.mxu0 0
    %378 = vmatmul.mubr.bf16.gmra.mxu0 %v136
    %v379 = vpop.f32.mrf.mxu0
    %v380 = vadd.f32 %v116, %v379
    %v381 = vpop.f32.mrf.mxu0
    %v382 = vpop.f32.mrf.mxu0
    %v383 = vadd.f32 %v116, %v382
    %v384 = vpop.f32.mrf.mxu0
    %385 = vmatprep.mubr.bf16.mxu0 0
    %386 = vmatmul.mubr.bf16.gmra.mxu0 %v137
    %v387 = vpop.f32.mrf.mxu0
    %v388 = vadd.f32 %v116, %v387
    %v389 = vpop.f32.mrf.mxu0
    %v390 = vpop.f32.mrf.mxu0
    %v391 = vadd.f32 %v116, %v390
    %v392 = vpop.f32.mrf.mxu0
    %393 = vmatprep.mubr.bf16.mxu0 0
    %394 = vmatmul.mubr.bf16.gmra.mxu0 %v138
    %v395 = vpop.f32.mrf.mxu0
    %v396 = vadd.f32 %v116, %v395
    %v397 = vpop.f32.mrf.mxu0
    %v398 = vpop.f32.mrf.mxu0
    %v399 = vadd.f32 %v116, %v398
    %v400 = vpop.f32.mrf.mxu0
    %401 = vmatprep.mubr.bf16.mxu0 0
    %402 = vmatmul.mubr.bf16.gmra.mxu0 %v139
    %v403 = vpop.f32.mrf.mxu0
    %v404 = vadd.f32 %v116, %v403
    %v405 = vpop.f32.mrf.mxu0
    %v406 = vpop.f32.mrf.mxu0
    %v407 = vadd.f32 %v116, %v406
    %v408 = vpop.f32.mrf.mxu0
    %409 = vdwg.mxu0
    %v410 = vld [vmem:[#allocation7] sm:$0xff]
    %v411 = vld [vmem:[#allocation7 + $0x8] sm:$0xf]
    %v412 = vld [vmem:[#allocation7 + $0xc] sm:$0xff]
    %v413 = vld [vmem:[#allocation7 + $0x14] sm:$0xf]
    %v414 = vld [vmem:[#allocation7 + $0x18] sm:$0xff]
    %v415 = vld [vmem:[#allocation7 + $0x20] sm:$0xf]
    %v416 = vld [vmem:[#allocation7 + $0x24] sm:$0xff]
    %v417 = vld [vmem:[#allocation7 + $0x2c] sm:$0xf]
    %v418 = vld [vmem:[#allocation7 + $0x30] sm:$0xff]
    %v419 = vld [vmem:[#allocation7 + $0x38] sm:$0xf]
    %v420 = vld [vmem:[#allocation7 + $0x3c] sm:$0xff]
    %v421 = vld [vmem:[#allocation7 + $0x44] sm:$0xf]
    %v422 = vld [vmem:[#allocation7 + $0x48] sm:$0xff]
    %v423 = vld [vmem:[#allocation7 + $0x50] sm:$0xf]
    %v424 = vld [vmem:[#allocation7 + $0x54] sm:$0xff]
    %v425 = vld [vmem:[#allocation7 + $0x5c] sm:$0xf]
    %v426 = vld [vmem:[#allocation7 + $0x60] sm:$0xff]
    %v427 = vld [vmem:[#allocation7 + $0x68] sm:$0xf]
    %v428 = vld [vmem:[#allocation7 + $0x6c] sm:$0xff]
    %v429 = vld [vmem:[#allocation7 + $0x74] sm:$0xf]
    %v430 = vld [vmem:[#allocation7 + $0x78] sm:$0xff]
    %v431 = vld [vmem:[#allocation7 + $0x80] sm:$0xf]
    %v432 = vld [vmem:[#allocation7 + $0x84] sm:$0xff]
    %v433 = vld [vmem:[#allocation7 + $0x8c] sm:$0xf]
    %v434 = vld [vmem:[#allocation7 + $0x90] sm:$0xff]
    %v435 = vld [vmem:[#allocation7 + $0x98] sm:$0xf]
    %v436 = vld [vmem:[#allocation7 + $0x9c] sm:$0xff]
    %v437 = vld [vmem:[#allocation7 + $0xa4] sm:$0xf]
    %v438 = vld [vmem:[#allocation7 + $0xa8] sm:$0xff]
    %v439 = vld [vmem:[#allocation7 + $0xb0] sm:$0xf]
    %v440 = vld [vmem:[#allocation7 + $0xb4] sm:$0xff]
    %v441 = vld [vmem:[#allocation7 + $0xbc] sm:$0xf]
    %v442 = vld [vmem:[%s4] sm:$0x7]
    %v444 = vlaneseq
    %v445 = vshrl.u32 %v444, 7
    %v446 = vsub.s32 0, %v445
    %v447 = vrot.slane %v442, %v446
    %v448 = vlaneseq
    %v449 = vshrl.u32 %v448, 7
    %v450 = vsub.s32 1, %v449
    %v451 = vrot.slane %v442, %v450
    %v452 = vlaneseq
    %v453 = vshrl.u32 %v452, 7
    %v454 = vsub.s32 2, %v453
    %v455 = vrot.slane %v442, %v454
    %v491 = vunpack.c.l.b16 %v410
    %v492 = vunpack.c.h.b16 %v410
    %v493 = vunpack.c.l.b16 %v411
    %v494 = vunpack.c.l.b16 %v412
    %v495 = vunpack.c.h.b16 %v412
    %v496 = vunpack.c.l.b16 %v413
    %v497 = vunpack.c.l.b16 %v414
    %v498 = vunpack.c.h.b16 %v414
    %v499 = vunpack.c.l.b16 %v415
    %v500 = vunpack.c.l.b16 %v416
    %v501 = vunpack.c.h.b16 %v416
    %v502 = vunpack.c.l.b16 %v417
    %v503 = vunpack.c.l.b16 %v418
    %v504 = vunpack.c.h.b16 %v418
    %v505 = vunpack.c.l.b16 %v419
    %v506 = vunpack.c.l.b16 %v420
    %v507 = vunpack.c.h.b16 %v420
    %v508 = vunpack.c.l.b16 %v421
    %v509 = vunpack.c.l.b16 %v422
    %v510 = vunpack.c.h.b16 %v422
    %v511 = vunpack.c.l.b16 %v423
    %v512 = vunpack.c.l.b16 %v424
    %v513 = vunpack.c.h.b16 %v424
    %v514 = vunpack.c.l.b16 %v425
    %v515 = vunpack.c.l.b16 %v426
    %v516 = vunpack.c.h.b16 %v426
    %v517 = vunpack.c.l.b16 %v427
    %v518 = vunpack.c.l.b16 %v428
    %v519 = vunpack.c.h.b16 %v428
    %v520 = vunpack.c.l.b16 %v429
    %v521 = vunpack.c.l.b16 %v430
    %v522 = vunpack.c.h.b16 %v430
    %v523 = vunpack.c.l.b16 %v431
    %v524 = vunpack.c.l.b16 %v432
    %v525 = vunpack.c.h.b16 %v432
    %v526 = vunpack.c.l.b16 %v433
    %v527 = vunpack.c.l.b16 %v434
    %v528 = vunpack.c.h.b16 %v434
    %v529 = vunpack.c.l.b16 %v435
    %v530 = vunpack.c.l.b16 %v436
    %v531 = vunpack.c.h.b16 %v436
    %v532 = vunpack.c.l.b16 %v437
    %v533 = vunpack.c.l.b16 %v438
    %v534 = vunpack.c.h.b16 %v438
    %v535 = vunpack.c.l.b16 %v439
    %v536 = vunpack.c.l.b16 %v440
    %v537 = vunpack.c.h.b16 %v440
    %v538 = vunpack.c.l.b16 %v441
    %v539 = vpack.c.b16 %v494, %v491
    %v540 = vpack.c.b16 %v495, %v492
    %v541 = vpack.c.b16 %v496, %v493
    %v542 = vpack.c.b16 %v500, %v497
    %v543 = vpack.c.b16 %v501, %v498
    %v544 = vpack.c.b16 %v502, %v499
    %v545 = vpack.c.b16 %v506, %v503
    %v546 = vpack.c.b16 %v507, %v504
    %v547 = vpack.c.b16 %v508, %v505
    %v548 = vpack.c.b16 %v512, %v509
    %v549 = vpack.c.b16 %v513, %v510
    %v550 = vpack.c.b16 %v514, %v511
    %v551 = vpack.c.b16 %v518, %v515
    %v552 = vpack.c.b16 %v519, %v516
    %v553 = vpack.c.b16 %v520, %v517
    %v554 = vpack.c.b16 %v524, %v521
    %v555 = vpack.c.b16 %v525, %v522
    %v556 = vpack.c.b16 %v526, %v523
    %v557 = vpack.c.b16 %v530, %v527
    %v558 = vpack.c.b16 %v531, %v528
    %v559 = vpack.c.b16 %v532, %v529
    %v560 = vpack.c.b16 %v536, %v533
    %v561 = vpack.c.b16 %v537, %v534
    %v562 = vpack.c.b16 %v538, %v535
    %587 = vmatprep.subr.bf16.mxu0 %v561
    %588 = vmatpush1.bf16.msra.mxu0 %v560
    %589 = vmatprep.subr.bf16.mxu0 %v558
    %590 = vmatpush1.bf16.msra.mxu0 %v557
    %591 = vmatprep.subr.bf16.mxu0 %v555
    %592 = vmatpush1.bf16.msra.mxu0 %v554
    %593 = vmatprep.subr.bf16.mxu0 %v552
    %594 = vmatpush1.bf16.msra.mxu0 %v551
    %595 = vmatprep.subr.bf16.mxu0 %v549
    %596 = vmatpush1.bf16.msra.mxu0 %v548
    %597 = vmatprep.subr.bf16.mxu0 %v546
    %598 = vmatpush1.bf16.msra.mxu0 %v545
    %599 = vmatprep.subr.bf16.mxu0 %v543
    %600 = vmatpush1.bf16.msra.mxu0 %v542
    %601 = vmatprep.subr.bf16.mxu0 %v540
    %602 = vmatpush1.bf16.msra.mxu0 %v539
    %603 = vmatprep.subr.bf16.mxu0 0
    %604 = vmatpush2.bf16.msra.mxu0 0
    %605 = vmatprep.subr.bf16.mxu0 0
    %606 = vmatpush2.bf16.msra.mxu0 0
    %607 = vmatprep.subr.bf16.mxu0 0
    %608 = vmatpush2.bf16.msra.mxu0 0
    %609 = vmatprep.subr.bf16.mxu0 0
    %610 = vmatpush2.bf16.msra.mxu0 0
    %611 = vmatprep.subr.bf16.mxu0 0
    %612 = vmatpush2.bf16.msra.mxu0 0
    %613 = vmatprep.subr.bf16.mxu0 0
    %614 = vmatpush2.bf16.msra.mxu0 0
    %615 = vmatprep.subr.bf16.mxu0 0
    %616 = vmatpush2.bf16.msra.mxu0 0
    %617 = vmatprep.subr.bf16.mxu0 0
    %618 = vmatpush2.bf16.msra.mxu0 0
    %619 = vmatprep.mubr.bf16.mxu0 0
    %620 = vmatmul.mubr.bf16.gmra.mxu0 0
    %v621 = vpop.f32.mrf.mxu0
    %v622 = vadd.f32 %v447, %v621
    %v623 = vpop.f32.mrf.mxu0
    %v624 = vadd.f32 %v451, %v623
    %v625 = vpop.f32.mrf.mxu0
    %v626 = vpop.f32.mrf.mxu0
    %627 = vdwg.mxu0
    %628 = vmatprep.subr.bf16.mxu0 0
    %629 = vmatpush1.bf16.msra.mxu0 %v562
    %630 = vmatprep.subr.bf16.mxu0 0
    %631 = vmatpush1.bf16.msra.mxu0 %v559
    %632 = vmatprep.subr.bf16.mxu0 0
    %633 = vmatpush1.bf16.msra.mxu0 %v556
    %634 = vmatprep.subr.bf16.mxu0 0
    %635 = vmatpush1.bf16.msra.mxu0 %v553
    %636 = vmatprep.subr.bf16.mxu0 0
    %637 = vmatpush1.bf16.msra.mxu0 %v550
    %638 = vmatprep.subr.bf16.mxu0 0
    %639 = vmatpush1.bf16.msra.mxu0 %v547
    %640 = vmatprep.subr.bf16.mxu0 0
    %641 = vmatpush1.bf16.msra.mxu0 %v544
    %642 = vmatprep.subr.bf16.mxu0 0
    %643 = vmatpush1.bf16.msra.mxu0 %v541
    %644 = vmatprep.subr.bf16.mxu0 0
    %645 = vmatpush2.bf16.msra.mxu0 0
    %646 = vmatprep.subr.bf16.mxu0 0
    %647 = vmatpush2.bf16.msra.mxu0 0
    %648 = vmatprep.subr.bf16.mxu0 0
    %649 = vmatpush2.bf16.msra.mxu0 0
    %650 = vmatprep.subr.bf16.mxu0 0
    %651 = vmatpush2.bf16.msra.mxu0 0
    %652 = vmatprep.subr.bf16.mxu0 0
    %653 = vmatpush2.bf16.msra.mxu0 0
    %654 = vmatprep.subr.bf16.mxu0 0
    %655 = vmatpush2.bf16.msra.mxu0 0
    %656 = vmatprep.subr.bf16.mxu0 0
    %657 = vmatpush2.bf16.msra.mxu0 0
    %658 = vmatprep.subr.bf16.mxu0 0
    %659 = vmatpush2.bf16.msra.mxu0 0
    %660 = vmatprep.mubr.bf16.mxu0 0
    %661 = vmatmul.mubr.bf16.gmra.mxu0 0
    %v662 = vpop.f32.mrf.mxu0
    %v663 = vadd.f32 %v455, %v662
    %v664 = vpop.f32.mrf.mxu0
    %v665 = vpop.f32.mrf.mxu0
    %v666 = vpop.f32.mrf.mxu0
    %667 = vdwg.mxu0
    %v669 = vrot.slane %v622, 1
    %v670 = vrot.slane %v622, 2
    %v671 = vrot.slane %v622, 3
    %v672 = vrot.slane %v622, 4
    %v673 = vrot.slane %v622, 5
    %v674 = vrot.slane %v622, 6
    %v675 = vrot.slane %v622, 7
    %v684 = vadd.f32 %v307, %v622
    %v685 = vadd.f32 %v311, %v669
    %v686 = vadd.f32 %v317, %v670
    %v687 = vadd.f32 %v321, %v671
    %v688 = vadd.f32 %v327, %v672
    %v689 = vadd.f32 %v331, %v673
    %v690 = vadd.f32 %v337, %v674
    %v691 = vadd.f32 %v341, %v675
    %v692 = vxor.u32 %v684, 2147483648
    %v693 = vxor.u32 %v685, 2147483648
    %v694 = vxor.u32 %v686, 2147483648
    %v695 = vxor.u32 %v687, 2147483648
    %v696 = vxor.u32 %v688, 2147483648
    %v697 = vxor.u32 %v689, 2147483648
    %v698 = vxor.u32 %v690, 2147483648
    %v699 = vxor.u32 %v691, 2147483648
    %v700 = vmul.f32 %v692, 1.442695
    %v701 = vpow.pop %v700
    %v702 = vmul.f32 %v693, 1.442695
    %v703 = vpow.pop %v702
    %v704 = vmul.f32 %v694, 1.442695
    %v705 = vpow.pop %v704
    %v706 = vmul.f32 %v695, 1.442695
    %v707 = vpow.pop %v706
    %v708 = vmul.f32 %v696, 1.442695
    %v709 = vpow.pop %v708
    %v710 = vmul.f32 %v697, 1.442695
    %v711 = vpow.pop %v710
    %v712 = vmul.f32 %v698, 1.442695
    %v713 = vpow.pop %v712
    %v714 = vmul.f32 %v699, 1.442695
    %v715 = vpow.pop %v714
    %v716 = vadd.f32 %v701, 1.0
    %v717 = vadd.f32 %v703, 1.0
    %v718 = vadd.f32 %v705, 1.0
    %v719 = vadd.f32 %v707, 1.0
    %v720 = vadd.f32 %v709, 1.0
    %v721 = vadd.f32 %v711, 1.0
    %v722 = vadd.f32 %v713, 1.0
    %v723 = vadd.f32 %v715, 1.0
    %v724 = vrcp.pop %v716
    %v725 = vmul.f32 1.0, %v724
    %v726 = vrcp.pop %v717
    %v727 = vmul.f32 1.0, %v726
    %v728 = vrcp.pop %v718
    %v729 = vmul.f32 1.0, %v728
    %v730 = vrcp.pop %v719
    %v731 = vmul.f32 1.0, %v730
    %v732 = vrcp.pop %v720
    %v733 = vmul.f32 1.0, %v732
    %v734 = vrcp.pop %v721
    %v735 = vmul.f32 1.0, %v734
    %v736 = vrcp.pop %v722
    %v737 = vmul.f32 1.0, %v736
    %v738 = vrcp.pop %v723
    %v739 = vmul.f32 1.0, %v738
    %v741 = vrot.slane %v624, 1
    %v742 = vrot.slane %v624, 2
    %v743 = vrot.slane %v624, 3
    %v744 = vrot.slane %v624, 4
    %v745 = vrot.slane %v624, 5
    %v746 = vrot.slane %v624, 6
    %v747 = vrot.slane %v624, 7
    %v756 = vadd.f32 %v309, %v624
    %v757 = vadd.f32 %v313, %v741
    %v758 = vadd.f32 %v319, %v742
    %v759 = vadd.f32 %v323, %v743
    %v760 = vadd.f32 %v329, %v744
    %v761 = vadd.f32 %v333, %v745
    %v762 = vadd.f32 %v339, %v746
    %v763 = vadd.f32 %v343, %v747
    %v764 = vxor.u32 %v756, 2147483648
    %v765 = vxor.u32 %v757, 2147483648
    %v766 = vxor.u32 %v758, 2147483648
    %v767 = vxor.u32 %v759, 2147483648
    %v768 = vxor.u32 %v760, 2147483648
    %v769 = vxor.u32 %v761, 2147483648
    %v770 = vxor.u32 %v762, 2147483648
    %v771 = vxor.u32 %v763, 2147483648
    %v772 = vmul.f32 %v764, 1.442695
    %v773 = vpow.pop %v772
    %v774 = vmul.f32 %v765, 1.442695
    %v775 = vpow.pop %v774
    %v776 = vmul.f32 %v766, 1.442695
    %v777 = vpow.pop %v776
    %v778 = vmul.f32 %v767, 1.442695
    %v779 = vpow.pop %v778
    %v780 = vmul.f32 %v768, 1.442695
    %v781 = vpow.pop %v780
    %v782 = vmul.f32 %v769, 1.442695
    %v783 = vpow.pop %v782
    %v784 = vmul.f32 %v770, 1.442695
    %v785 = vpow.pop %v784
    %v786 = vmul.f32 %v771, 1.442695
    %v787 = vpow.pop %v786
    %v788 = vadd.f32 %v773, 1.0
    %v789 = vadd.f32 %v775, 1.0
    %v790 = vadd.f32 %v777, 1.0
    %v791 = vadd.f32 %v779, 1.0
    %v792 = vadd.f32 %v781, 1.0
    %v793 = vadd.f32 %v783, 1.0
    %v794 = vadd.f32 %v785, 1.0
    %v795 = vadd.f32 %v787, 1.0
    %v796 = vrcp.pop %v788
    %v797 = vmul.f32 1.0, %v796
    %v798 = vrcp.pop %v789
    %v799 = vmul.f32 1.0, %v798
    %v800 = vrcp.pop %v790
    %v801 = vmul.f32 1.0, %v800
    %v802 = vrcp.pop %v791
    %v803 = vmul.f32 1.0, %v802
    %v804 = vrcp.pop %v792
    %v805 = vmul.f32 1.0, %v804
    %v806 = vrcp.pop %v793
    %v807 = vmul.f32 1.0, %v806
    %v808 = vrcp.pop %v794
    %v809 = vmul.f32 1.0, %v808
    %v810 = vrcp.pop %v795
    %v811 = vmul.f32 1.0, %v810
    %v813 = vrot.slane %v663, 1
    %v814 = vrot.slane %v663, 2
    %v815 = vrot.slane %v663, 3
    %v816 = vrot.slane %v663, 4
    %v817 = vrot.slane %v663, 5
    %v818 = vrot.slane %v663, 6
    %v819 = vrot.slane %v663, 7
    %v828 = vmul.f32 %v725, %v663
    %v829 = vmul.f32 %v727, %v813
    %v830 = vmul.f32 %v729, %v814
    %v831 = vmul.f32 %v731, %v815
    %v832 = vmul.f32 %v733, %v816
    %v833 = vmul.f32 %v735, %v817
    %v834 = vmul.f32 %v737, %v818
    %v835 = vmul.f32 %v739, %v819
    %v836 = vadd.f32 %v380, %v828
    %v837 = vadd.f32 %v383, %v829
    %v838 = vadd.f32 %v388, %v830
    %v839 = vadd.f32 %v391, %v831
    %v840 = vadd.f32 %v396, %v832
    %v841 = vadd.f32 %v399, %v833
    %v842 = vadd.f32 %v404, %v834
    %v843 = vadd.f32 %v407, %v835
    %v844 = vtanh.pop %v836
    %v845 = vtanh.pop %v837
    %v846 = vtanh.pop %v838
    %v847 = vtanh.pop %v839
    %v848 = vtanh.pop %v840
    %v849 = vtanh.pop %v841
    %v850 = vtanh.pop %v842
    %v851 = vtanh.pop %v843
    %v852 = vsub.f32 1.0, %v797
    %v853 = vsub.f32 1.0, %v799
    %v854 = vsub.f32 1.0, %v801
    %v855 = vsub.f32 1.0, %v803
    %v856 = vsub.f32 1.0, %v805
    %v857 = vsub.f32 1.0, %v807
    %v858 = vsub.f32 1.0, %v809
    %v859 = vsub.f32 1.0, %v811
    %v860 = vmul.f32 %v852, %v844
    %v861 = vmul.f32 %v853, %v845
    %v862 = vmul.f32 %v854, %v846
    %v863 = vmul.f32 %v855, %v847
    %v864 = vmul.f32 %v856, %v848
    %v865 = vmul.f32 %v857, %v849
    %v866 = vmul.f32 %v858, %v850
    %v867 = vmul.f32 %v859, %v851
    %v868 = vmul.f32 %v797, 0.0
    %v869 = vmul.f32 %v799, 0.0
    %v870 = vmul.f32 %v801, 0.0
    %v871 = vmul.f32 %v803, 0.0
    %v872 = vmul.f32 %v805, 0.0
    %v873 = vmul.f32 %v807, 0.0
    %v874 = vmul.f32 %v809, 0.0
    %v875 = vmul.f32 %v811, 0.0
    %v876 = vadd.f32 %v860, %v868
    %v877 = vadd.f32 %v861, %v869
    %v878 = vadd.f32 %v862, %v870
    %v879 = vadd.f32 %v863, %v871
    %v880 = vadd.f32 %v864, %v872
    %v881 = vadd.f32 %v865, %v873
    %v882 = vadd.f32 %v866, %v874
    %v883 = vadd.f32 %v867, %v875
    %v892 = vrot.slane %v877, 7
    %vm893 = vcmask 1041409
    %v894 = vsel %vm893, %v892, %v876
    %v895 = vrot.slane %v878, 6
    %vm896 = vcmask 1042434
    %v897 = vsel %vm896, %v895, %v894
    %v898 = vrot.slane %v879, 5
    %vm899 = vcmask 1043459
    %v900 = vsel %vm899, %v898, %v897
    %v901 = vrot.slane %v880, 4
    %vm902 = vcmask 1044484
    %v903 = vsel %vm902, %v901, %v900
    %v904 = vrot.slane %v881, 3
    %vm905 = vcmask 1045509
    %v906 = vsel %vm905, %v904, %v903
    %v907 = vrot.slane %v882, 2
    %vm908 = vcmask 1046534
    %v909 = vsel %vm908, %v907, %v906
    %v910 = vrot.slane %v883, 1
    %vm911 = vcmask 1047559
    %v912 = vsel %vm911, %v910, %v909
    %914 = vst [vmem:[#allocation8] sm:$0xff] %v912
    %v915 = vpack.c.bf16 %v876, %v876
    %v916 = vpack.c.bf16 %v877, %v877
    %v917 = vpack.c.bf16 %v878, %v878
    %v918 = vpack.c.bf16 %v879, %v879
    %v919 = vpack.c.bf16 %v880, %v880
    %v920 = vpack.c.bf16 %v881, %v881
    %v921 = vpack.c.bf16 %v882, %v882
    %v922 = vpack.c.bf16 %v883, %v883
    %v923 = vld [vmem:[#allocation7] sm:$0xff]
    %v924 = vld [vmem:[#allocation7 + $0x8] sm:$0xf]
    %v925 = vld [vmem:[#allocation7 + $0xc] sm:$0xff]
    %v926 = vld [vmem:[#allocation7 + $0x14] sm:$0xf]
    %v927 = vld [vmem:[#allocation7 + $0x18] sm:$0xff]
    %v928 = vld [vmem:[#allocation7 + $0x20] sm:$0xf]
    %v929 = vld [vmem:[#allocation7 + $0x24] sm:$0xff]
    %v930 = vld [vmem:[#allocation7 + $0x2c] sm:$0xf]
    %v931 = vld [vmem:[#allocation7 + $0x30] sm:$0xff]
    %v932 = vld [vmem:[#allocation7 + $0x38] sm:$0xf]
    %v933 = vld [vmem:[#allocation7 + $0x3c] sm:$0xff]
    %v934 = vld [vmem:[#allocation7 + $0x44] sm:$0xf]
    %v935 = vld [vmem:[#allocation7 + $0x48] sm:$0xff]
    %v936 = vld [vmem:[#allocation7 + $0x50] sm:$0xf]
    %v937 = vld [vmem:[#allocation7 + $0x54] sm:$0xff]
    %v938 = vld [vmem:[#allocation7 + $0x5c] sm:$0xf]
    %v939 = vld [vmem:[#allocation7 + $0x60] sm:$0xff]
    %v940 = vld [vmem:[#allocation7 + $0x68] sm:$0xf]
    %v941 = vld [vmem:[#allocation7 + $0x6c] sm:$0xff]
    %v942 = vld [vmem:[#allocation7 + $0x74] sm:$0xf]
    %v943 = vld [vmem:[#allocation7 + $0x78] sm:$0xff]
    %v944 = vld [vmem:[#allocation7 + $0x80] sm:$0xf]
    %v945 = vld [vmem:[#allocation7 + $0x84] sm:$0xff]
    %v946 = vld [vmem:[#allocation7 + $0x8c] sm:$0xf]
    %v947 = vld [vmem:[#allocation7 + $0x90] sm:$0xff]
    %v948 = vld [vmem:[#allocation7 + $0x98] sm:$0xf]
    %v949 = vld [vmem:[#allocation7 + $0x9c] sm:$0xff]
    %v950 = vld [vmem:[#allocation7 + $0xa4] sm:$0xf]
    %v951 = vld [vmem:[#allocation7 + $0xa8] sm:$0xff]
    %v952 = vld [vmem:[#allocation7 + $0xb0] sm:$0xf]
    %v953 = vld [vmem:[#allocation7 + $0xb4] sm:$0xff]
    %v954 = vld [vmem:[#allocation7 + $0xbc] sm:$0xf]
    %v955 = vld [vmem:[%s4] sm:$0x7]
    %v957 = vlaneseq
    %v958 = vshrl.u32 %v957, 7
    %v959 = vsub.s32 0, %v958
    %v960 = vrot.slane %v955, %v959
    %v961 = vlaneseq
    %v962 = vshrl.u32 %v961, 7
    %v963 = vsub.s32 1, %v962
    %v964 = vrot.slane %v955, %v963
    %v965 = vlaneseq
    %v966 = vshrl.u32 %v965, 7
    %v967 = vsub.s32 2, %v966
    %v968 = vrot.slane %v955, %v967
    %v980 = vunpack.c.l.b16 %v915
    %v981 = vunpack.c.l.b16 %v916
    %v982 = vunpack.c.l.b16 %v917
    %v983 = vunpack.c.l.b16 %v918
    %v984 = vunpack.c.l.b16 %v919
    %v985 = vunpack.c.l.b16 %v920
    %v986 = vunpack.c.l.b16 %v921
    %v987 = vunpack.c.l.b16 %v922
    %v988 = vrot.slane %v981, 7
    %v989 = vsel %vm893, %v988, %v980
    %v990 = vrot.slane %v982, 6
    %v991 = vsel %vm896, %v990, %v989
    %v992 = vrot.slane %v983, 5
    %v993 = vsel %vm899, %v992, %v991
    %v994 = vrot.slane %v984, 4
    %v995 = vsel %vm902, %v994, %v993
    %v996 = vrot.slane %v985, 3
    %v997 = vsel %vm905, %v996, %v995
    %v998 = vrot.slane %v986, 2
    %v999 = vsel %vm908, %v998, %v997
    %v1000 = vrot.slane %v987, 1
    %v1001 = vsel %vm911, %v1000, %v999
    %v1002 = vpack.c.b16 %v1001, %v1001
    %v1036 = vunpack.c.l.b16 %v923
    %v1037 = vunpack.c.h.b16 %v923
    %v1038 = vunpack.c.l.b16 %v924
    %v1039 = vunpack.c.l.b16 %v925
    %v1040 = vunpack.c.h.b16 %v925
    %v1041 = vunpack.c.l.b16 %v926
    %v1042 = vunpack.c.l.b16 %v927
    %v1043 = vunpack.c.h.b16 %v927
    %v1044 = vunpack.c.l.b16 %v928
    %v1045 = vunpack.c.l.b16 %v929
    %v1046 = vunpack.c.h.b16 %v929
    %v1047 = vunpack.c.l.b16 %v930
    %v1048 = vunpack.c.l.b16 %v931
    %v1049 = vunpack.c.h.b16 %v931
    %v1050 = vunpack.c.l.b16 %v932
    %v1051 = vunpack.c.l.b16 %v933
    %v1052 = vunpack.c.h.b16 %v933
    %v1053 = vunpack.c.l.b16 %v934
    %v1054 = vunpack.c.l.b16 %v935
    %v1055 = vunpack.c.h.b16 %v935
    %v1056 = vunpack.c.l.b16 %v936
    %v1057 = vunpack.c.l.b16 %v937
    %v1058 = vunpack.c.h.b16 %v937
    %v1059 = vunpack.c.l.b16 %v938
    %v1060 = vunpack.c.l.b16 %v939
    %v1061 = vunpack.c.h.b16 %v939
    %v1062 = vunpack.c.l.b16 %v940
    %v1063 = vunpack.c.l.b16 %v941
    %v1064 = vunpack.c.h.b16 %v941
    %v1065 = vunpack.c.l.b16 %v942
    %v1066 = vunpack.c.l.b16 %v943
    %v1067 = vunpack.c.h.b16 %v943
    %v1068 = vunpack.c.l.b16 %v944
    %v1069 = vunpack.c.l.b16 %v945
    %v1070 = vunpack.c.h.b16 %v945
    %v1071 = vunpack.c.l.b16 %v946
    %v1072 = vunpack.c.l.b16 %v947
    %v1073 = vunpack.c.h.b16 %v947
    %v1074 = vunpack.c.l.b16 %v948
    %v1075 = vunpack.c.l.b16 %v949
    %v1076 = vunpack.c.h.b16 %v949
    %v1077 = vunpack.c.l.b16 %v950
    %v1078 = vunpack.c.l.b16 %v951
    %v1079 = vunpack.c.h.b16 %v951
    %v1080 = vunpack.c.l.b16 %v952
    %v1081 = vunpack.c.l.b16 %v953
    %v1082 = vunpack.c.h.b16 %v953
    %v1083 = vunpack.c.l.b16 %v954
    %v1084 = vpack.c.b16 %v1039, %v1036
    %v1085 = vpack.c.b16 %v1040, %v1037
    %v1086 = vpack.c.b16 %v1041, %v1038
    %v1087 = vpack.c.b16 %v1045, %v1042
    %v1088 = vpack.c.b16 %v1046, %v1043
    %v1089 = vpack.c.b16 %v1047, %v1044
    %v1090 = vpack.c.b16 %v1051, %v1048
    %v1091 = vpack.c.b16 %v1052, %v1049
    %v1092 = vpack.c.b16 %v1053, %v1050
    %v1093 = vpack.c.b16 %v1057, %v1054
    %v1094 = vpack.c.b16 %v1058, %v1055
    %v1095 = vpack.c.b16 %v1059, %v1056
    %v1096 = vpack.c.b16 %v1063, %v1060
    %v1097 = vpack.c.b16 %v1064, %v1061
    %v1098 = vpack.c.b16 %v1065, %v1062
    %v1099 = vpack.c.b16 %v1069, %v1066
    %v1100 = vpack.c.b16 %v1070, %v1067
    %v1101 = vpack.c.b16 %v1071, %v1068
    %v1102 = vpack.c.b16 %v1075, %v1072
    %v1103 = vpack.c.b16 %v1076, %v1073
    %v1104 = vpack.c.b16 %v1077, %v1074
    %v1105 = vpack.c.b16 %v1081, %v1078
    %v1106 = vpack.c.b16 %v1082, %v1079
    %v1107 = vpack.c.b16 %v1083, %v1080
    %1132 = vmatprep.subr.bf16.mxu0 %v1106
    %1133 = vmatpush1.bf16.msra.mxu0 %v1105
    %1134 = vmatprep.subr.bf16.mxu0 %v1103
    %1135 = vmatpush1.bf16.msra.mxu0 %v1102
    %1136 = vmatprep.subr.bf16.mxu0 %v1100
    %1137 = vmatpush1.bf16.msra.mxu0 %v1099
    %1138 = vmatprep.subr.bf16.mxu0 %v1097
    %1139 = vmatpush1.bf16.msra.mxu0 %v1096
    %1140 = vmatprep.subr.bf16.mxu0 %v1094
    %1141 = vmatpush1.bf16.msra.mxu0 %v1093
    %1142 = vmatprep.subr.bf16.mxu0 %v1091
    %1143 = vmatpush1.bf16.msra.mxu0 %v1090
    %1144 = vmatprep.subr.bf16.mxu0 %v1088
    %1145 = vmatpush1.bf16.msra.mxu0 %v1087
    %1146 = vmatprep.subr.bf16.mxu0 %v1085
    %1147 = vmatpush1.bf16.msra.mxu0 %v1084
    %1148 = vmatprep.subr.bf16.mxu0 0
    %1149 = vmatpush2.bf16.msra.mxu0 0
    %1150 = vmatprep.subr.bf16.mxu0 0
    %1151 = vmatpush2.bf16.msra.mxu0 0
    %1152 = vmatprep.subr.bf16.mxu0 0
    %1153 = vmatpush2.bf16.msra.mxu0 0
    %1154 = vmatprep.subr.bf16.mxu0 0
    %1155 = vmatpush2.bf16.msra.mxu0 0
    %1156 = vmatprep.subr.bf16.mxu0 0
    %1157 = vmatpush2.bf16.msra.mxu0 0
    %1158 = vmatprep.subr.bf16.mxu0 0
    %1159 = vmatpush2.bf16.msra.mxu0 0
    %1160 = vmatprep.subr.bf16.mxu0 0
    %1161 = vmatpush2.bf16.msra.mxu0 0
    %1162 = vmatprep.subr.bf16.mxu0 0
    %1163 = vmatpush2.bf16.msra.mxu0 0
    %1164 = vmatprep.mubr.bf16.mxu0 0
    %1165 = vmatmul.mubr.bf16.gmra.mxu0 %v1002
    %v1166 = vpop.f32.mrf.mxu0
    %v1167 = vadd.f32 %v960, %v1166
    %v1168 = vpop.f32.mrf.mxu0
    %v1169 = vadd.f32 %v964, %v1168
    %v1170 = vpop.f32.mrf.mxu0
    %v1171 = vpop.f32.mrf.mxu0
    %1172 = vdwg.mxu0
    %1173 = vmatprep.subr.bf16.mxu0 0
    %1174 = vmatpush1.bf16.msra.mxu0 %v1107
    %1175 = vmatprep.subr.bf16.mxu0 0
    %1176 = vmatpush1.bf16.msra.mxu0 %v1104
    %1177 = vmatprep.subr.bf16.mxu0 0
    %1178 = vmatpush1.bf16.msra.mxu0 %v1101
    %1179 = vmatprep.subr.bf16.mxu0 0
    %1180 = vmatpush1.bf16.msra.mxu0 %v1098
    %1181 = vmatprep.subr.bf16.mxu0 0
    %1182 = vmatpush1.bf16.msra.mxu0 %v1095
    %1183 = vmatprep.subr.bf16.mxu0 0
    %1184 = vmatpush1.bf16.msra.mxu0 %v1092
    %1185 = vmatprep.subr.bf16.mxu0 0
    %1186 = vmatpush1.bf16.msra.mxu0 %v1089
    %1187 = vmatprep.subr.bf16.mxu0 0
    %1188 = vmatpush1.bf16.msra.mxu0 %v1086
    %1189 = vmatprep.subr.bf16.mxu0 0
    %1190 = vmatpush2.bf16.msra.mxu0 0
    %1191 = vmatprep.subr.bf16.mxu0 0
    %1192 = vmatpush2.bf16.msra.mxu0 0
    %1193 = vmatprep.subr.bf16.mxu0 0
    %1194 = vmatpush2.bf16.msra.mxu0 0
    %1195 = vmatprep.subr.bf16.mxu0 0
    %1196 = vmatpush2.bf16.msra.mxu0 0
    %1197 = vmatprep.subr.bf16.mxu0 0
    %1198 = vmatpush2.bf16.msra.mxu0 0
    %1199 = vmatprep.subr.bf16.mxu0 0
    %1200 = vmatpush2.bf16.msra.mxu0 0
    %1201 = vmatprep.subr.bf16.mxu0 0
    %1202 = vmatpush2.bf16.msra.mxu0 0
    %1203 = vmatprep.subr.bf16.mxu0 0
    %1204 = vmatpush2.bf16.msra.mxu0 0
    %1205 = vmatprep.mubr.bf16.mxu0 0
    %1206 = vmatmul.mubr.bf16.gmra.mxu0 %v1002
    %v1207 = vpop.f32.mrf.mxu0
    %v1208 = vadd.f32 %v968, %v1207
    %v1209 = vpop.f32.mrf.mxu0
    %v1210 = vpop.f32.mrf.mxu0
    %v1211 = vpop.f32.mrf.mxu0
    %1212 = vdwg.mxu0
    %v1214 = vrot.slane %v1167, 7
    %v1215 = vrot.slane %v1167, 1
    %v1216 = vrot.slane %v1167, 2
    %v1217 = vrot.slane %v1167, 3
    %v1218 = vrot.slane %v1167, 4
    %v1219 = vrot.slane %v1167, 5
    %v1220 = vrot.slane %v1167, 6
    %v1229 = vadd.f32 %v307, %v1214
    %v1230 = vadd.f32 %v311, %v1167
    %v1231 = vadd.f32 %v317, %v1215
    %v1232 = vadd.f32 %v321, %v1216
    %v1233 = vadd.f32 %v327, %v1217
    %v1234 = vadd.f32 %v331, %v1218
    %v1235 = vadd.f32 %v337, %v1219
    %v1236 = vadd.f32 %v341, %v1220
    %v1237 = vxor.u32 %v1229, 2147483648
    %v1238 = vxor.u32 %v1230, 2147483648
    %v1239 = vxor.u32 %v1231, 2147483648
    %v1240 = vxor.u32 %v1232, 2147483648
    %v1241 = vxor.u32 %v1233, 2147483648
    %v1242 = vxor.u32 %v1234, 2147483648
    %v1243 = vxor.u32 %v1235, 2147483648
    %v1244 = vxor.u32 %v1236, 2147483648
    %v1245 = vmul.f32 %v1237, 1.442695
    %v1246 = vpow.pop %v1245
    %v1247 = vmul.f32 %v1238, 1.442695
    %v1248 = vpow.pop %v1247
    %v1249 = vmul.f32 %v1239, 1.442695
    %v1250 = vpow.pop %v1249
    %v1251 = vmul.f32 %v1240, 1.442695
    %v1252 = vpow.pop %v1251
    %v1253 = vmul.f32 %v1241, 1.442695
    %v1254 = vpow.pop %v1253
    %v1255 = vmul.f32 %v1242, 1.442695
    %v1256 = vpow.pop %v1255
    %v1257 = vmul.f32 %v1243, 1.442695
    %v1258 = vpow.pop %v1257
    %v1259 = vmul.f32 %v1244, 1.442695
    %v1260 = vpow.pop %v1259
    %v1261 = vadd.f32 %v1246, 1.0
    %v1262 = vadd.f32 %v1248, 1.0
    %v1263 = vadd.f32 %v1250, 1.0
    %v1264 = vadd.f32 %v1252, 1.0
    %v1265 = vadd.f32 %v1254, 1.0
    %v1266 = vadd.f32 %v1256, 1.0
    %v1267 = vadd.f32 %v1258, 1.0
    %v1268 = vadd.f32 %v1260, 1.0
    %v1269 = vrcp.pop %v1261
    %v1270 = vmul.f32 1.0, %v1269
    %v1271 = vrcp.pop %v1262
    %v1272 = vmul.f32 1.0, %v1271
    %v1273 = vrcp.pop %v1263
    %v1274 = vmul.f32 1.0, %v1273
    %v1275 = vrcp.pop %v1264
    %v1276 = vmul.f32 1.0, %v1275
    %v1277 = vrcp.pop %v1265
    %v1278 = vmul.f32 1.0, %v1277
    %v1279 = vrcp.pop %v1266
    %v1280 = vmul.f32 1.0, %v1279
    %v1281 = vrcp.pop %v1267
    %v1282 = vmul.f32 1.0, %v1281
    %v1283 = vrcp.pop %v1268
    %v1284 = vmul.f32 1.0, %v1283
    %v1286 = vrot.slane %v1169, 7
    %v1287 = vrot.slane %v1169, 1
    %v1288 = vrot.slane %v1169, 2
    %v1289 = vrot.slane %v1169, 3
    %v1290 = vrot.slane %v1169, 4
    %v1291 = vrot.slane %v1169, 5
    %v1292 = vrot.slane %v1169, 6
    %v1301 = vadd.f32 %v309, %v1286
    %v1302 = vadd.f32 %v313, %v1169
    %v1303 = vadd.f32 %v319, %v1287
    %v1304 = vadd.f32 %v323, %v1288
    %v1305 = vadd.f32 %v329, %v1289
    %v1306 = vadd.f32 %v333, %v1290
    %v1307 = vadd.f32 %v339, %v1291
    %v1308 = vadd.f32 %v343, %v1292
    %v1309 = vxor.u32 %v1301, 2147483648
    %v1310 = vxor.u32 %v1302, 2147483648
    %v1311 = vxor.u32 %v1303, 2147483648
    %v1312 = vxor.u32 %v1304, 2147483648
    %v1313 = vxor.u32 %v1305, 2147483648
    %v1314 = vxor.u32 %v1306, 2147483648
    %v1315 = vxor.u32 %v1307, 2147483648
    %v1316 = vxor.u32 %v1308, 2147483648
    %v1317 = vmul.f32 %v1309, 1.442695
    %v1318 = vpow.pop %v1317
    %v1319 = vmul.f32 %v1310, 1.442695
    %v1320 = vpow.pop %v1319
    %v1321 = vmul.f32 %v1311, 1.442695
    %v1322 = vpow.pop %v1321
    %v1323 = vmul.f32 %v1312, 1.442695
    %v1324 = vpow.pop %v1323
    %v1325 = vmul.f32 %v1313, 1.442695
    %v1326 = vpow.pop %v1325
    %v1327 = vmul.f32 %v1314, 1.442695
    %v1328 = vpow.pop %v1327
    %v1329 = vmul.f32 %v1315, 1.442695
    %v1330 = vpow.pop %v1329
    %v1331 = vmul.f32 %v1316, 1.442695
    %v1332 = vpow.pop %v1331
    %v1333 = vadd.f32 %v1318, 1.0
    %v1334 = vadd.f32 %v1320, 1.0
    %v1335 = vadd.f32 %v1322, 1.0
    %v1336 = vadd.f32 %v1324, 1.0
    %v1337 = vadd.f32 %v1326, 1.0
    %v1338 = vadd.f32 %v1328, 1.0
    %v1339 = vadd.f32 %v1330, 1.0
    %v1340 = vadd.f32 %v1332, 1.0
    %v1341 = vrcp.pop %v1333
    %v1342 = vmul.f32 1.0, %v1341
    %v1343 = vrcp.pop %v1334
    %v1344 = vmul.f32 1.0, %v1343
    %v1345 = vrcp.pop %v1335
    %v1346 = vmul.f32 1.0, %v1345
    %v1347 = vrcp.pop %v1336
    %v1348 = vmul.f32 1.0, %v1347
    %v1349 = vrcp.pop %v1337
    %v1350 = vmul.f32 1.0, %v1349
    %v1351 = vrcp.pop %v1338
    %v1352 = vmul.f32 1.0, %v1351
    %v1353 = vrcp.pop %v1339
    %v1354 = vmul.f32 1.0, %v1353
    %v1355 = vrcp.pop %v1340
    %v1356 = vmul.f32 1.0, %v1355
    %v1358 = vrot.slane %v1208, 7
    %v1359 = vrot.slane %v1208, 1
    %v1360 = vrot.slane %v1208, 2
    %v1361 = vrot.slane %v1208, 3
    %v1362 = vrot.slane %v1208, 4
    %v1363 = vrot.slane %v1208, 5
    %v1364 = vrot.slane %v1208, 6
    %v1373 = vmul.f32 %v1270, %v1358
    %v1374 = vmul.f32 %v1272, %v1208
    %v1375 = vmul.f32 %v1274, %v1359
    %v1376 = vmul.f32 %v1276, %v1360
    %v1377 = vmul.f32 %v1278, %v1361
    %v1378 = vmul.f32 %v1280, %v1362
    %v1379 = vmul.f32 %v1282, %v1363
    %v1380 = vmul.f32 %v1284, %v1364
    %v1381 = vadd.f32 %v380, %v1373
    %v1382 = vadd.f32 %v383, %v1374
    %v1383 = vadd.f32 %v388, %v1375
    %v1384 = vadd.f32 %v391, %v1376
    %v1385 = vadd.f32 %v396, %v1377
    %v1386 = vadd.f32 %v399, %v1378
    %v1387 = vadd.f32 %v404, %v1379
    %v1388 = vadd.f32 %v407, %v1380
    %v1389 = vtanh.pop %v1381
    %v1390 = vtanh.pop %v1382
    %v1391 = vtanh.pop %v1383
    %v1392 = vtanh.pop %v1384
    %v1393 = vtanh.pop %v1385
    %v1394 = vtanh.pop %v1386
    %v1395 = vtanh.pop %v1387
    %v1396 = vtanh.pop %v1388
    %v1397 = vsub.f32 1.0, %v1342
    %v1398 = vsub.f32 1.0, %v1344
    %v1399 = vsub.f32 1.0, %v1346
    %v1400 = vsub.f32 1.0, %v1348
    %v1401 = vsub.f32 1.0, %v1350
    %v1402 = vsub.f32 1.0, %v1352
    %v1403 = vsub.f32 1.0, %v1354
    %v1404 = vsub.f32 1.0, %v1356
    %v1405 = vmul.f32 %v1397, %v1389
    %v1406 = vmul.f32 %v1398, %v1390
    %v1407 = vmul.f32 %v1399, %v1391
    %v1408 = vmul.f32 %v1400, %v1392
    %v1409 = vmul.f32 %v1401, %v1393
    %v1410 = vmul.f32 %v1402, %v1394
    %v1411 = vmul.f32 %v1403, %v1395
    %v1412 = vmul.f32 %v1404, %v1396
    %v1413 = vrot.slane %v876, 7
    %v1414 = vrot.slane %v878, 7
    %v1415 = vrot.slane %v879, 7
    %v1416 = vrot.slane %v880, 7
    %v1417 = vrot.slane %v881, 7
    %v1418 = vrot.slane %v882, 7
    %v1419 = vrot.slane %v883, 7
    %v1428 = vmul.f32 %v1342, %v1413
    %v1429 = vmul.f32 %v1344, %v892
    %v1430 = vmul.f32 %v1346, %v1414
    %v1431 = vmul.f32 %v1348, %v1415
    %v1432 = vmul.f32 %v1350, %v1416
    %v1433 = vmul.f32 %v1352, %v1417
    %v1434 = vmul.f32 %v1354, %v1418
    %v1435 = vmul.f32 %v1356, %v1419
    %v1436 = vadd.f32 %v1405, %v1428
    %v1437 = vadd.f32 %v1406, %v1429
    %v1438 = vadd.f32 %v1407, %v1430
    %v1439 = vadd.f32 %v1408, %v1431
    %v1440 = vadd.f32 %v1409, %v1432
    %v1441 = vadd.f32 %v1410, %v1433
    %v1442 = vadd.f32 %v1411, %v1434
    %v1443 = vadd.f32 %v1412, %v1435
    %v1452 = vrot.slane %v1437, 7
    %v1453 = vsel %vm896, %v1452, %v1436
    %v1454 = vrot.slane %v1438, 6
    %v1455 = vsel %vm899, %v1454, %v1453
    %v1456 = vrot.slane %v1439, 5
    %v1457 = vsel %vm902, %v1456, %v1455
    %v1458 = vrot.slane %v1440, 4
    %v1459 = vsel %vm905, %v1458, %v1457
    %v1460 = vrot.slane %v1441, 3
    %v1461 = vsel %vm908, %v1460, %v1459
    %v1462 = vrot.slane %v1442, 2
    %v1463 = vsel %vm911, %v1462, %v1461
    %v1464 = vrot.slane %v1443, 1
    %s1467 = scalar_lea.vmem [#allocation8], 8
    %1468 = vst [vmem:[%s1467 - $0x1] sm:$0xfe] %v1463
    %1469 = vst [vmem:[%s1467 + $0x7] sm:$0x1] %v1464
    %v1470 = vpack.c.bf16 %v1436, %v1436
    %v1471 = vpack.c.bf16 %v1437, %v1437
    %v1472 = vpack.c.bf16 %v1438, %v1438
    %v1473 = vpack.c.bf16 %v1439, %v1439
    %v1474 = vpack.c.bf16 %v1440, %v1440
    %v1475 = vpack.c.bf16 %v1441, %v1441
    %v1476 = vpack.c.bf16 %v1442, %v1442
    %v1477 = vpack.c.bf16 %v1443, %v1443
    %v1478 = vld [vmem:[#allocation7] sm:$0xff]
    %v1479 = vld [vmem:[#allocation7 + $0x8] sm:$0xf]
    %v1480 = vld [vmem:[#allocation7 + $0xc] sm:$0xff]
    %v1481 = vld [vmem:[#allocation7 + $0x14] sm:$0xf]
    %v1482 = vld [vmem:[#allocation7 + $0x18] sm:$0xff]
    %v1483 = vld [vmem:[#allocation7 + $0x20] sm:$0xf]
    %v1484 = vld [vmem:[#allocation7 + $0x24] sm:$0xff]
    %v1485 = vld [vmem:[#allocation7 + $0x2c] sm:$0xf]
    %v1486 = vld [vmem:[#allocation7 + $0x30] sm:$0xff]
    %v1487 = vld [vmem:[#allocation7 + $0x38] sm:$0xf]
    %v1488 = vld [vmem:[#allocation7 + $0x3c] sm:$0xff]
    %v1489 = vld [vmem:[#allocation7 + $0x44] sm:$0xf]
    %v1490 = vld [vmem:[#allocation7 + $0x48] sm:$0xff]
    %v1491 = vld [vmem:[#allocation7 + $0x50] sm:$0xf]
    %v1492 = vld [vmem:[#allocation7 + $0x54] sm:$0xff]
    %v1493 = vld [vmem:[#allocation7 + $0x5c] sm:$0xf]
    %v1494 = vld [vmem:[#allocation7 + $0x60] sm:$0xff]
    %v1495 = vld [vmem:[#allocation7 + $0x68] sm:$0xf]
    %v1496 = vld [vmem:[#allocation7 + $0x6c] sm:$0xff]
    %v1497 = vld [vmem:[#allocation7 + $0x74] sm:$0xf]
    %v1498 = vld [vmem:[#allocation7 + $0x78] sm:$0xff]
    %v1499 = vld [vmem:[#allocation7 + $0x80] sm:$0xf]
    %v1500 = vld [vmem:[#allocation7 + $0x84] sm:$0xff]
    %v1501 = vld [vmem:[#allocation7 + $0x8c] sm:$0xf]
    %v1502 = vld [vmem:[#allocation7 + $0x90] sm:$0xff]
    %v1503 = vld [vmem:[#allocation7 + $0x98] sm:$0xf]
    %v1504 = vld [vmem:[#allocation7 + $0x9c] sm:$0xff]
    %v1505 = vld [vmem:[#allocation7 + $0xa4] sm:$0xf]
    %v1506 = vld [vmem:[#allocation7 + $0xa8] sm:$0xff]
    %v1507 = vld [vmem:[#allocation7 + $0xb0] sm:$0xf]
    %v1508 = vld [vmem:[#allocation7 + $0xb4] sm:$0xff]
    %v1509 = vld [vmem:[#allocation7 + $0xbc] sm:$0xf]
    %v1510 = vld [vmem:[%s4] sm:$0x7]
    %v1512 = vlaneseq
    %v1513 = vshrl.u32 %v1512, 7
    %v1514 = vsub.s32 0, %v1513
    %v1515 = vrot.slane %v1510, %v1514
    %v1516 = vlaneseq
    %v1517 = vshrl.u32 %v1516, 7
    %v1518 = vsub.s32 1, %v1517
    %v1519 = vrot.slane %v1510, %v1518
    %v1520 = vlaneseq
    %v1521 = vshrl.u32 %v1520, 7
    %v1522 = vsub.s32 2, %v1521
    %v1523 = vrot.slane %v1510, %v1522
    %v1535 = vunpack.c.l.b16 %v1470
    %v1536 = vunpack.c.l.b16 %v1471
    %v1537 = vunpack.c.l.b16 %v1472
    %v1538 = vunpack.c.l.b16 %v1473
    %v1539 = vunpack.c.l.b16 %v1474
    %v1540 = vunpack.c.l.b16 %v1475
    %v1541 = vunpack.c.l.b16 %v1476
    %v1542 = vunpack.c.l.b16 %v1477
    %v1543 = vrot.slane %v1535, 1
    %v1544 = vsel %vm893, %v1536, %v1543
    %v1545 = vrot.slane %v1537, 7
    %v1546 = vsel %vm896, %v1545, %v1544
    %v1547 = vrot.slane %v1538, 6
    %v1548 = vsel %vm899, %v1547, %v1546
    %v1549 = vrot.slane %v1539, 5
    %v1550 = vsel %vm902, %v1549, %v1548
    %v1551 = vrot.slane %v1540, 4
    %v1552 = vsel %vm905, %v1551, %v1550
    %v1553 = vrot.slane %v1541, 3
    %v1554 = vsel %vm908, %v1553, %v1552
    %v1555 = vrot.slane %v1542, 2
    %v1556 = vsel %vm911, %v1555, %v1554
    %v1557 = vpack.c.b16 %v1556, %v1556
    %v1591 = vunpack.c.l.b16 %v1478
    %v1592 = vunpack.c.h.b16 %v1478
    %v1593 = vunpack.c.l.b16 %v1479
    %v1594 = vunpack.c.l.b16 %v1480
    %v1595 = vunpack.c.h.b16 %v1480
    %v1596 = vunpack.c.l.b16 %v1481
    %v1597 = vunpack.c.l.b16 %v1482
    %v1598 = vunpack.c.h.b16 %v1482
    %v1599 = vunpack.c.l.b16 %v1483
    %v1600 = vunpack.c.l.b16 %v1484
    %v1601 = vunpack.c.h.b16 %v1484
    %v1602 = vunpack.c.l.b16 %v1485
    %v1603 = vunpack.c.l.b16 %v1486
    %v1604 = vunpack.c.h.b16 %v1486
    %v1605 = vunpack.c.l.b16 %v1487
    %v1606 = vunpack.c.l.b16 %v1488
    %v1607 = vunpack.c.h.b16 %v1488
    %v1608 = vunpack.c.l.b16 %v1489
    %v1609 = vunpack.c.l.b16 %v1490
    %v1610 = vunpack.c.h.b16 %v1490
    %v1611 = vunpack.c.l.b16 %v1491
    %v1612 = vunpack.c.l.b16 %v1492
    %v1613 = vunpack.c.h.b16 %v1492
    %v1614 = vunpack.c.l.b16 %v1493
    %v1615 = vunpack.c.l.b16 %v1494
    %v1616 = vunpack.c.h.b16 %v1494
    %v1617 = vunpack.c.l.b16 %v1495
    %v1618 = vunpack.c.l.b16 %v1496
    %v1619 = vunpack.c.h.b16 %v1496
    %v1620 = vunpack.c.l.b16 %v1497
    %v1621 = vunpack.c.l.b16 %v1498
    %v1622 = vunpack.c.h.b16 %v1498
    %v1623 = vunpack.c.l.b16 %v1499
    %v1624 = vunpack.c.l.b16 %v1500
    %v1625 = vunpack.c.h.b16 %v1500
    %v1626 = vunpack.c.l.b16 %v1501
    %v1627 = vunpack.c.l.b16 %v1502
    %v1628 = vunpack.c.h.b16 %v1502
    %v1629 = vunpack.c.l.b16 %v1503
    %v1630 = vunpack.c.l.b16 %v1504
    %v1631 = vunpack.c.h.b16 %v1504
    %v1632 = vunpack.c.l.b16 %v1505
    %v1633 = vunpack.c.l.b16 %v1506
    %v1634 = vunpack.c.h.b16 %v1506
    %v1635 = vunpack.c.l.b16 %v1507
    %v1636 = vunpack.c.l.b16 %v1508
    %v1637 = vunpack.c.h.b16 %v1508
    %v1638 = vunpack.c.l.b16 %v1509
    %v1639 = vpack.c.b16 %v1594, %v1591
    %v1640 = vpack.c.b16 %v1595, %v1592
    %v1641 = vpack.c.b16 %v1596, %v1593
    %v1642 = vpack.c.b16 %v1600, %v1597
    %v1643 = vpack.c.b16 %v1601, %v1598
    %v1644 = vpack.c.b16 %v1602, %v1599
    %v1645 = vpack.c.b16 %v1606, %v1603
    %v1646 = vpack.c.b16 %v1607, %v1604
    %v1647 = vpack.c.b16 %v1608, %v1605
    %v1648 = vpack.c.b16 %v1612, %v1609
    %v1649 = vpack.c.b16 %v1613, %v1610
    %v1650 = vpack.c.b16 %v1614, %v1611
    %v1651 = vpack.c.b16 %v1618, %v1615
    %v1652 = vpack.c.b16 %v1619, %v1616
    %v1653 = vpack.c.b16 %v1620, %v1617
    %v1654 = vpack.c.b16 %v1624, %v1621
    %v1655 = vpack.c.b16 %v1625, %v1622
    %v1656 = vpack.c.b16 %v1626, %v1623
    %v1657 = vpack.c.b16 %v1630, %v1627
    %v1658 = vpack.c.b16 %v1631, %v1628
    %v1659 = vpack.c.b16 %v1632, %v1629
    %v1660 = vpack.c.b16 %v1636, %v1633
    %v1661 = vpack.c.b16 %v1637, %v1634
    %v1662 = vpack.c.b16 %v1638, %v1635
    %1687 = vmatprep.subr.bf16.mxu0 %v1661
    %1688 = vmatpush1.bf16.msra.mxu0 %v1660
    %1689 = vmatprep.subr.bf16.mxu0 %v1658
    %1690 = vmatpush1.bf16.msra.mxu0 %v1657
    %1691 = vmatprep.subr.bf16.mxu0 %v1655
    %1692 = vmatpush1.bf16.msra.mxu0 %v1654
    %1693 = vmatprep.subr.bf16.mxu0 %v1652
    %1694 = vmatpush1.bf16.msra.mxu0 %v1651
    %1695 = vmatprep.subr.bf16.mxu0 %v1649
    %1696 = vmatpush1.bf16.msra.mxu0 %v1648
    %1697 = vmatprep.subr.bf16.mxu0 %v1646
    %1698 = vmatpush1.bf16.msra.mxu0 %v1645
    %1699 = vmatprep.subr.bf16.mxu0 %v1643
    %1700 = vmatpush1.bf16.msra.mxu0 %v1642
    %1701 = vmatprep.subr.bf16.mxu0 %v1640
    %1702 = vmatpush1.bf16.msra.mxu0 %v1639
    %1703 = vmatprep.subr.bf16.mxu0 0
    %1704 = vmatpush2.bf16.msra.mxu0 0
    %1705 = vmatprep.subr.bf16.mxu0 0
    %1706 = vmatpush2.bf16.msra.mxu0 0
    %1707 = vmatprep.subr.bf16.mxu0 0
    %1708 = vmatpush2.bf16.msra.mxu0 0
    %1709 = vmatprep.subr.bf16.mxu0 0
    %1710 = vmatpush2.bf16.msra.mxu0 0
    %1711 = vmatprep.subr.bf16.mxu0 0
    %1712 = vmatpush2.bf16.msra.mxu0 0
    %1713 = vmatprep.subr.bf16.mxu0 0
    %1714 = vmatpush2.bf16.msra.mxu0 0
    %1715 = vmatprep.subr.bf16.mxu0 0
    %1716 = vmatpush2.bf16.msra.mxu0 0
    %1717 = vmatprep.subr.bf16.mxu0 0
    %1718 = vmatpush2.bf16.msra.mxu0 0
    %1719 = vmatprep.mubr.bf16.mxu0 0
    %1720 = vmatmul.mubr.bf16.gmra.mxu0 %v1557
    %v1721 = vpop.f32.mrf.mxu0
    %v1722 = vadd.f32 %v1515, %v1721
    %v1723 = vpop.f32.mrf.mxu0
    %v1724 = vadd.f32 %v1519, %v1723
    %v1725 = vpop.f32.mrf.mxu0
    %v1726 = vpop.f32.mrf.mxu0
    %1727 = vdwg.mxu0
    %1728 = vmatprep.subr.bf16.mxu0 0
    %1729 = vmatpush1.bf16.msra.mxu0 %v1662
    %1730 = vmatprep.subr.bf16.mxu0 0
    %1731 = vmatpush1.bf16.msra.mxu0 %v1659
    %1732 = vmatprep.subr.bf16.mxu0 0
    %1733 = vmatpush1.bf16.msra.mxu0 %v1656
    %1734 = vmatprep.subr.bf16.mxu0 0
    %1735 = vmatpush1.bf16.msra.mxu0 %v1653
    %1736 = vmatprep.subr.bf16.mxu0 0
    %1737 = vmatpush1.bf16.msra.mxu0 %v1650
    %1738 = vmatprep.subr.bf16.mxu0 0
    %1739 = vmatpush1.bf16.msra.mxu0 %v1647
    %1740 = vmatprep.subr.bf16.mxu0 0
    %1741 = vmatpush1.bf16.msra.mxu0 %v1644
    %1742 = vmatprep.subr.bf16.mxu0 0
    %1743 = vmatpush1.bf16.msra.mxu0 %v1641
    %1744 = vmatprep.subr.bf16.mxu0 0
    %1745 = vmatpush2.bf16.msra.mxu0 0
    %1746 = vmatprep.subr.bf16.mxu0 0
    %1747 = vmatpush2.bf16.msra.mxu0 0
    %1748 = vmatprep.subr.bf16.mxu0 0
    %1749 = vmatpush2.bf16.msra.mxu0 0
    %1750 = vmatprep.subr.bf16.mxu0 0
    %1751 = vmatpush2.bf16.msra.mxu0 0
    %1752 = vmatprep.subr.bf16.mxu0 0
    %1753 = vmatpush2.bf16.msra.mxu0 0
    %1754 = vmatprep.subr.bf16.mxu0 0
    %1755 = vmatpush2.bf16.msra.mxu0 0
    %1756 = vmatprep.subr.bf16.mxu0 0
    %1757 = vmatpush2.bf16.msra.mxu0 0
    %1758 = vmatprep.subr.bf16.mxu0 0
    %1759 = vmatpush2.bf16.msra.mxu0 0
    %1760 = vmatprep.mubr.bf16.mxu0 0
    %1761 = vmatmul.mubr.bf16.gmra.mxu0 %v1557
    %v1762 = vpop.f32.mrf.mxu0
    %v1763 = vadd.f32 %v1523, %v1762
    %v1764 = vpop.f32.mrf.mxu0
    %v1765 = vpop.f32.mrf.mxu0
    %v1766 = vpop.f32.mrf.mxu0
    %1767 = vdwg.mxu0
    %v1769 = vrot.slane %v1722, 6
    %v1770 = vrot.slane %v1722, 7
    %v1771 = vrot.slane %v1722, 1
    %v1772 = vrot.slane %v1722, 2
    %v1773 = vrot.slane %v1722, 3
    %v1774 = vrot.slane %v1722, 4
    %v1775 = vrot.slane %v1722, 5
    %v1784 = vadd.f32 %v307, %v1769
    %v1785 = vadd.f32 %v311, %v1770
    %v1786 = vadd.f32 %v317, %v1722
    %v1787 = vadd.f32 %v321, %v1771
    %v1788 = vadd.f32 %v327, %v1772
    %v1789 = vadd.f32 %v331, %v1773
    %v1790 = vadd.f32 %v337, %v1774
    %v1791 = vadd.f32 %v341, %v1775
    %v1792 = vxor.u32 %v1784, 2147483648
    %v1793 = vxor.u32 %v1785, 2147483648
    %v1794 = vxor.u32 %v1786, 2147483648
    %v1795 = vxor.u32 %v1787, 2147483648
    %v1796 = vxor.u32 %v1788, 2147483648
    %v1797 = vxor.u32 %v1789, 2147483648
    %v1798 = vxor.u32 %v1790, 2147483648
    %v1799 = vxor.u32 %v1791, 2147483648
    %v1800 = vmul.f32 %v1792, 1.442695
    %v1801 = vpow.pop %v1800
    %v1802 = vmul.f32 %v1793, 1.442695
    %v1803 = vpow.pop %v1802
    %v1804 = vmul.f32 %v1794, 1.442695
    %v1805 = vpow.pop %v1804
    %v1806 = vmul.f32 %v1795, 1.442695
    %v1807 = vpow.pop %v1806
    %v1808 = vmul.f32 %v1796, 1.442695
    %v1809 = vpow.pop %v1808
    %v1810 = vmul.f32 %v1797, 1.442695
    %v1811 = vpow.pop %v1810
    %v1812 = vmul.f32 %v1798, 1.442695
    %v1813 = vpow.pop %v1812
    %v1814 = vmul.f32 %v1799, 1.442695
    %v1815 = vpow.pop %v1814
    %v1816 = vadd.f32 %v1801, 1.0
    %v1817 = vadd.f32 %v1803, 1.0
    %v1818 = vadd.f32 %v1805, 1.0
    %v1819 = vadd.f32 %v1807, 1.0
    %v1820 = vadd.f32 %v1809, 1.0
    %v1821 = vadd.f32 %v1811, 1.0
    %v1822 = vadd.f32 %v1813, 1.0
    %v1823 = vadd.f32 %v1815, 1.0
    %v1824 = vrcp.pop %v1816
    %v1825 = vmul.f32 1.0, %v1824
    %v1826 = vrcp.pop %v1817
    %v1827 = vmul.f32 1.0, %v1826
    %v1828 = vrcp.pop %v1818
    %v1829 = vmul.f32 1.0, %v1828
    %v1830 = vrcp.pop %v1819
    %v1831 = vmul.f32 1.0, %v1830
    %v1832 = vrcp.pop %v1820
    %v1833 = vmul.f32 1.0, %v1832
    %v1834 = vrcp.pop %v1821
    %v1835 = vmul.f32 1.0, %v1834
    %v1836 = vrcp.pop %v1822
    %v1837 = vmul.f32 1.0, %v1836
    %v1838 = vrcp.pop %v1823
    %v1839 = vmul.f32 1.0, %v1838
    %v1841 = vrot.slane %v1724, 6
    %v1842 = vrot.slane %v1724, 7
    %v1843 = vrot.slane %v1724, 1
    %v1844 = vrot.slane %v1724, 2
    %v1845 = vrot.slane %v1724, 3
    %v1846 = vrot.slane %v1724, 4
    %v1847 = vrot.slane %v1724, 5
    %v1856 = vadd.f32 %v309, %v1841
    %v1857 = vadd.f32 %v313, %v1842
    %v1858 = vadd.f32 %v319, %v1724
    %v1859 = vadd.f32 %v323, %v1843
    %v1860 = vadd.f32 %v329, %v1844
    %v1861 = vadd.f32 %v333, %v1845
    %v1862 = vadd.f32 %v339, %v1846
    %v1863 = vadd.f32 %v343, %v1847
    %v1864 = vxor.u32 %v1856, 2147483648
    %v1865 = vxor.u32 %v1857, 2147483648
    %v1866 = vxor.u32 %v1858, 2147483648
    %v1867 = vxor.u32 %v1859, 2147483648
    %v1868 = vxor.u32 %v1860, 2147483648
    %v1869 = vxor.u32 %v1861, 2147483648
    %v1870 = vxor.u32 %v1862, 2147483648
    %v1871 = vxor.u32 %v1863, 2147483648
    %v1872 = vmul.f32 %v1864, 1.442695
    %v1873 = vpow.pop %v1872
    %v1874 = vmul.f32 %v1865, 1.442695
    %v1875 = vpow.pop %v1874
    %v1876 = vmul.f32 %v1866, 1.442695
    %v1877 = vpow.pop %v1876
    %v1878 = vmul.f32 %v1867, 1.442695
    %v1879 = vpow.pop %v1878
    %v1880 = vmul.f32 %v1868, 1.442695
    %v1881 = vpow.pop %v1880
    %v1882 = vmul.f32 %v1869, 1.442695
    %v1883 = vpow.pop %v1882
    %v1884 = vmul.f32 %v1870, 1.442695
    %v1885 = vpow.pop %v1884
    %v1886 = vmul.f32 %v1871, 1.442695
    %v1887 = vpow.pop %v1886
    %v1888 = vadd.f32 %v1873, 1.0
    %v1889 = vadd.f32 %v1875, 1.0
    %v1890 = vadd.f32 %v1877, 1.0
    %v1891 = vadd.f32 %v1879, 1.0
    %v1892 = vadd.f32 %v1881, 1.0
    %v1893 = vadd.f32 %v1883, 1.0
    %v1894 = vadd.f32 %v1885, 1.0
    %v1895 = vadd.f32 %v1887, 1.0
    %v1896 = vrcp.pop %v1888
    %v1897 = vmul.f32 1.0, %v1896
    %v1898 = vrcp.pop %v1889
    %v1899 = vmul.f32 1.0, %v1898
    %v1900 = vrcp.pop %v1890
    %v1901 = vmul.f32 1.0, %v1900
    %v1902 = vrcp.pop %v1891
    %v1903 = vmul.f32 1.0, %v1902
    %v1904 = vrcp.pop %v1892
    %v1905 = vmul.f32 1.0, %v1904
    %v1906 = vrcp.pop %v1893
    %v1907 = vmul.f32 1.0, %v1906
    %v1908 = vrcp.pop %v1894
    %v1909 = vmul.f32 1.0, %v1908
    %v1910 = vrcp.pop %v1895
    %v1911 = vmul.f32 1.0, %v1910
    %v1913 = vrot.slane %v1763, 6
    %v1914 = vrot.slane %v1763, 7
    %v1915 = vrot.slane %v1763, 1
    %v1916 = vrot.slane %v1763, 2
    %v1917 = vrot.slane %v1763, 3
    %v1918 = vrot.slane %v1763, 4
    %v1919 = vrot.slane %v1763, 5
    %v1928 = vmul.f32 %v1825, %v1913
    %v1929 = vmul.f32 %v1827, %v1914
    %v1930 = vmul.f32 %v1829, %v1763
    %v1931 = vmul.f32 %v1831, %v1915
    %v1932 = vmul.f32 %v1833, %v1916
    %v1933 = vmul.f32 %v1835, %v1917
    %v1934 = vmul.f32 %v1837, %v1918
    %v1935 = vmul.f32 %v1839, %v1919
    %v1936 = vadd.f32 %v380, %v1928
    %v1937 = vadd.f32 %v383, %v1929
    %v1938 = vadd.f32 %v388, %v1930
    %v1939 = vadd.f32 %v391, %v1931
    %v1940 = vadd.f32 %v396, %v1932
    %v1941 = vadd.f32 %v399, %v1933
    %v1942 = vadd.f32 %v404, %v1934
    %v1943 = vadd.f32 %v407, %v1935
    %v1944 = vtanh.pop %v1936
    %v1945 = vtanh.pop %v1937
    %v1946 = vtanh.pop %v1938
    %v1947 = vtanh.pop %v1939
    %v1948 = vtanh.pop %v1940
    %v1949 = vtanh.pop %v1941
    %v1950 = vtanh.pop %v1942
    %v1951 = vtanh.pop %v1943
    %v1952 = vsub.f32 1.0, %v1897
    %v1953 = vsub.f32 1.0, %v1899
    %v1954 = vsub.f32 1.0, %v1901
    %v1955 = vsub.f32 1.0, %v1903
    %v1956 = vsub.f32 1.0, %v1905
    %v1957 = vsub.f32 1.0, %v1907
    %v1958 = vsub.f32 1.0, %v1909
    %v1959 = vsub.f32 1.0, %v1911
    %v1960 = vmul.f32 %v1952, %v1944
    %v1961 = vmul.f32 %v1953, %v1945
    %v1962 = vmul.f32 %v1954, %v1946
    %v1963 = vmul.f32 %v1955, %v1947
    %v1964 = vmul.f32 %v1956, %v1948
    %v1965 = vmul.f32 %v1957, %v1949
    %v1966 = vmul.f32 %v1958, %v1950
    %v1967 = vmul.f32 %v1959, %v1951
    %v1968 = vrot.slane %v1436, 7
    %v1969 = vrot.slane %v1438, 7
    %v1970 = vrot.slane %v1439, 7
    %v1971 = vrot.slane %v1440, 7
    %v1972 = vrot.slane %v1441, 7
    %v1973 = vrot.slane %v1442, 7
    %v1974 = vrot.slane %v1443, 7
    %v1983 = vmul.f32 %v1897, %v1968
    %v1984 = vmul.f32 %v1899, %v1452
    %v1985 = vmul.f32 %v1901, %v1969
    %v1986 = vmul.f32 %v1903, %v1970
    %v1987 = vmul.f32 %v1905, %v1971
    %v1988 = vmul.f32 %v1907, %v1972
    %v1989 = vmul.f32 %v1909, %v1973
    %v1990 = vmul.f32 %v1911, %v1974
    %v1991 = vadd.f32 %v1960, %v1983
    %v1992 = vadd.f32 %v1961, %v1984
    %v1993 = vadd.f32 %v1962, %v1985
    %v1994 = vadd.f32 %v1963, %v1986
    %v1995 = vadd.f32 %v1964, %v1987
    %v1996 = vadd.f32 %v1965, %v1988
    %v1997 = vadd.f32 %v1966, %v1989
    %v1998 = vadd.f32 %v1967, %v1990
    %v2007 = vrot.slane %v1992, 7
    %v2008 = vsel %vm899, %v2007, %v1991
    %v2009 = vrot.slane %v1993, 6
    %v2010 = vsel %vm902, %v2009, %v2008
    %v2011 = vrot.slane %v1994, 5
    %v2012 = vsel %vm905, %v2011, %v2010
    %v2013 = vrot.slane %v1995, 4
    %v2014 = vsel %vm908, %v2013, %v2012
    %v2015 = vrot.slane %v1996, 3
    %v2016 = vsel %vm911, %v2015, %v2014
    %v2017 = vrot.slane %v1997, 2
    %v2018 = vrot.slane %v1998, 1
    %v2019 = vsel %vm893, %v2018, %v2017
    %s2022 = scalar_lea.vmem [#allocation8], 16
    %2023 = vst [vmem:[%s2022 - $0x2] sm:$0xfc] %v2016
    %2024 = vst [vmem:[%s2022 + $0x6] sm:$0x3] %v2019
    %v2025 = vpack.c.bf16 %v1991, %v1991
    %v2026 = vpack.c.bf16 %v1992, %v1992
    %v2027 = vpack.c.bf16 %v1993, %v1993
    %v2028 = vpack.c.bf16 %v1994, %v1994
    %v2029 = vpack.c.bf16 %v1995, %v1995
    %v2030 = vpack.c.bf16 %v1996, %v1996
    %v2031 = vpack.c.bf16 %v1997, %v1997
    %v2032 = vpack.c.bf16 %v1998, %v1998
    %v2033 = vld [vmem:[#allocation7] sm:$0xff]
    %v2034 = vld [vmem:[#allocation7 + $0x8] sm:$0xf]
    %v2035 = vld [vmem:[#allocation7 + $0xc] sm:$0xff]
    %v2036 = vld [vmem:[#allocation7 + $0x14] sm:$0xf]
    %v2037 = vld [vmem:[#allocation7 + $0x18] sm:$0xff]
    %v2038 = vld [vmem:[#allocation7 + $0x20] sm:$0xf]
    %v2039 = vld [vmem:[#allocation7 + $0x24] sm:$0xff]
    %v2040 = vld [vmem:[#allocation7 + $0x2c] sm:$0xf]
    %v2041 = vld [vmem:[#allocation7 + $0x30] sm:$0xff]
    %v2042 = vld [vmem:[#allocation7 + $0x38] sm:$0xf]
    %v2043 = vld [vmem:[#allocation7 + $0x3c] sm:$0xff]
    %v2044 = vld [vmem:[#allocation7 + $0x44] sm:$0xf]
    %v2045 = vld [vmem:[#allocation7 + $0x48] sm:$0xff]
    %v2046 = vld [vmem:[#allocation7 + $0x50] sm:$0xf]
    %v2047 = vld [vmem:[#allocation7 + $0x54] sm:$0xff]
    %v2048 = vld [vmem:[#allocation7 + $0x5c] sm:$0xf]
    %v2049 = vld [vmem:[#allocation7 + $0x60] sm:$0xff]
    %v2050 = vld [vmem:[#allocation7 + $0x68] sm:$0xf]
    %v2051 = vld [vmem:[#allocation7 + $0x6c] sm:$0xff]
    %v2052 = vld [vmem:[#allocation7 + $0x74] sm:$0xf]
    %v2053 = vld [vmem:[#allocation7 + $0x78] sm:$0xff]
    %v2054 = vld [vmem:[#allocation7 + $0x80] sm:$0xf]
    %v2055 = vld [vmem:[#allocation7 + $0x84] sm:$0xff]
    %v2056 = vld [vmem:[#allocation7 + $0x8c] sm:$0xf]
    %v2057 = vld [vmem:[#allocation7 + $0x90] sm:$0xff]
    %v2058 = vld [vmem:[#allocation7 + $0x98] sm:$0xf]
    %v2059 = vld [vmem:[#allocation7 + $0x9c] sm:$0xff]
    %v2060 = vld [vmem:[#allocation7 + $0xa4] sm:$0xf]
    %v2061 = vld [vmem:[#allocation7 + $0xa8] sm:$0xff]
    %v2062 = vld [vmem:[#allocation7 + $0xb0] sm:$0xf]
    %v2063 = vld [vmem:[#allocation7 + $0xb4] sm:$0xff]
    %v2064 = vld [vmem:[#allocation7 + $0xbc] sm:$0xf]
    %v2065 = vld [vmem:[%s4] sm:$0x7]
    %v2067 = vlaneseq
    %v2068 = vshrl.u32 %v2067, 7
    %v2069 = vsub.s32 0, %v2068
    %v2070 = vrot.slane %v2065, %v2069
    %v2071 = vlaneseq
    %v2072 = vshrl.u32 %v2071, 7
    %v2073 = vsub.s32 1, %v2072
    %v2074 = vrot.slane %v2065, %v2073
    %v2075 = vlaneseq
    %v2076 = vshrl.u32 %v2075, 7
    %v2077 = vsub.s32 2, %v2076
    %v2078 = vrot.slane %v2065, %v2077
    %v2090 = vunpack.c.l.b16 %v2025
    %v2091 = vunpack.c.l.b16 %v2026
    %v2092 = vunpack.c.l.b16 %v2027
    %v2093 = vunpack.c.l.b16 %v2028
    %v2094 = vunpack.c.l.b16 %v2029
    %v2095 = vunpack.c.l.b16 %v2030
    %v2096 = vunpack.c.l.b16 %v2031
    %v2097 = vunpack.c.l.b16 %v2032
    %v2098 = vrot.slane %v2090, 2
    %v2099 = vrot.slane %v2091, 1
    %v2100 = vsel %vm893, %v2099, %v2098
    %v2101 = vsel %vm896, %v2092, %v2100
    %v2102 = vrot.slane %v2093, 7
    %v2103 = vsel %vm899, %v2102, %v2101
    %v2104 = vrot.slane %v2094, 6
    %v2105 = vsel %vm902, %v2104, %v2103
    %v2106 = vrot.slane %v2095, 5
    %v2107 = vsel %vm905, %v2106, %v2105
    %v2108 = vrot.slane %v2096, 4
    %v2109 = vsel %vm908, %v2108, %v2107
    %v2110 = vrot.slane %v2097, 3
    %v2111 = vsel %vm911, %v2110, %v2109
    %v2112 = vpack.c.b16 %v2111, %v2111
    %v2146 = vunpack.c.l.b16 %v2033
    %v2147 = vunpack.c.h.b16 %v2033
    %v2148 = vunpack.c.l.b16 %v2034
    %v2149 = vunpack.c.l.b16 %v2035
    %v2150 = vunpack.c.h.b16 %v2035
    %v2151 = vunpack.c.l.b16 %v2036
    %v2152 = vunpack.c.l.b16 %v2037
    %v2153 = vunpack.c.h.b16 %v2037
    %v2154 = vunpack.c.l.b16 %v2038
    %v2155 = vunpack.c.l.b16 %v2039
    %v2156 = vunpack.c.h.b16 %v2039
    %v2157 = vunpack.c.l.b16 %v2040
    %v2158 = vunpack.c.l.b16 %v2041
    %v2159 = vunpack.c.h.b16 %v2041
    %v2160 = vunpack.c.l.b16 %v2042
    %v2161 = vunpack.c.l.b16 %v2043
    %v2162 = vunpack.c.h.b16 %v2043
    %v2163 = vunpack.c.l.b16 %v2044
    %v2164 = vunpack.c.l.b16 %v2045
    %v2165 = vunpack.c.h.b16 %v2045
    %v2166 = vunpack.c.l.b16 %v2046
    %v2167 = vunpack.c.l.b16 %v2047
    %v2168 = vunpack.c.h.b16 %v2047
    %v2169 = vunpack.c.l.b16 %v2048
    %v2170 = vunpack.c.l.b16 %v2049
    %v2171 = vunpack.c.h.b16 %v2049
    %v2172 = vunpack.c.l.b16 %v2050
    %v2173 = vunpack.c.l.b16 %v2051
    %v2174 = vunpack.c.h.b16 %v2051
    %v2175 = vunpack.c.l.b16 %v2052
    %v2176 = vunpack.c.l.b16 %v2053
    %v2177 = vunpack.c.h.b16 %v2053
    %v2178 = vunpack.c.l.b16 %v2054
    %v2179 = vunpack.c.l.b16 %v2055
    %v2180 = vunpack.c.h.b16 %v2055
    %v2181 = vunpack.c.l.b16 %v2056
    %v2182 = vunpack.c.l.b16 %v2057
    %v2183 = vunpack.c.h.b16 %v2057
    %v2184 = vunpack.c.l.b16 %v2058
    %v2185 = vunpack.c.l.b16 %v2059
    %v2186 = vunpack.c.h.b16 %v2059
    %v2187 = vunpack.c.l.b16 %v2060
    %v2188 = vunpack.c.l.b16 %v2061
    %v2189 = vunpack.c.h.b16 %v2061
    %v2190 = vunpack.c.l.b16 %v2062
    %v2191 = vunpack.c.l.b16 %v2063
    %v2192 = vunpack.c.h.b16 %v2063
    %v2193 = vunpack.c.l.b16 %v2064
    %v2194 = vpack.c.b16 %v2149, %v2146
    %v2195 = vpack.c.b16 %v2150, %v2147
    %v2196 = vpack.c.b16 %v2151, %v2148
    %v2197 = vpack.c.b16 %v2155, %v2152
    %v2198 = vpack.c.b16 %v2156, %v2153
    %v2199 = vpack.c.b16 %v2157, %v2154
    %v2200 = vpack.c.b16 %v2161, %v2158
    %v2201 = vpack.c.b16 %v2162, %v2159
    %v2202 = vpack.c.b16 %v2163, %v2160
    %v2203 = vpack.c.b16 %v2167, %v2164
    %v2204 = vpack.c.b16 %v2168, %v2165
    %v2205 = vpack.c.b16 %v2169, %v2166
    %v2206 = vpack.c.b16 %v2173, %v2170
    %v2207 = vpack.c.b16 %v2174, %v2171
    %v2208 = vpack.c.b16 %v2175, %v2172
    %v2209 = vpack.c.b16 %v2179, %v2176
    %v2210 = vpack.c.b16 %v2180, %v2177
    %v2211 = vpack.c.b16 %v2181, %v2178
    %v2212 = vpack.c.b16 %v2185, %v2182
    %v2213 = vpack.c.b16 %v2186, %v2183
    %v2214 = vpack.c.b16 %v2187, %v2184
    %v2215 = vpack.c.b16 %v2191, %v2188
    %v2216 = vpack.c.b16 %v2192, %v2189
    %v2217 = vpack.c.b16 %v2193, %v2190
    %2242 = vmatprep.subr.bf16.mxu0 %v2216
    %2243 = vmatpush1.bf16.msra.mxu0 %v2215
    %2244 = vmatprep.subr.bf16.mxu0 %v2213
    %2245 = vmatpush1.bf16.msra.mxu0 %v2212
    %2246 = vmatprep.subr.bf16.mxu0 %v2210
    %2247 = vmatpush1.bf16.msra.mxu0 %v2209
    %2248 = vmatprep.subr.bf16.mxu0 %v2207
    %2249 = vmatpush1.bf16.msra.mxu0 %v2206
    %2250 = vmatprep.subr.bf16.mxu0 %v2204
    %2251 = vmatpush1.bf16.msra.mxu0 %v2203
    %2252 = vmatprep.subr.bf16.mxu0 %v2201
    %2253 = vmatpush1.bf16.msra.mxu0 %v2200
    %2254 = vmatprep.subr.bf16.mxu0 %v2198
    %2255 = vmatpush1.bf16.msra.mxu0 %v2197
    %2256 = vmatprep.subr.bf16.mxu0 %v2195
    %2257 = vmatpush1.bf16.msra.mxu0 %v2194
    %2258 = vmatprep.subr.bf16.mxu0 0
    %2259 = vmatpush2.bf16.msra.mxu0 0
    %2260 = vmatprep.subr.bf16.mxu0 0
    %2261 = vmatpush2.bf16.msra.mxu0 0
    %2262 = vmatprep.subr.bf16.mxu0 0
    %2263 = vmatpush2.bf16.msra.mxu0 0
    %2264 = vmatprep.subr.bf16.mxu0 0
    %2265 = vmatpush2.bf16.msra.mxu0 0
    %2266 = vmatprep.subr.bf16.mxu0 0
    %2267 = vmatpush2.bf16.msra.mxu0 0
    %2268 = vmatprep.subr.bf16.mxu0 0
    %2269 = vmatpush2.bf16.msra.mxu0 0
    %2270 = vmatprep.subr.bf16.mxu0 0
    %2271 = vmatpush2.bf16.msra.mxu0 0
    %2272 = vmatprep.subr.bf16.mxu0 0
    %2273 = vmatpush2.bf16.msra.mxu0 0
    %2274 = vmatprep.mubr.bf16.mxu0 0
    %2275 = vmatmul.mubr.bf16.gmra.mxu0 %v2112
    %v2276 = vpop.f32.mrf.mxu0
    %v2277 = vadd.f32 %v2070, %v2276
    %v2278 = vpop.f32.mrf.mxu0
    %v2279 = vadd.f32 %v2074, %v2278
    %v2280 = vpop.f32.mrf.mxu0
    %v2281 = vpop.f32.mrf.mxu0
    %2282 = vdwg.mxu0
    %2283 = vmatprep.subr.bf16.mxu0 0
    %2284 = vmatpush1.bf16.msra.mxu0 %v2217
    %2285 = vmatprep.subr.bf16.mxu0 0
    %2286 = vmatpush1.bf16.msra.mxu0 %v2214
    %2287 = vmatprep.subr.bf16.mxu0 0
    %2288 = vmatpush1.bf16.msra.mxu0 %v2211
    %2289 = vmatprep.subr.bf16.mxu0 0
    %2290 = vmatpush1.bf16.msra.mxu0 %v2208
    %2291 = vmatprep.subr.bf16.mxu0 0
    %2292 = vmatpush1.bf16.msra.mxu0 %v2205
    %2293 = vmatprep.subr.bf16.mxu0 0
    %2294 = vmatpush1.bf16.msra.mxu0 %v2202
    %2295 = vmatprep.subr.bf16.mxu0 0
    %2296 = vmatpush1.bf16.msra.mxu0 %v2199
    %2297 = vmatprep.subr.bf16.mxu0 0
    %2298 = vmatpush1.bf16.msra.mxu0 %v2196
    %2299 = vmatprep.subr.bf16.mxu0 0
    %2300 = vmatpush2.bf16.msra.mxu0 0
    %2301 = vmatprep.subr.bf16.mxu0 0
    %2302 = vmatpush2.bf16.msra.mxu0 0
    %2303 = vmatprep.subr.bf16.mxu0 0
    %2304 = vmatpush2.bf16.msra.mxu0 0
    %2305 = vmatprep.subr.bf16.mxu0 0
    %2306 = vmatpush2.bf16.msra.mxu0 0
    %2307 = vmatprep.subr.bf16.mxu0 0
    %2308 = vmatpush2.bf16.msra.mxu0 0
    %2309 = vmatprep.subr.bf16.mxu0 0
    %2310 = vmatpush2.bf16.msra.mxu0 0
    %2311 = vmatprep.subr.bf16.mxu0 0
    %2312 = vmatpush2.bf16.msra.mxu0 0
    %2313 = vmatprep.subr.bf16.mxu0 0
    %2314 = vmatpush2.bf16.msra.mxu0 0
    %2315 = vmatprep.mubr.bf16.mxu0 0
    %2316 = vmatmul.mubr.bf16.gmra.mxu0 %v2112
    %v2317 = vpop.f32.mrf.mxu0
    %v2318 = vadd.f32 %v2078, %v2317
    %v2319 = vpop.f32.mrf.mxu0
    %v2320 = vpop.f32.mrf.mxu0
    %v2321 = vpop.f32.mrf.mxu0
    %2322 = vdwg.mxu0
    %v2324 = vrot.slane %v2277, 5
    %v2325 = vrot.slane %v2277, 6
    %v2326 = vrot.slane %v2277, 7
    %v2327 = vrot.slane %v2277, 1
    %v2328 = vrot.slane %v2277, 2
    %v2329 = vrot.slane %v2277, 3
    %v2330 = vrot.slane %v2277, 4
    %v2339 = vadd.f32 %v307, %v2324
    %v2340 = vadd.f32 %v311, %v2325
    %v2341 = vadd.f32 %v317, %v2326
    %v2342 = vadd.f32 %v321, %v2277
    %v2343 = vadd.f32 %v327, %v2327
    %v2344 = vadd.f32 %v331, %v2328
    %v2345 = vadd.f32 %v337, %v2329
    %v2346 = vadd.f32 %v341, %v2330
    %v2347 = vxor.u32 %v2339, 2147483648
    %v2348 = vxor.u32 %v2340, 2147483648
    %v2349 = vxor.u32 %v2341, 2147483648
    %v2350 = vxor.u32 %v2342, 2147483648
    %v2351 = vxor.u32 %v2343, 2147483648
    %v2352 = vxor.u32 %v2344, 2147483648
    %v2353 = vxor.u32 %v2345, 2147483648
    %v2354 = vxor.u32 %v2346, 2147483648
    %v2355 = vmul.f32 %v2347, 1.442695
    %v2356 = vpow.pop %v2355
    %v2357 = vmul.f32 %v2348, 1.442695
    %v2358 = vpow.pop %v2357
    %v2359 = vmul.f32 %v2349, 1.442695
    %v2360 = vpow.pop %v2359
    %v2361 = vmul.f32 %v2350, 1.442695
    %v2362 = vpow.pop %v2361
    %v2363 = vmul.f32 %v2351, 1.442695
    %v2364 = vpow.pop %v2363
    %v2365 = vmul.f32 %v2352, 1.442695
    %v2366 = vpow.pop %v2365
    %v2367 = vmul.f32 %v2353, 1.442695
    %v2368 = vpow.pop %v2367
    %v2369 = vmul.f32 %v2354, 1.442695
    %v2370 = vpow.pop %v2369
    %v2371 = vadd.f32 %v2356, 1.0
    %v2372 = vadd.f32 %v2358, 1.0
    %v2373 = vadd.f32 %v2360, 1.0
    %v2374 = vadd.f32 %v2362, 1.0
    %v2375 = vadd.f32 %v2364, 1.0
    %v2376 = vadd.f32 %v2366, 1.0
    %v2377 = vadd.f32 %v2368, 1.0
    %v2378 = vadd.f32 %v2370, 1.0
    %v2379 = vrcp.pop %v2371
    %v2380 = vmul.f32 1.0, %v2379
    %v2381 = vrcp.pop %v2372
    %v2382 = vmul.f32 1.0, %v2381
    %v2383 = vrcp.pop %v2373
    %v2384 = vmul.f32 1.0, %v2383
    %v2385 = vrcp.pop %v2374
    %v2386 = vmul.f32 1.0, %v2385
    %v2387 = vrcp.pop %v2375
    %v2388 = vmul.f32 1.0, %v2387
    %v2389 = vrcp.pop %v2376
    %v2390 = vmul.f32 1.0, %v2389
    %v2391 = vrcp.pop %v2377
    %v2392 = vmul.f32 1.0, %v2391
    %v2393 = vrcp.pop %v2378
    %v2394 = vmul.f32 1.0, %v2393
    %v2396 = vrot.slane %v2279, 5
    %v2397 = vrot.slane %v2279, 6
    %v2398 = vrot.slane %v2279, 7
    %v2399 = vrot.slane %v2279, 1
    %v2400 = vrot.slane %v2279, 2
    %v2401 = vrot.slane %v2279, 3
    %v2402 = vrot.slane %v2279, 4
    %v2411 = vadd.f32 %v309, %v2396
    %v2412 = vadd.f32 %v313, %v2397
    %v2413 = vadd.f32 %v319, %v2398
    %v2414 = vadd.f32 %v323, %v2279
    %v2415 = vadd.f32 %v329, %v2399
    %v2416 = vadd.f32 %v333, %v2400
    %v2417 = vadd.f32 %v339, %v2401
    %v2418 = vadd.f32 %v343, %v2402
    %v2419 = vxor.u32 %v2411, 2147483648
    %v2420 = vxor.u32 %v2412, 2147483648
    %v2421 = vxor.u32 %v2413, 2147483648
    %v2422 = vxor.u32 %v2414, 2147483648
    %v2423 = vxor.u32 %v2415, 2147483648
    %v2424 = vxor.u32 %v2416, 2147483648
    %v2425 = vxor.u32 %v2417, 2147483648
    %v2426 = vxor.u32 %v2418, 2147483648
    %v2427 = vmul.f32 %v2419, 1.442695
    %v2428 = vpow.pop %v2427
    %v2429 = vmul.f32 %v2420, 1.442695
    %v2430 = vpow.pop %v2429
    %v2431 = vmul.f32 %v2421, 1.442695
    %v2432 = vpow.pop %v2431
    %v2433 = vmul.f32 %v2422, 1.442695
    %v2434 = vpow.pop %v2433
    %v2435 = vmul.f32 %v2423, 1.442695
    %v2436 = vpow.pop %v2435
    %v2437 = vmul.f32 %v2424, 1.442695
    %v2438 = vpow.pop %v2437
    %v2439 = vmul.f32 %v2425, 1.442695
    %v2440 = vpow.pop %v2439
    %v2441 = vmul.f32 %v2426, 1.442695
    %v2442 = vpow.pop %v2441
    %v2443 = vadd.f32 %v2428, 1.0
    %v2444 = vadd.f32 %v2430, 1.0
    %v2445 = vadd.f32 %v2432, 1.0
    %v2446 = vadd.f32 %v2434, 1.0
    %v2447 = vadd.f32 %v2436, 1.0
    %v2448 = vadd.f32 %v2438, 1.0
    %v2449 = vadd.f32 %v2440, 1.0
    %v2450 = vadd.f32 %v2442, 1.0
    %v2451 = vrcp.pop %v2443
    %v2452 = vmul.f32 1.0, %v2451
    %v2453 = vrcp.pop %v2444
    %v2454 = vmul.f32 1.0, %v2453
    %v2455 = vrcp.pop %v2445
    %v2456 = vmul.f32 1.0, %v2455
    %v2457 = vrcp.pop %v2446
    %v2458 = vmul.f32 1.0, %v2457
    %v2459 = vrcp.pop %v2447
    %v2460 = vmul.f32 1.0, %v2459
    %v2461 = vrcp.pop %v2448
    %v2462 = vmul.f32 1.0, %v2461
    %v2463 = vrcp.pop %v2449
    %v2464 = vmul.f32 1.0, %v2463
    %v2465 = vrcp.pop %v2450
    %v2466 = vmul.f32 1.0, %v2465
    %v2468 = vrot.slane %v2318, 5
    %v2469 = vrot.slane %v2318, 6
    %v2470 = vrot.slane %v2318, 7
    %v2471 = vrot.slane %v2318, 1
    %v2472 = vrot.slane %v2318, 2
    %v2473 = vrot.slane %v2318, 3
    %v2474 = vrot.slane %v2318, 4
    %v2483 = vmul.f32 %v2380, %v2468
    %v2484 = vmul.f32 %v2382, %v2469
    %v2485 = vmul.f32 %v2384, %v2470
    %v2486 = vmul.f32 %v2386, %v2318
    %v2487 = vmul.f32 %v2388, %v2471
    %v2488 = vmul.f32 %v2390, %v2472
    %v2489 = vmul.f32 %v2392, %v2473
    %v2490 = vmul.f32 %v2394, %v2474
    %v2491 = vadd.f32 %v380, %v2483
    %v2492 = vadd.f32 %v383, %v2484
    %v2493 = vadd.f32 %v388, %v2485
    %v2494 = vadd.f32 %v391, %v2486
    %v2495 = vadd.f32 %v396, %v2487
    %v2496 = vadd.f32 %v399, %v2488
    %v2497 = vadd.f32 %v404, %v2489
    %v2498 = vadd.f32 %v407, %v2490
    %v2499 = vtanh.pop %v2491
    %v2500 = vtanh.pop %v2492
    %v2501 = vtanh.pop %v2493
    %v2502 = vtanh.pop %v2494
    %v2503 = vtanh.pop %v2495
    %v2504 = vtanh.pop %v2496
    %v2505 = vtanh.pop %v2497
    %v2506 = vtanh.pop %v2498
    %v2507 = vsub.f32 1.0, %v2452
    %v2508 = vsub.f32 1.0, %v2454
    %v2509 = vsub.f32 1.0, %v2456
    %v2510 = vsub.f32 1.0, %v2458
    %v2511 = vsub.f32 1.0, %v2460
    %v2512 = vsub.f32 1.0, %v2462
    %v2513 = vsub.f32 1.0, %v2464
    %v2514 = vsub.f32 1.0, %v2466
    %v2515 = vmul.f32 %v2507, %v2499
    %v2516 = vmul.f32 %v2508, %v2500
    %v2517 = vmul.f32 %v2509, %v2501
    %v2518 = vmul.f32 %v2510, %v2502
    %v2519 = vmul.f32 %v2511, %v2503
    %v2520 = vmul.f32 %v2512, %v2504
    %v2521 = vmul.f32 %v2513, %v2505
    %v2522 = vmul.f32 %v2514, %v2506
    %v2523 = vrot.slane %v1991, 7
    %v2524 = vrot.slane %v1993, 7
    %v2525 = vrot.slane %v1994, 7
    %v2526 = vrot.slane %v1995, 7
    %v2527 = vrot.slane %v1996, 7
    %v2528 = vrot.slane %v1997, 7
    %v2529 = vrot.slane %v1998, 7
    %v2538 = vmul.f32 %v2452, %v2523
    %v2539 = vmul.f32 %v2454, %v2007
    %v2540 = vmul.f32 %v2456, %v2524
    %v2541 = vmul.f32 %v2458, %v2525
    %v2542 = vmul.f32 %v2460, %v2526
    %v2543 = vmul.f32 %v2462, %v2527
    %v2544 = vmul.f32 %v2464, %v2528
    %v2545 = vmul.f32 %v2466, %v2529
    %v2546 = vadd.f32 %v2515, %v2538
    %v2547 = vadd.f32 %v2516, %v2539
    %v2548 = vadd.f32 %v2517, %v2540
    %v2549 = vadd.f32 %v2518, %v2541
    %v2550 = vadd.f32 %v2519, %v2542
    %v2551 = vadd.f32 %v2520, %v2543
    %v2552 = vadd.f32 %v2521, %v2544
    %v2553 = vadd.f32 %v2522, %v2545
    %v2562 = vrot.slane %v2547, 7
    %v2563 = vsel %vm902, %v2562, %v2546
    %v2564 = vrot.slane %v2548, 6
    %v2565 = vsel %vm905, %v2564, %v2563
    %v2566 = vrot.slane %v2549, 5
    %v2567 = vsel %vm908, %v2566, %v2565
    %v2568 = vrot.slane %v2550, 4
    %v2569 = vsel %vm911, %v2568, %v2567
    %v2570 = vrot.slane %v2551, 3
    %v2571 = vrot.slane %v2552, 2
    %v2572 = vsel %vm893, %v2571, %v2570
    %v2573 = vrot.slane %v2553, 1
    %v2574 = vsel %vm896, %v2573, %v2572
    %s2577 = scalar_lea.vmem [#allocation8], 24
    %2578 = vst [vmem:[%s2577 - $0x3] sm:$0xf8] %v2569
    %2579 = vst [vmem:[%s2577 + $0x5] sm:$0x7] %v2574
    %v2580 = vpack.c.bf16 %v2546, %v2546
    %v2581 = vpack.c.bf16 %v2547, %v2547
    %v2582 = vpack.c.bf16 %v2548, %v2548
    %v2583 = vpack.c.bf16 %v2549, %v2549
    %v2584 = vpack.c.bf16 %v2550, %v2550
    %v2585 = vpack.c.bf16 %v2551, %v2551
    %v2586 = vpack.c.bf16 %v2552, %v2552
    %v2587 = vpack.c.bf16 %v2553, %v2553
    %v2588 = vld [vmem:[#allocation7] sm:$0xff]
    %v2589 = vld [vmem:[#allocation7 + $0x8] sm:$0xf]
    %v2590 = vld [vmem:[#allocation7 + $0xc] sm:$0xff]
    %v2591 = vld [vmem:[#allocation7 + $0x14] sm:$0xf]
    %v2592 = vld [vmem:[#allocation7 + $0x18] sm:$0xff]
    %v2593 = vld [vmem:[#allocation7 + $0x20] sm:$0xf]
    %v2594 = vld [vmem:[#allocation7 + $0x24] sm:$0xff]
    %v2595 = vld [vmem:[#allocation7 + $0x2c] sm:$0xf]
    %v2596 = vld [vmem:[#allocation7 + $0x30] sm:$0xff]
    %v2597 = vld [vmem:[#allocation7 + $0x38] sm:$0xf]
    %v2598 = vld [vmem:[#allocation7 + $0x3c] sm:$0xff]
    %v2599 = vld [vmem:[#allocation7 + $0x44] sm:$0xf]
    %v2600 = vld [vmem:[#allocation7 + $0x48] sm:$0xff]
    %v2601 = vld [vmem:[#allocation7 + $0x50] sm:$0xf]
    %v2602 = vld [vmem:[#allocation7 + $0x54] sm:$0xff]
    %v2603 = vld [vmem:[#allocation7 + $0x5c] sm:$0xf]
    %v2604 = vld [vmem:[#allocation7 + $0x60] sm:$0xff]
    %v2605 = vld [vmem:[#allocation7 + $0x68] sm:$0xf]
    %v2606 = vld [vmem:[#allocation7 + $0x6c] sm:$0xff]
    %v2607 = vld [vmem:[#allocation7 + $0x74] sm:$0xf]
    %v2608 = vld [vmem:[#allocation7 + $0x78] sm:$0xff]
    %v2609 = vld [vmem:[#allocation7 + $0x80] sm:$0xf]
    %v2610 = vld [vmem:[#allocation7 + $0x84] sm:$0xff]
    %v2611 = vld [vmem:[#allocation7 + $0x8c] sm:$0xf]
    %v2612 = vld [vmem:[#allocation7 + $0x90] sm:$0xff]
    %v2613 = vld [vmem:[#allocation7 + $0x98] sm:$0xf]
    %v2614 = vld [vmem:[#allocation7 + $0x9c] sm:$0xff]
    %v2615 = vld [vmem:[#allocation7 + $0xa4] sm:$0xf]
    %v2616 = vld [vmem:[#allocation7 + $0xa8] sm:$0xff]
    %v2617 = vld [vmem:[#allocation7 + $0xb0] sm:$0xf]
    %v2618 = vld [vmem:[#allocation7 + $0xb4] sm:$0xff]
    %v2619 = vld [vmem:[#allocation7 + $0xbc] sm:$0xf]
    %v2620 = vld [vmem:[%s4] sm:$0x7]
    %v2622 = vlaneseq
    %v2623 = vshrl.u32 %v2622, 7
    %v2624 = vsub.s32 0, %v2623
    %v2625 = vrot.slane %v2620, %v2624
    %v2626 = vlaneseq
    %v2627 = vshrl.u32 %v2626, 7
    %v2628 = vsub.s32 1, %v2627
    %v2629 = vrot.slane %v2620, %v2628
    %v2630 = vlaneseq
    %v2631 = vshrl.u32 %v2630, 7
    %v2632 = vsub.s32 2, %v2631
    %v2633 = vrot.slane %v2620, %v2632
    %v2645 = vunpack.c.l.b16 %v2580
    %v2646 = vunpack.c.l.b16 %v2581
    %v2647 = vunpack.c.l.b16 %v2582
    %v2648 = vunpack.c.l.b16 %v2583
    %v2649 = vunpack.c.l.b16 %v2584
    %v2650 = vunpack.c.l.b16 %v2585
    %v2651 = vunpack.c.l.b16 %v2586
    %v2652 = vunpack.c.l.b16 %v2587
    %v2653 = vrot.slane %v2645, 3
    %v2654 = vrot.slane %v2646, 2
    %v2655 = vsel %vm893, %v2654, %v2653
    %v2656 = vrot.slane %v2647, 1
    %v2657 = vsel %vm896, %v2656, %v2655
    %v2658 = vsel %vm899, %v2648, %v2657
    %v2659 = vrot.slane %v2649, 7
    %v2660 = vsel %vm902, %v2659, %v2658
    %v2661 = vrot.slane %v2650, 6
    %v2662 = vsel %vm905, %v2661, %v2660
    %v2663 = vrot.slane %v2651, 5
    %v2664 = vsel %vm908, %v2663, %v2662
    %v2665 = vrot.slane %v2652, 4
    %v2666 = vsel %vm911, %v2665, %v2664
    %v2667 = vpack.c.b16 %v2666, %v2666
    %v2701 = vunpack.c.l.b16 %v2588
    %v2702 = vunpack.c.h.b16 %v2588
    %v2703 = vunpack.c.l.b16 %v2589
    %v2704 = vunpack.c.l.b16 %v2590
    %v2705 = vunpack.c.h.b16 %v2590
    %v2706 = vunpack.c.l.b16 %v2591
    %v2707 = vunpack.c.l.b16 %v2592
    %v2708 = vunpack.c.h.b16 %v2592
    %v2709 = vunpack.c.l.b16 %v2593
    %v2710 = vunpack.c.l.b16 %v2594
    %v2711 = vunpack.c.h.b16 %v2594
    %v2712 = vunpack.c.l.b16 %v2595
    %v2713 = vunpack.c.l.b16 %v2596
    %v2714 = vunpack.c.h.b16 %v2596
    %v2715 = vunpack.c.l.b16 %v2597
    %v2716 = vunpack.c.l.b16 %v2598
    %v2717 = vunpack.c.h.b16 %v2598
    %v2718 = vunpack.c.l.b16 %v2599
    %v2719 = vunpack.c.l.b16 %v2600
    %v2720 = vunpack.c.h.b16 %v2600
    %v2721 = vunpack.c.l.b16 %v2601
    %v2722 = vunpack.c.l.b16 %v2602
    %v2723 = vunpack.c.h.b16 %v2602
    %v2724 = vunpack.c.l.b16 %v2603
    %v2725 = vunpack.c.l.b16 %v2604
    %v2726 = vunpack.c.h.b16 %v2604
    %v2727 = vunpack.c.l.b16 %v2605
    %v2728 = vunpack.c.l.b16 %v2606
    %v2729 = vunpack.c.h.b16 %v2606
    %v2730 = vunpack.c.l.b16 %v2607
    %v2731 = vunpack.c.l.b16 %v2608
    %v2732 = vunpack.c.h.b16 %v2608
    %v2733 = vunpack.c.l.b16 %v2609
    %v2734 = vunpack.c.l.b16 %v2610
    %v2735 = vunpack.c.h.b16 %v2610
    %v2736 = vunpack.c.l.b16 %v2611
    %v2737 = vunpack.c.l.b16 %v2612
    %v2738 = vunpack.c.h.b16 %v2612
    %v2739 = vunpack.c.l.b16 %v2613
    %v2740 = vunpack.c.l.b16 %v2614
    %v2741 = vunpack.c.h.b16 %v2614
    %v2742 = vunpack.c.l.b16 %v2615
    %v2743 = vunpack.c.l.b16 %v2616
    %v2744 = vunpack.c.h.b16 %v2616
    %v2745 = vunpack.c.l.b16 %v2617
    %v2746 = vunpack.c.l.b16 %v2618
    %v2747 = vunpack.c.h.b16 %v2618
    %v2748 = vunpack.c.l.b16 %v2619
    %v2749 = vpack.c.b16 %v2704, %v2701
    %v2750 = vpack.c.b16 %v2705, %v2702
    %v2751 = vpack.c.b16 %v2706, %v2703
    %v2752 = vpack.c.b16 %v2710, %v2707
    %v2753 = vpack.c.b16 %v2711, %v2708
    %v2754 = vpack.c.b16 %v2712, %v2709
    %v2755 = vpack.c.b16 %v2716, %v2713
    %v2756 = vpack.c.b16 %v2717, %v2714
    %v2757 = vpack.c.b16 %v2718, %v2715
    %v2758 = vpack.c.b16 %v2722, %v2719
    %v2759 = vpack.c.b16 %v2723, %v2720
    %v2760 = vpack.c.b16 %v2724, %v2721
    %v2761 = vpack.c.b16 %v2728, %v2725
    %v2762 = vpack.c.b16 %v2729, %v2726
    %v2763 = vpack.c.b16 %v2730, %v2727
    %v2764 = vpack.c.b16 %v2734, %v2731
    %v2765 = vpack.c.b16 %v2735, %v2732
    %v2766 = vpack.c.b16 %v2736, %v2733
    %v2767 = vpack.c.b16 %v2740, %v2737
    %v2768 = vpack.c.b16 %v2741, %v2738
    %v2769 = vpack.c.b16 %v2742, %v2739
    %v2770 = vpack.c.b16 %v2746, %v2743
    %v2771 = vpack.c.b16 %v2747, %v2744
    %v2772 = vpack.c.b16 %v2748, %v2745
    %2797 = vmatprep.subr.bf16.mxu0 %v2771
    %2798 = vmatpush1.bf16.msra.mxu0 %v2770
    %2799 = vmatprep.subr.bf16.mxu0 %v2768
    %2800 = vmatpush1.bf16.msra.mxu0 %v2767
    %2801 = vmatprep.subr.bf16.mxu0 %v2765
    %2802 = vmatpush1.bf16.msra.mxu0 %v2764
    %2803 = vmatprep.subr.bf16.mxu0 %v2762
    %2804 = vmatpush1.bf16.msra.mxu0 %v2761
    %2805 = vmatprep.subr.bf16.mxu0 %v2759
    %2806 = vmatpush1.bf16.msra.mxu0 %v2758
    %2807 = vmatprep.subr.bf16.mxu0 %v2756
    %2808 = vmatpush1.bf16.msra.mxu0 %v2755
    %2809 = vmatprep.subr.bf16.mxu0 %v2753
    %2810 = vmatpush1.bf16.msra.mxu0 %v2752
    %2811 = vmatprep.subr.bf16.mxu0 %v2750
    %2812 = vmatpush1.bf16.msra.mxu0 %v2749
    %2813 = vmatprep.subr.bf16.mxu0 0
    %2814 = vmatpush2.bf16.msra.mxu0 0
    %2815 = vmatprep.subr.bf16.mxu0 0
    %2816 = vmatpush2.bf16.msra.mxu0 0
    %2817 = vmatprep.subr.bf16.mxu0 0
    %2818 = vmatpush2.bf16.msra.mxu0 0
    %2819 = vmatprep.subr.bf16.mxu0 0
    %2820 = vmatpush2.bf16.msra.mxu0 0
    %2821 = vmatprep.subr.bf16.mxu0 0
    %2822 = vmatpush2.bf16.msra.mxu0 0
    %2823 = vmatprep.subr.bf16.mxu0 0
    %2824 = vmatpush2.bf16.msra.mxu0 0
    %2825 = vmatprep.subr.bf16.mxu0 0
    %2826 = vmatpush2.bf16.msra.mxu0 0
    %2827 = vmatprep.subr.bf16.mxu0 0
    %2828 = vmatpush2.bf16.msra.mxu0 0
    %2829 = vmatprep.mubr.bf16.mxu0 0
    %2830 = vmatmul.mubr.bf16.gmra.mxu0 %v2667
    %v2831 = vpop.f32.mrf.mxu0
    %v2832 = vadd.f32 %v2625, %v2831
    %v2833 = vpop.f32.mrf.mxu0
    %v2834 = vadd.f32 %v2629, %v2833
    %v2835 = vpop.f32.mrf.mxu0
    %v2836 = vpop.f32.mrf.mxu0
    %2837 = vdwg.mxu0
    %2838 = vmatprep.subr.bf16.mxu0 0
    %2839 = vmatpush1.bf16.msra.mxu0 %v2772
    %2840 = vmatprep.subr.bf16.mxu0 0
    %2841 = vmatpush1.bf16.msra.mxu0 %v2769
    %2842 = vmatprep.subr.bf16.mxu0 0
    %2843 = vmatpush1.bf16.msra.mxu0 %v2766
    %2844 = vmatprep.subr.bf16.mxu0 0
    %2845 = vmatpush1.bf16.msra.mxu0 %v2763
    %2846 = vmatprep.subr.bf16.mxu0 0
    %2847 = vmatpush1.bf16.msra.mxu0 %v2760
    %2848 = vmatprep.subr.bf16.mxu0 0
    %2849 = vmatpush1.bf16.msra.mxu0 %v2757
    %2850 = vmatprep.subr.bf16.mxu0 0
    %2851 = vmatpush1.bf16.msra.mxu0 %v2754
    %2852 = vmatprep.subr.bf16.mxu0 0
    %2853 = vmatpush1.bf16.msra.mxu0 %v2751
    %2854 = vmatprep.subr.bf16.mxu0 0
    %2855 = vmatpush2.bf16.msra.mxu0 0
    %2856 = vmatprep.subr.bf16.mxu0 0
    %2857 = vmatpush2.bf16.msra.mxu0 0
    %2858 = vmatprep.subr.bf16.mxu0 0
    %2859 = vmatpush2.bf16.msra.mxu0 0
    %2860 = vmatprep.subr.bf16.mxu0 0
    %2861 = vmatpush2.bf16.msra.mxu0 0
    %2862 = vmatprep.subr.bf16.mxu0 0
    %2863 = vmatpush2.bf16.msra.mxu0 0
    %2864 = vmatprep.subr.bf16.mxu0 0
    %2865 = vmatpush2.bf16.msra.mxu0 0
    %2866 = vmatprep.subr.bf16.mxu0 0
    %2867 = vmatpush2.bf16.msra.mxu0 0
    %2868 = vmatprep.subr.bf16.mxu0 0
    %2869 = vmatpush2.bf16.msra.mxu0 0
    %2870 = vmatprep.mubr.bf16.mxu0 0
    %2871 = vmatmul.mubr.bf16.gmra.mxu0 %v2667
    %v2872 = vpop.f32.mrf.mxu0
    %v2873 = vadd.f32 %v2633, %v2872
    %v2874 = vpop.f32.mrf.mxu0
    %v2875 = vpop.f32.mrf.mxu0
    %v2876 = vpop.f32.mrf.mxu0
    %2877 = vdwg.mxu0
    %v2879 = vrot.slane %v2832, 4
    %v2880 = vrot.slane %v2832, 5
    %v2881 = vrot.slane %v2832, 6
    %v2882 = vrot.slane %v2832, 7
    %v2883 = vrot.slane %v2832, 1
    %v2884 = vrot.slane %v2832, 2
    %v2885 = vrot.slane %v2832, 3
    %v2894 = vadd.f32 %v307, %v2879
    %v2895 = vadd.f32 %v311, %v2880
    %v2896 = vadd.f32 %v317, %v2881
    %v2897 = vadd.f32 %v321, %v2882
    %v2898 = vadd.f32 %v327, %v2832
    %v2899 = vadd.f32 %v331, %v2883
    %v2900 = vadd.f32 %v337, %v2884
    %v2901 = vadd.f32 %v341, %v2885
    %v2902 = vxor.u32 %v2894, 2147483648
    %v2903 = vxor.u32 %v2895, 2147483648
    %v2904 = vxor.u32 %v2896, 2147483648
    %v2905 = vxor.u32 %v2897, 2147483648
    %v2906 = vxor.u32 %v2898, 2147483648
    %v2907 = vxor.u32 %v2899, 2147483648
    %v2908 = vxor.u32 %v2900, 2147483648
    %v2909 = vxor.u32 %v2901, 2147483648
    %v2910 = vmul.f32 %v2902, 1.442695
    %v2911 = vpow.pop %v2910
    %v2912 = vmul.f32 %v2903, 1.442695
    %v2913 = vpow.pop %v2912
    %v2914 = vmul.f32 %v2904, 1.442695
    %v2915 = vpow.pop %v2914
    %v2916 = vmul.f32 %v2905, 1.442695
    %v2917 = vpow.pop %v2916
    %v2918 = vmul.f32 %v2906, 1.442695
    %v2919 = vpow.pop %v2918
    %v2920 = vmul.f32 %v2907, 1.442695
    %v2921 = vpow.pop %v2920
    %v2922 = vmul.f32 %v2908, 1.442695
    %v2923 = vpow.pop %v2922
    %v2924 = vmul.f32 %v2909, 1.442695
    %v2925 = vpow.pop %v2924
    %v2926 = vadd.f32 %v2911, 1.0
    %v2927 = vadd.f32 %v2913, 1.0
    %v2928 = vadd.f32 %v2915, 1.0
    %v2929 = vadd.f32 %v2917, 1.0
    %v2930 = vadd.f32 %v2919, 1.0
    %v2931 = vadd.f32 %v2921, 1.0
    %v2932 = vadd.f32 %v2923, 1.0
    %v2933 = vadd.f32 %v2925, 1.0
    %v2934 = vrcp.pop %v2926
    %v2935 = vmul.f32 1.0, %v2934
    %v2936 = vrcp.pop %v2927
    %v2937 = vmul.f32 1.0, %v2936
    %v2938 = vrcp.pop %v2928
    %v2939 = vmul.f32 1.0, %v2938
    %v2940 = vrcp.pop %v2929
    %v2941 = vmul.f32 1.0, %v2940
    %v2942 = vrcp.pop %v2930
    %v2943 = vmul.f32 1.0, %v2942
    %v2944 = vrcp.pop %v2931
    %v2945 = vmul.f32 1.0, %v2944
    %v2946 = vrcp.pop %v2932
    %v2947 = vmul.f32 1.0, %v2946
    %v2948 = vrcp.pop %v2933
    %v2949 = vmul.f32 1.0, %v2948
    %v2951 = vrot.slane %v2834, 4
    %v2952 = vrot.slane %v2834, 5
    %v2953 = vrot.slane %v2834, 6
    %v2954 = vrot.slane %v2834, 7
    %v2955 = vrot.slane %v2834, 1
    %v2956 = vrot.slane %v2834, 2
    %v2957 = vrot.slane %v2834, 3
    %v2966 = vadd.f32 %v309, %v2951
    %v2967 = vadd.f32 %v313, %v2952
    %v2968 = vadd.f32 %v319, %v2953
    %v2969 = vadd.f32 %v323, %v2954
    %v2970 = vadd.f32 %v329, %v2834
    %v2971 = vadd.f32 %v333, %v2955
    %v2972 = vadd.f32 %v339, %v2956
    %v2973 = vadd.f32 %v343, %v2957
    %v2974 = vxor.u32 %v2966, 2147483648
    %v2975 = vxor.u32 %v2967, 2147483648
    %v2976 = vxor.u32 %v2968, 2147483648
    %v2977 = vxor.u32 %v2969, 2147483648
    %v2978 = vxor.u32 %v2970, 2147483648
    %v2979 = vxor.u32 %v2971, 2147483648
    %v2980 = vxor.u32 %v2972, 2147483648
    %v2981 = vxor.u32 %v2973, 2147483648
    %v2982 = vmul.f32 %v2974, 1.442695
    %v2983 = vpow.pop %v2982
    %v2984 = vmul.f32 %v2975, 1.442695
    %v2985 = vpow.pop %v2984
    %v2986 = vmul.f32 %v2976, 1.442695
    %v2987 = vpow.pop %v2986
    %v2988 = vmul.f32 %v2977, 1.442695
    %v2989 = vpow.pop %v2988
    %v2990 = vmul.f32 %v2978, 1.442695
    %v2991 = vpow.pop %v2990
    %v2992 = vmul.f32 %v2979, 1.442695
    %v2993 = vpow.pop %v2992
    %v2994 = vmul.f32 %v2980, 1.442695
    %v2995 = vpow.pop %v2994
    %v2996 = vmul.f32 %v2981, 1.442695
    %v2997 = vpow.pop %v2996
    %v2998 = vadd.f32 %v2983, 1.0
    %v2999 = vadd.f32 %v2985, 1.0
    %v3000 = vadd.f32 %v2987, 1.0
    %v3001 = vadd.f32 %v2989, 1.0
    %v3002 = vadd.f32 %v2991, 1.0
    %v3003 = vadd.f32 %v2993, 1.0
    %v3004 = vadd.f32 %v2995, 1.0
    %v3005 = vadd.f32 %v2997, 1.0
    %v3006 = vrcp.pop %v2998
    %v3007 = vmul.f32 1.0, %v3006
    %v3008 = vrcp.pop %v2999
    %v3009 = vmul.f32 1.0, %v3008
    %v3010 = vrcp.pop %v3000
    %v3011 = vmul.f32 1.0, %v3010
    %v3012 = vrcp.pop %v3001
    %v3013 = vmul.f32 1.0, %v3012
    %v3014 = vrcp.pop %v3002
    %v3015 = vmul.f32 1.0, %v3014
    %v3016 = vrcp.pop %v3003
    %v3017 = vmul.f32 1.0, %v3016
    %v3018 = vrcp.pop %v3004
    %v3019 = vmul.f32 1.0, %v3018
    %v3020 = vrcp.pop %v3005
    %v3021 = vmul.f32 1.0, %v3020
    %v3023 = vrot.slane %v2873, 4
    %v3024 = vrot.slane %v2873, 5
    %v3025 = vrot.slane %v2873, 6
    %v3026 = vrot.slane %v2873, 7
    %v3027 = vrot.slane %v2873, 1
    %v3028 = vrot.slane %v2873, 2
    %v3029 = vrot.slane %v2873, 3
    %v3038 = vmul.f32 %v2935, %v3023
    %v3039 = vmul.f32 %v2937, %v3024
    %v3040 = vmul.f32 %v2939, %v3025
    %v3041 = vmul.f32 %v2941, %v3026
    %v3042 = vmul.f32 %v2943, %v2873
    %v3043 = vmul.f32 %v2945, %v3027
    %v3044 = vmul.f32 %v2947, %v3028
    %v3045 = vmul.f32 %v2949, %v3029
    %v3046 = vadd.f32 %v380, %v3038
    %v3047 = vadd.f32 %v383, %v3039
    %v3048 = vadd.f32 %v388, %v3040
    %v3049 = vadd.f32 %v391, %v3041
    %v3050 = vadd.f32 %v396, %v3042
    %v3051 = vadd.f32 %v399, %v3043
    %v3052 = vadd.f32 %v404, %v3044
    %v3053 = vadd.f32 %v407, %v3045
    %v3054 = vtanh.pop %v3046
    %v3055 = vtanh.pop %v3047
    %v3056 = vtanh.pop %v3048
    %v3057 = vtanh.pop %v3049
    %v3058 = vtanh.pop %v3050
    %v3059 = vtanh.pop %v3051
    %v3060 = vtanh.pop %v3052
    %v3061 = vtanh.pop %v3053
    %v3062 = vsub.f32 1.0, %v3007
    %v3063 = vsub.f32 1.0, %v3009
    %v3064 = vsub.f32 1.0, %v3011
    %v3065 = vsub.f32 1.0, %v3013
    %v3066 = vsub.f32 1.0, %v3015
    %v3067 = vsub.f32 1.0, %v3017
    %v3068 = vsub.f32 1.0, %v3019
    %v3069 = vsub.f32 1.0, %v3021
    %v3070 = vmul.f32 %v3062, %v3054
    %v3071 = vmul.f32 %v3063, %v3055
    %v3072 = vmul.f32 %v3064, %v3056
    %v3073 = vmul.f32 %v3065, %v3057
    %v3074 = vmul.f32 %v3066, %v3058
    %v3075 = vmul.f32 %v3067, %v3059
    %v3076 = vmul.f32 %v3068, %v3060
    %v3077 = vmul.f32 %v3069, %v3061
    %v3078 = vrot.slane %v2546, 7
    %v3079 = vrot.slane %v2548, 7
    %v3080 = vrot.slane %v2549, 7
    %v3081 = vrot.slane %v2550, 7
    %v3082 = vrot.slane %v2551, 7
    %v3083 = vrot.slane %v2552, 7
    %v3084 = vrot.slane %v2553, 7
    %v3093 = vmul.f32 %v3007, %v3078
    %v3094 = vmul.f32 %v3009, %v2562
    %v3095 = vmul.f32 %v3011, %v3079
    %v3096 = vmul.f32 %v3013, %v3080
    %v3097 = vmul.f32 %v3015, %v3081
    %v3098 = vmul.f32 %v3017, %v3082
    %v3099 = vmul.f32 %v3019, %v3083
    %v3100 = vmul.f32 %v3021, %v3084
    %v3101 = vadd.f32 %v3070, %v3093
    %v3102 = vadd.f32 %v3071, %v3094
    %v3103 = vadd.f32 %v3072, %v3095
    %v3104 = vadd.f32 %v3073, %v3096
    %v3105 = vadd.f32 %v3074, %v3097
    %v3106 = vadd.f32 %v3075, %v3098
    %v3107 = vadd.f32 %v3076, %v3099
    %v3108 = vadd.f32 %v3077, %v3100
    %v3117 = vrot.slane %v3102, 7
    %v3118 = vsel %vm905, %v3117, %v3101
    %v3119 = vrot.slane %v3103, 6
    %v3120 = vsel %vm908, %v3119, %v3118
    %v3121 = vrot.slane %v3104, 5
    %v3122 = vsel %vm911, %v3121, %v3120
    %v3123 = vrot.slane %v3105, 4
    %v3124 = vrot.slane %v3106, 3
    %v3125 = vsel %vm893, %v3124, %v3123
    %v3126 = vrot.slane %v3107, 2
    %v3127 = vsel %vm896, %v3126, %v3125
    %v3128 = vrot.slane %v3108, 1
    %v3129 = vsel %vm899, %v3128, %v3127
    %s3132 = scalar_lea.vmem [#allocation8], 32
    %3133 = vst [vmem:[%s3132 - $0x4] sm:$0xf0] %v3122
    %3134 = vst [vmem:[%s3132 + $0x4] sm:$0xf] %v3129
    %v3135 = vpack.c.bf16 %v3101, %v3101
    %v3136 = vpack.c.bf16 %v3102, %v3102
    %v3137 = vpack.c.bf16 %v3103, %v3103
    %v3138 = vpack.c.bf16 %v3104, %v3104
    %v3139 = vpack.c.bf16 %v3105, %v3105
    %v3140 = vpack.c.bf16 %v3106, %v3106
    %v3141 = vpack.c.bf16 %v3107, %v3107
    %v3142 = vpack.c.bf16 %v3108, %v3108
    %v3143 = vld [vmem:[#allocation7] sm:$0xff]
    %v3144 = vld [vmem:[#allocation7 + $0x8] sm:$0xf]
    %v3145 = vld [vmem:[#allocation7 + $0xc] sm:$0xff]
    %v3146 = vld [vmem:[#allocation7 + $0x14] sm:$0xf]
    %v3147 = vld [vmem:[#allocation7 + $0x18] sm:$0xff]
    %v3148 = vld [vmem:[#allocation7 + $0x20] sm:$0xf]
    %v3149 = vld [vmem:[#allocation7 + $0x24] sm:$0xff]
    %v3150 = vld [vmem:[#allocation7 + $0x2c] sm:$0xf]
    %v3151 = vld [vmem:[#allocation7 + $0x30] sm:$0xff]
    %v3152 = vld [vmem:[#allocation7 + $0x38] sm:$0xf]
    %v3153 = vld [vmem:[#allocation7 + $0x3c] sm:$0xff]
    %v3154 = vld [vmem:[#allocation7 + $0x44] sm:$0xf]
    %v3155 = vld [vmem:[#allocation7 + $0x48] sm:$0xff]
    %v3156 = vld [vmem:[#allocation7 + $0x50] sm:$0xf]
    %v3157 = vld [vmem:[#allocation7 + $0x54] sm:$0xff]
    %v3158 = vld [vmem:[#allocation7 + $0x5c] sm:$0xf]
    %v3159 = vld [vmem:[#allocation7 + $0x60] sm:$0xff]
    %v3160 = vld [vmem:[#allocation7 + $0x68] sm:$0xf]
    %v3161 = vld [vmem:[#allocation7 + $0x6c] sm:$0xff]
    %v3162 = vld [vmem:[#allocation7 + $0x74] sm:$0xf]
    %v3163 = vld [vmem:[#allocation7 + $0x78] sm:$0xff]
    %v3164 = vld [vmem:[#allocation7 + $0x80] sm:$0xf]
    %v3165 = vld [vmem:[#allocation7 + $0x84] sm:$0xff]
    %v3166 = vld [vmem:[#allocation7 + $0x8c] sm:$0xf]
    %v3167 = vld [vmem:[#allocation7 + $0x90] sm:$0xff]
    %v3168 = vld [vmem:[#allocation7 + $0x98] sm:$0xf]
    %v3169 = vld [vmem:[#allocation7 + $0x9c] sm:$0xff]
    %v3170 = vld [vmem:[#allocation7 + $0xa4] sm:$0xf]
    %v3171 = vld [vmem:[#allocation7 + $0xa8] sm:$0xff]
    %v3172 = vld [vmem:[#allocation7 + $0xb0] sm:$0xf]
    %v3173 = vld [vmem:[#allocation7 + $0xb4] sm:$0xff]
    %v3174 = vld [vmem:[#allocation7 + $0xbc] sm:$0xf]
    %v3175 = vld [vmem:[%s4] sm:$0x7]
    %v3177 = vlaneseq
    %v3178 = vshrl.u32 %v3177, 7
    %v3179 = vsub.s32 0, %v3178
    %v3180 = vrot.slane %v3175, %v3179
    %v3181 = vlaneseq
    %v3182 = vshrl.u32 %v3181, 7
    %v3183 = vsub.s32 1, %v3182
    %v3184 = vrot.slane %v3175, %v3183
    %v3185 = vlaneseq
    %v3186 = vshrl.u32 %v3185, 7
    %v3187 = vsub.s32 2, %v3186
    %v3188 = vrot.slane %v3175, %v3187
    %v3200 = vunpack.c.l.b16 %v3135
    %v3201 = vunpack.c.l.b16 %v3136
    %v3202 = vunpack.c.l.b16 %v3137
    %v3203 = vunpack.c.l.b16 %v3138
    %v3204 = vunpack.c.l.b16 %v3139
    %v3205 = vunpack.c.l.b16 %v3140
    %v3206 = vunpack.c.l.b16 %v3141
    %v3207 = vunpack.c.l.b16 %v3142
    %v3208 = vrot.slane %v3200, 4
    %v3209 = vrot.slane %v3201, 3
    %v3210 = vsel %vm893, %v3209, %v3208
    %v3211 = vrot.slane %v3202, 2
    %v3212 = vsel %vm896, %v3211, %v3210
    %v3213 = vrot.slane %v3203, 1
    %v3214 = vsel %vm899, %v3213, %v3212
    %v3215 = vsel %vm902, %v3204, %v3214
    %v3216 = vrot.slane %v3205, 7
    %v3217 = vsel %vm905, %v3216, %v3215
    %v3218 = vrot.slane %v3206, 6
    %v3219 = vsel %vm908, %v3218, %v3217
    %v3220 = vrot.slane %v3207, 5
    %v3221 = vsel %vm911, %v3220, %v3219
    %v3222 = vpack.c.b16 %v3221, %v3221
    %v3256 = vunpack.c.l.b16 %v3143
    %v3257 = vunpack.c.h.b16 %v3143
    %v3258 = vunpack.c.l.b16 %v3144
    %v3259 = vunpack.c.l.b16 %v3145
    %v3260 = vunpack.c.h.b16 %v3145
    %v3261 = vunpack.c.l.b16 %v3146
    %v3262 = vunpack.c.l.b16 %v3147
    %v3263 = vunpack.c.h.b16 %v3147
    %v3264 = vunpack.c.l.b16 %v3148
    %v3265 = vunpack.c.l.b16 %v3149
    %v3266 = vunpack.c.h.b16 %v3149
    %v3267 = vunpack.c.l.b16 %v3150
    %v3268 = vunpack.c.l.b16 %v3151
    %v3269 = vunpack.c.h.b16 %v3151
    %v3270 = vunpack.c.l.b16 %v3152
    %v3271 = vunpack.c.l.b16 %v3153
    %v3272 = vunpack.c.h.b16 %v3153
    %v3273 = vunpack.c.l.b16 %v3154
    %v3274 = vunpack.c.l.b16 %v3155
    %v3275 = vunpack.c.h.b16 %v3155
    %v3276 = vunpack.c.l.b16 %v3156
    %v3277 = vunpack.c.l.b16 %v3157
    %v3278 = vunpack.c.h.b16 %v3157
    %v3279 = vunpack.c.l.b16 %v3158
    %v3280 = vunpack.c.l.b16 %v3159
    %v3281 = vunpack.c.h.b16 %v3159
    %v3282 = vunpack.c.l.b16 %v3160
    %v3283 = vunpack.c.l.b16 %v3161
    %v3284 = vunpack.c.h.b16 %v3161
    %v3285 = vunpack.c.l.b16 %v3162
    %v3286 = vunpack.c.l.b16 %v3163
    %v3287 = vunpack.c.h.b16 %v3163
    %v3288 = vunpack.c.l.b16 %v3164
    %v3289 = vunpack.c.l.b16 %v3165
    %v3290 = vunpack.c.h.b16 %v3165
    %v3291 = vunpack.c.l.b16 %v3166
    %v3292 = vunpack.c.l.b16 %v3167
    %v3293 = vunpack.c.h.b16 %v3167
    %v3294 = vunpack.c.l.b16 %v3168
    %v3295 = vunpack.c.l.b16 %v3169
    %v3296 = vunpack.c.h.b16 %v3169
    %v3297 = vunpack.c.l.b16 %v3170
    %v3298 = vunpack.c.l.b16 %v3171
    %v3299 = vunpack.c.h.b16 %v3171
    %v3300 = vunpack.c.l.b16 %v3172
    %v3301 = vunpack.c.l.b16 %v3173
    %v3302 = vunpack.c.h.b16 %v3173
    %v3303 = vunpack.c.l.b16 %v3174
    %v3304 = vpack.c.b16 %v3259, %v3256
    %v3305 = vpack.c.b16 %v3260, %v3257
    %v3306 = vpack.c.b16 %v3261, %v3258
    %v3307 = vpack.c.b16 %v3265, %v3262
    %v3308 = vpack.c.b16 %v3266, %v3263
    %v3309 = vpack.c.b16 %v3267, %v3264
    %v3310 = vpack.c.b16 %v3271, %v3268
    %v3311 = vpack.c.b16 %v3272, %v3269
    %v3312 = vpack.c.b16 %v3273, %v3270
    %v3313 = vpack.c.b16 %v3277, %v3274
    %v3314 = vpack.c.b16 %v3278, %v3275
    %v3315 = vpack.c.b16 %v3279, %v3276
    %v3316 = vpack.c.b16 %v3283, %v3280
    %v3317 = vpack.c.b16 %v3284, %v3281
    %v3318 = vpack.c.b16 %v3285, %v3282
    %v3319 = vpack.c.b16 %v3289, %v3286
    %v3320 = vpack.c.b16 %v3290, %v3287
    %v3321 = vpack.c.b16 %v3291, %v3288
    %v3322 = vpack.c.b16 %v3295, %v3292
    %v3323 = vpack.c.b16 %v3296, %v3293
    %v3324 = vpack.c.b16 %v3297, %v3294
    %v3325 = vpack.c.b16 %v3301, %v3298
    %v3326 = vpack.c.b16 %v3302, %v3299
    %v3327 = vpack.c.b16 %v3303, %v3300
    %3352 = vmatprep.subr.bf16.mxu0 %v3326
    %3353 = vmatpush1.bf16.msra.mxu0 %v3325
    %3354 = vmatprep.subr.bf16.mxu0 %v3323
    %3355 = vmatpush1.bf16.msra.mxu0 %v3322
    %3356 = vmatprep.subr.bf16.mxu0 %v3320
    %3357 = vmatpush1.bf16.msra.mxu0 %v3319
    %3358 = vmatprep.subr.bf16.mxu0 %v3317
    %3359 = vmatpush1.bf16.msra.mxu0 %v3316
    %3360 = vmatprep.subr.bf16.mxu0 %v3314
    %3361 = vmatpush1.bf16.msra.mxu0 %v3313
    %3362 = vmatprep.subr.bf16.mxu0 %v3311
    %3363 = vmatpush1.bf16.msra.mxu0 %v3310
    %3364 = vmatprep.subr.bf16.mxu0 %v3308
    %3365 = vmatpush1.bf16.msra.mxu0 %v3307
    %3366 = vmatprep.subr.bf16.mxu0 %v3305
    %3367 = vmatpush1.bf16.msra.mxu0 %v3304
    %3368 = vmatprep.subr.bf16.mxu0 0
    %3369 = vmatpush2.bf16.msra.mxu0 0
    %3370 = vmatprep.subr.bf16.mxu0 0
    %3371 = vmatpush2.bf16.msra.mxu0 0
    %3372 = vmatprep.subr.bf16.mxu0 0
    %3373 = vmatpush2.bf16.msra.mxu0 0
    %3374 = vmatprep.subr.bf16.mxu0 0
    %3375 = vmatpush2.bf16.msra.mxu0 0
    %3376 = vmatprep.subr.bf16.mxu0 0
    %3377 = vmatpush2.bf16.msra.mxu0 0
    %3378 = vmatprep.subr.bf16.mxu0 0
    %3379 = vmatpush2.bf16.msra.mxu0 0
    %3380 = vmatprep.subr.bf16.mxu0 0
    %3381 = vmatpush2.bf16.msra.mxu0 0
    %3382 = vmatprep.subr.bf16.mxu0 0
    %3383 = vmatpush2.bf16.msra.mxu0 0
    %3384 = vmatprep.mubr.bf16.mxu0 0
    %3385 = vmatmul.mubr.bf16.gmra.mxu0 %v3222
    %v3386 = vpop.f32.mrf.mxu0
    %v3387 = vadd.f32 %v3180, %v3386
    %v3388 = vpop.f32.mrf.mxu0
    %v3389 = vadd.f32 %v3184, %v3388
    %v3390 = vpop.f32.mrf.mxu0
    %v3391 = vpop.f32.mrf.mxu0
    %3392 = vdwg.mxu0
    %3393 = vmatprep.subr.bf16.mxu0 0
    %3394 = vmatpush1.bf16.msra.mxu0 %v3327
    %3395 = vmatprep.subr.bf16.mxu0 0
    %3396 = vmatpush1.bf16.msra.mxu0 %v3324
    %3397 = vmatprep.subr.bf16.mxu0 0
    %3398 = vmatpush1.bf16.msra.mxu0 %v3321
    %3399 = vmatprep.subr.bf16.mxu0 0
    %3400 = vmatpush1.bf16.msra.mxu0 %v3318
    %3401 = vmatprep.subr.bf16.mxu0 0
    %3402 = vmatpush1.bf16.msra.mxu0 %v3315
    %3403 = vmatprep.subr.bf16.mxu0 0
    %3404 = vmatpush1.bf16.msra.mxu0 %v3312
    %3405 = vmatprep.subr.bf16.mxu0 0
    %3406 = vmatpush1.bf16.msra.mxu0 %v3309
    %3407 = vmatprep.subr.bf16.mxu0 0
    %3408 = vmatpush1.bf16.msra.mxu0 %v3306
    %3409 = vmatprep.subr.bf16.mxu0 0
    %3410 = vmatpush2.bf16.msra.mxu0 0
    %3411 = vmatprep.subr.bf16.mxu0 0
    %3412 = vmatpush2.bf16.msra.mxu0 0
    %3413 = vmatprep.subr.bf16.mxu0 0
    %3414 = vmatpush2.bf16.msra.mxu0 0
    %3415 = vmatprep.subr.bf16.mxu0 0
    %3416 = vmatpush2.bf16.msra.mxu0 0
    %3417 = vmatprep.subr.bf16.mxu0 0
    %3418 = vmatpush2.bf16.msra.mxu0 0
    %3419 = vmatprep.subr.bf16.mxu0 0
    %3420 = vmatpush2.bf16.msra.mxu0 0
    %3421 = vmatprep.subr.bf16.mxu0 0
    %3422 = vmatpush2.bf16.msra.mxu0 0
    %3423 = vmatprep.subr.bf16.mxu0 0
    %3424 = vmatpush2.bf16.msra.mxu0 0
    %3425 = vmatprep.mubr.bf16.mxu0 0
    %3426 = vmatmul.mubr.bf16.gmra.mxu0 %v3222
    %v3427 = vpop.f32.mrf.mxu0
    %v3428 = vadd.f32 %v3188, %v3427
    %v3429 = vpop.f32.mrf.mxu0
    %v3430 = vpop.f32.mrf.mxu0
    %v3431 = vpop.f32.mrf.mxu0
    %3432 = vdwg.mxu0
    %v3434 = vrot.slane %v3387, 3
    %v3435 = vrot.slane %v3387, 4
    %v3436 = vrot.slane %v3387, 5
    %v3437 = vrot.slane %v3387, 6
    %v3438 = vrot.slane %v3387, 7
    %v3439 = vrot.slane %v3387, 1
    %v3440 = vrot.slane %v3387, 2
    %v3449 = vadd.f32 %v307, %v3434
    %v3450 = vadd.f32 %v311, %v3435
    %v3451 = vadd.f32 %v317, %v3436
    %v3452 = vadd.f32 %v321, %v3437
    %v3453 = vadd.f32 %v327, %v3438
    %v3454 = vadd.f32 %v331, %v3387
    %v3455 = vadd.f32 %v337, %v3439
    %v3456 = vadd.f32 %v341, %v3440
    %v3457 = vxor.u32 %v3449, 2147483648
    %v3458 = vxor.u32 %v3450, 2147483648
    %v3459 = vxor.u32 %v3451, 2147483648
    %v3460 = vxor.u32 %v3452, 2147483648
    %v3461 = vxor.u32 %v3453, 2147483648
    %v3462 = vxor.u32 %v3454, 2147483648
    %v3463 = vxor.u32 %v3455, 2147483648
    %v3464 = vxor.u32 %v3456, 2147483648
    %v3465 = vmul.f32 %v3457, 1.442695
    %v3466 = vpow.pop %v3465
    %v3467 = vmul.f32 %v3458, 1.442695
    %v3468 = vpow.pop %v3467
    %v3469 = vmul.f32 %v3459, 1.442695
    %v3470 = vpow.pop %v3469
    %v3471 = vmul.f32 %v3460, 1.442695
    %v3472 = vpow.pop %v3471
    %v3473 = vmul.f32 %v3461, 1.442695
    %v3474 = vpow.pop %v3473
    %v3475 = vmul.f32 %v3462, 1.442695
    %v3476 = vpow.pop %v3475
    %v3477 = vmul.f32 %v3463, 1.442695
    %v3478 = vpow.pop %v3477
    %v3479 = vmul.f32 %v3464, 1.442695
    %v3480 = vpow.pop %v3479
    %v3481 = vadd.f32 %v3466, 1.0
    %v3482 = vadd.f32 %v3468, 1.0
    %v3483 = vadd.f32 %v3470, 1.0
    %v3484 = vadd.f32 %v3472, 1.0
    %v3485 = vadd.f32 %v3474, 1.0
    %v3486 = vadd.f32 %v3476, 1.0
    %v3487 = vadd.f32 %v3478, 1.0
    %v3488 = vadd.f32 %v3480, 1.0
    %v3489 = vrcp.pop %v3481
    %v3490 = vmul.f32 1.0, %v3489
    %v3491 = vrcp.pop %v3482
    %v3492 = vmul.f32 1.0, %v3491
    %v3493 = vrcp.pop %v3483
    %v3494 = vmul.f32 1.0, %v3493
    %v3495 = vrcp.pop %v3484
    %v3496 = vmul.f32 1.0, %v3495
    %v3497 = vrcp.pop %v3485
    %v3498 = vmul.f32 1.0, %v3497
    %v3499 = vrcp.pop %v3486
    %v3500 = vmul.f32 1.0, %v3499
    %v3501 = vrcp.pop %v3487
    %v3502 = vmul.f32 1.0, %v3501
    %v3503 = vrcp.pop %v3488
    %v3504 = vmul.f32 1.0, %v3503
    %v3506 = vrot.slane %v3389, 3
    %v3507 = vrot.slane %v3389, 4
    %v3508 = vrot.slane %v3389, 5
    %v3509 = vrot.slane %v3389, 6
    %v3510 = vrot.slane %v3389, 7
    %v3511 = vrot.slane %v3389, 1
    %v3512 = vrot.slane %v3389, 2
    %v3521 = vadd.f32 %v309, %v3506
    %v3522 = vadd.f32 %v313, %v3507
    %v3523 = vadd.f32 %v319, %v3508
    %v3524 = vadd.f32 %v323, %v3509
    %v3525 = vadd.f32 %v329, %v3510
    %v3526 = vadd.f32 %v333, %v3389
    %v3527 = vadd.f32 %v339, %v3511
    %v3528 = vadd.f32 %v343, %v3512
    %v3529 = vxor.u32 %v3521, 2147483648
    %v3530 = vxor.u32 %v3522, 2147483648
    %v3531 = vxor.u32 %v3523, 2147483648
    %v3532 = vxor.u32 %v3524, 2147483648
    %v3533 = vxor.u32 %v3525, 2147483648
    %v3534 = vxor.u32 %v3526, 2147483648
    %v3535 = vxor.u32 %v3527, 2147483648
    %v3536 = vxor.u32 %v3528, 2147483648
    %v3537 = vmul.f32 %v3529, 1.442695
    %v3538 = vpow.pop %v3537
    %v3539 = vmul.f32 %v3530, 1.442695
    %v3540 = vpow.pop %v3539
    %v3541 = vmul.f32 %v3531, 1.442695
    %v3542 = vpow.pop %v3541
    %v3543 = vmul.f32 %v3532, 1.442695
    %v3544 = vpow.pop %v3543
    %v3545 = vmul.f32 %v3533, 1.442695
    %v3546 = vpow.pop %v3545
    %v3547 = vmul.f32 %v3534, 1.442695
    %v3548 = vpow.pop %v3547
    %v3549 = vmul.f32 %v3535, 1.442695
    %v3550 = vpow.pop %v3549
    %v3551 = vmul.f32 %v3536, 1.442695
    %v3552 = vpow.pop %v3551
    %v3553 = vadd.f32 %v3538, 1.0
    %v3554 = vadd.f32 %v3540, 1.0
    %v3555 = vadd.f32 %v3542, 1.0
    %v3556 = vadd.f32 %v3544, 1.0
    %v3557 = vadd.f32 %v3546, 1.0
    %v3558 = vadd.f32 %v3548, 1.0
    %v3559 = vadd.f32 %v3550, 1.0
    %v3560 = vadd.f32 %v3552, 1.0
    %v3561 = vrcp.pop %v3553
    %v3562 = vmul.f32 1.0, %v3561
    %v3563 = vrcp.pop %v3554
    %v3564 = vmul.f32 1.0, %v3563
    %v3565 = vrcp.pop %v3555
    %v3566 = vmul.f32 1.0, %v3565
    %v3567 = vrcp.pop %v3556
    %v3568 = vmul.f32 1.0, %v3567
    %v3569 = vrcp.pop %v3557
    %v3570 = vmul.f32 1.0, %v3569
    %v3571 = vrcp.pop %v3558
    %v3572 = vmul.f32 1.0, %v3571
    %v3573 = vrcp.pop %v3559
    %v3574 = vmul.f32 1.0, %v3573
    %v3575 = vrcp.pop %v3560
    %v3576 = vmul.f32 1.0, %v3575
    %v3578 = vrot.slane %v3428, 3
    %v3579 = vrot.slane %v3428, 4
    %v3580 = vrot.slane %v3428, 5
    %v3581 = vrot.slane %v3428, 6
    %v3582 = vrot.slane %v3428, 7
    %v3583 = vrot.slane %v3428, 1
    %v3584 = vrot.slane %v3428, 2
    %v3593 = vmul.f32 %v3490, %v3578
    %v3594 = vmul.f32 %v3492, %v3579
    %v3595 = vmul.f32 %v3494, %v3580
    %v3596 = vmul.f32 %v3496, %v3581
    %v3597 = vmul.f32 %v3498, %v3582
    %v3598 = vmul.f32 %v3500, %v3428
    %v3599 = vmul.f32 %v3502, %v3583
    %v3600 = vmul.f32 %v3504, %v3584
    %v3601 = vadd.f32 %v380, %v3593
    %v3602 = vadd.f32 %v383, %v3594
    %v3603 = vadd.f32 %v388, %v3595
    %v3604 = vadd.f32 %v391, %v3596
    %v3605 = vadd.f32 %v396, %v3597
    %v3606 = vadd.f32 %v399, %v3598
    %v3607 = vadd.f32 %v404, %v3599
    %v3608 = vadd.f32 %v407, %v3600
    %v3609 = vtanh.pop %v3601
    %v3610 = vtanh.pop %v3602
    %v3611 = vtanh.pop %v3603
    %v3612 = vtanh.pop %v3604
    %v3613 = vtanh.pop %v3605
    %v3614 = vtanh.pop %v3606
    %v3615 = vtanh.pop %v3607
    %v3616 = vtanh.pop %v3608
    %v3617 = vsub.f32 1.0, %v3562
    %v3618 = vsub.f32 1.0, %v3564
    %v3619 = vsub.f32 1.0, %v3566
    %v3620 = vsub.f32 1.0, %v3568
    %v3621 = vsub.f32 1.0, %v3570
    %v3622 = vsub.f32 1.0, %v3572
    %v3623 = vsub.f32 1.0, %v3574
    %v3624 = vsub.f32 1.0, %v3576
    %v3625 = vmul.f32 %v3617, %v3609
    %v3626 = vmul.f32 %v3618, %v3610
    %v3627 = vmul.f32 %v3619, %v3611
    %v3628 = vmul.f32 %v3620, %v3612
    %v3629 = vmul.f32 %v3621, %v3613
    %v3630 = vmul.f32 %v3622, %v3614
    %v3631 = vmul.f32 %v3623, %v3615
    %v3632 = vmul.f32 %v3624, %v3616
    %v3633 = vrot.slane %v3101, 7
    %v3634 = vrot.slane %v3103, 7
    %v3635 = vrot.slane %v3104, 7
    %v3636 = vrot.slane %v3105, 7
    %v3637 = vrot.slane %v3106, 7
    %v3638 = vrot.slane %v3107, 7
    %v3639 = vrot.slane %v3108, 7
    %v3648 = vmul.f32 %v3562, %v3633
    %v3649 = vmul.f32 %v3564, %v3117
    %v3650 = vmul.f32 %v3566, %v3634
    %v3651 = vmul.f32 %v3568, %v3635
    %v3652 = vmul.f32 %v3570, %v3636
    %v3653 = vmul.f32 %v3572, %v3637
    %v3654 = vmul.f32 %v3574, %v3638
    %v3655 = vmul.f32 %v3576, %v3639
    %v3656 = vadd.f32 %v3625, %v3648
    %v3657 = vadd.f32 %v3626, %v3649
    %v3658 = vadd.f32 %v3627, %v3650
    %v3659 = vadd.f32 %v3628, %v3651
    %v3660 = vadd.f32 %v3629, %v3652
    %v3661 = vadd.f32 %v3630, %v3653
    %v3662 = vadd.f32 %v3631, %v3654
    %v3663 = vadd.f32 %v3632, %v3655
    %v3672 = vrot.slane %v3657, 7
    %v3673 = vsel %vm908, %v3672, %v3656
    %v3674 = vrot.slane %v3658, 6
    %v3675 = vsel %vm911, %v3674, %v3673
    %v3676 = vrot.slane %v3659, 5
    %v3677 = vrot.slane %v3660, 4
    %v3678 = vsel %vm893, %v3677, %v3676
    %v3679 = vrot.slane %v3661, 3
    %v3680 = vsel %vm896, %v3679, %v3678
    %v3681 = vrot.slane %v3662, 2
    %v3682 = vsel %vm899, %v3681, %v3680
    %v3683 = vrot.slane %v3663, 1
    %v3684 = vsel %vm902, %v3683, %v3682
    %s3687 = scalar_lea.vmem [#allocation8], 40
    %3688 = vst [vmem:[%s3687 - $0x5] sm:$0xe0] %v3675
    %3689 = vst [vmem:[%s3687 + $0x3] sm:$0x1f] %v3684
    %v3690 = vpack.c.bf16 %v3656, %v3656
    %v3691 = vpack.c.bf16 %v3657, %v3657
    %v3692 = vpack.c.bf16 %v3658, %v3658
    %v3693 = vpack.c.bf16 %v3659, %v3659
    %v3694 = vpack.c.bf16 %v3660, %v3660
    %v3695 = vpack.c.bf16 %v3661, %v3661
    %v3696 = vpack.c.bf16 %v3662, %v3662
    %v3697 = vpack.c.bf16 %v3663, %v3663
    %v3698 = vld [vmem:[#allocation7] sm:$0xff]
    %v3699 = vld [vmem:[#allocation7 + $0x8] sm:$0xf]
    %v3700 = vld [vmem:[#allocation7 + $0xc] sm:$0xff]
    %v3701 = vld [vmem:[#allocation7 + $0x14] sm:$0xf]
    %v3702 = vld [vmem:[#allocation7 + $0x18] sm:$0xff]
    %v3703 = vld [vmem:[#allocation7 + $0x20] sm:$0xf]
    %v3704 = vld [vmem:[#allocation7 + $0x24] sm:$0xff]
    %v3705 = vld [vmem:[#allocation7 + $0x2c] sm:$0xf]
    %v3706 = vld [vmem:[#allocation7 + $0x30] sm:$0xff]
    %v3707 = vld [vmem:[#allocation7 + $0x38] sm:$0xf]
    %v3708 = vld [vmem:[#allocation7 + $0x3c] sm:$0xff]
    %v3709 = vld [vmem:[#allocation7 + $0x44] sm:$0xf]
    %v3710 = vld [vmem:[#allocation7 + $0x48] sm:$0xff]
    %v3711 = vld [vmem:[#allocation7 + $0x50] sm:$0xf]
    %v3712 = vld [vmem:[#allocation7 + $0x54] sm:$0xff]
    %v3713 = vld [vmem:[#allocation7 + $0x5c] sm:$0xf]
    %v3714 = vld [vmem:[#allocation7 + $0x60] sm:$0xff]
    %v3715 = vld [vmem:[#allocation7 + $0x68] sm:$0xf]
    %v3716 = vld [vmem:[#allocation7 + $0x6c] sm:$0xff]
    %v3717 = vld [vmem:[#allocation7 + $0x74] sm:$0xf]
    %v3718 = vld [vmem:[#allocation7 + $0x78] sm:$0xff]
    %v3719 = vld [vmem:[#allocation7 + $0x80] sm:$0xf]
    %v3720 = vld [vmem:[#allocation7 + $0x84] sm:$0xff]
    %v3721 = vld [vmem:[#allocation7 + $0x8c] sm:$0xf]
    %v3722 = vld [vmem:[#allocation7 + $0x90] sm:$0xff]
    %v3723 = vld [vmem:[#allocation7 + $0x98] sm:$0xf]
    %v3724 = vld [vmem:[#allocation7 + $0x9c] sm:$0xff]
    %v3725 = vld [vmem:[#allocation7 + $0xa4] sm:$0xf]
    %v3726 = vld [vmem:[#allocation7 + $0xa8] sm:$0xff]
    %v3727 = vld [vmem:[#allocation7 + $0xb0] sm:$0xf]
    %v3728 = vld [vmem:[#allocation7 + $0xb4] sm:$0xff]
    %v3729 = vld [vmem:[#allocation7 + $0xbc] sm:$0xf]
    %v3730 = vld [vmem:[%s4] sm:$0x7]
    %v3732 = vlaneseq
    %v3733 = vshrl.u32 %v3732, 7
    %v3734 = vsub.s32 0, %v3733
    %v3735 = vrot.slane %v3730, %v3734
    %v3736 = vlaneseq
    %v3737 = vshrl.u32 %v3736, 7
    %v3738 = vsub.s32 1, %v3737
    %v3739 = vrot.slane %v3730, %v3738
    %v3740 = vlaneseq
    %v3741 = vshrl.u32 %v3740, 7
    %v3742 = vsub.s32 2, %v3741
    %v3743 = vrot.slane %v3730, %v3742
    %v3755 = vunpack.c.l.b16 %v3690
    %v3756 = vunpack.c.l.b16 %v3691
    %v3757 = vunpack.c.l.b16 %v3692
    %v3758 = vunpack.c.l.b16 %v3693
    %v3759 = vunpack.c.l.b16 %v3694
    %v3760 = vunpack.c.l.b16 %v3695
    %v3761 = vunpack.c.l.b16 %v3696
    %v3762 = vunpack.c.l.b16 %v3697
    %v3763 = vrot.slane %v3755, 5
    %v3764 = vrot.slane %v3756, 4
    %v3765 = vsel %vm893, %v3764, %v3763
    %v3766 = vrot.slane %v3757, 3
    %v3767 = vsel %vm896, %v3766, %v3765
    %v3768 = vrot.slane %v3758, 2
    %v3769 = vsel %vm899, %v3768, %v3767
    %v3770 = vrot.slane %v3759, 1
    %v3771 = vsel %vm902, %v3770, %v3769
    %v3772 = vsel %vm905, %v3760, %v3771
    %v3773 = vrot.slane %v3761, 7
    %v3774 = vsel %vm908, %v3773, %v3772
    %v3775 = vrot.slane %v3762, 6
    %v3776 = vsel %vm911, %v3775, %v3774
    %v3777 = vpack.c.b16 %v3776, %v3776
    %v3811 = vunpack.c.l.b16 %v3698
    %v3812 = vunpack.c.h.b16 %v3698
    %v3813 = vunpack.c.l.b16 %v3699
    %v3814 = vunpack.c.l.b16 %v3700
    %v3815 = vunpack.c.h.b16 %v3700
    %v3816 = vunpack.c.l.b16 %v3701
    %v3817 = vunpack.c.l.b16 %v3702
    %v3818 = vunpack.c.h.b16 %v3702
    %v3819 = vunpack.c.l.b16 %v3703
    %v3820 = vunpack.c.l.b16 %v3704
    %v3821 = vunpack.c.h.b16 %v3704
    %v3822 = vunpack.c.l.b16 %v3705
    %v3823 = vunpack.c.l.b16 %v3706
    %v3824 = vunpack.c.h.b16 %v3706
    %v3825 = vunpack.c.l.b16 %v3707
    %v3826 = vunpack.c.l.b16 %v3708
    %v3827 = vunpack.c.h.b16 %v3708
    %v3828 = vunpack.c.l.b16 %v3709
    %v3829 = vunpack.c.l.b16 %v3710
    %v3830 = vunpack.c.h.b16 %v3710
    %v3831 = vunpack.c.l.b16 %v3711
    %v3832 = vunpack.c.l.b16 %v3712
    %v3833 = vunpack.c.h.b16 %v3712
    %v3834 = vunpack.c.l.b16 %v3713
    %v3835 = vunpack.c.l.b16 %v3714
    %v3836 = vunpack.c.h.b16 %v3714
    %v3837 = vunpack.c.l.b16 %v3715
    %v3838 = vunpack.c.l.b16 %v3716
    %v3839 = vunpack.c.h.b16 %v3716
    %v3840 = vunpack.c.l.b16 %v3717
    %v3841 = vunpack.c.l.b16 %v3718
    %v3842 = vunpack.c.h.b16 %v3718
    %v3843 = vunpack.c.l.b16 %v3719
    %v3844 = vunpack.c.l.b16 %v3720
    %v3845 = vunpack.c.h.b16 %v3720
    %v3846 = vunpack.c.l.b16 %v3721
    %v3847 = vunpack.c.l.b16 %v3722
    %v3848 = vunpack.c.h.b16 %v3722
    %v3849 = vunpack.c.l.b16 %v3723
    %v3850 = vunpack.c.l.b16 %v3724
    %v3851 = vunpack.c.h.b16 %v3724
    %v3852 = vunpack.c.l.b16 %v3725
    %v3853 = vunpack.c.l.b16 %v3726
    %v3854 = vunpack.c.h.b16 %v3726
    %v3855 = vunpack.c.l.b16 %v3727
    %v3856 = vunpack.c.l.b16 %v3728
    %v3857 = vunpack.c.h.b16 %v3728
    %v3858 = vunpack.c.l.b16 %v3729
    %v3859 = vpack.c.b16 %v3814, %v3811
    %v3860 = vpack.c.b16 %v3815, %v3812
    %v3861 = vpack.c.b16 %v3816, %v3813
    %v3862 = vpack.c.b16 %v3820, %v3817
    %v3863 = vpack.c.b16 %v3821, %v3818
    %v3864 = vpack.c.b16 %v3822, %v3819
    %v3865 = vpack.c.b16 %v3826, %v3823
    %v3866 = vpack.c.b16 %v3827, %v3824
    %v3867 = vpack.c.b16 %v3828, %v3825
    %v3868 = vpack.c.b16 %v3832, %v3829
    %v3869 = vpack.c.b16 %v3833, %v3830
    %v3870 = vpack.c.b16 %v3834, %v3831
    %v3871 = vpack.c.b16 %v3838, %v3835
    %v3872 = vpack.c.b16 %v3839, %v3836
    %v3873 = vpack.c.b16 %v3840, %v3837
    %v3874 = vpack.c.b16 %v3844, %v3841
    %v3875 = vpack.c.b16 %v3845, %v3842
    %v3876 = vpack.c.b16 %v3846, %v3843
    %v3877 = vpack.c.b16 %v3850, %v3847
    %v3878 = vpack.c.b16 %v3851, %v3848
    %v3879 = vpack.c.b16 %v3852, %v3849
    %v3880 = vpack.c.b16 %v3856, %v3853
    %v3881 = vpack.c.b16 %v3857, %v3854
    %v3882 = vpack.c.b16 %v3858, %v3855
    %3907 = vmatprep.subr.bf16.mxu0 %v3881
    %3908 = vmatpush1.bf16.msra.mxu0 %v3880
    %3909 = vmatprep.subr.bf16.mxu0 %v3878
    %3910 = vmatpush1.bf16.msra.mxu0 %v3877
    %3911 = vmatprep.subr.bf16.mxu0 %v3875
    %3912 = vmatpush1.bf16.msra.mxu0 %v3874
    %3913 = vmatprep.subr.bf16.mxu0 %v3872
    %3914 = vmatpush1.bf16.msra.mxu0 %v3871
    %3915 = vmatprep.subr.bf16.mxu0 %v3869
    %3916 = vmatpush1.bf16.msra.mxu0 %v3868
    %3917 = vmatprep.subr.bf16.mxu0 %v3866
    %3918 = vmatpush1.bf16.msra.mxu0 %v3865
    %3919 = vmatprep.subr.bf16.mxu0 %v3863
    %3920 = vmatpush1.bf16.msra.mxu0 %v3862
    %3921 = vmatprep.subr.bf16.mxu0 %v3860
    %3922 = vmatpush1.bf16.msra.mxu0 %v3859
    %3923 = vmatprep.subr.bf16.mxu0 0
    %3924 = vmatpush2.bf16.msra.mxu0 0
    %3925 = vmatprep.subr.bf16.mxu0 0
    %3926 = vmatpush2.bf16.msra.mxu0 0
    %3927 = vmatprep.subr.bf16.mxu0 0
    %3928 = vmatpush2.bf16.msra.mxu0 0
    %3929 = vmatprep.subr.bf16.mxu0 0
    %3930 = vmatpush2.bf16.msra.mxu0 0
    %3931 = vmatprep.subr.bf16.mxu0 0
    %3932 = vmatpush2.bf16.msra.mxu0 0
    %3933 = vmatprep.subr.bf16.mxu0 0
    %3934 = vmatpush2.bf16.msra.mxu0 0
    %3935 = vmatprep.subr.bf16.mxu0 0
    %3936 = vmatpush2.bf16.msra.mxu0 0
    %3937 = vmatprep.subr.bf16.mxu0 0
    %3938 = vmatpush2.bf16.msra.mxu0 0
    %3939 = vmatprep.mubr.bf16.mxu0 0
    %3940 = vmatmul.mubr.bf16.gmra.mxu0 %v3777
    %v3941 = vpop.f32.mrf.mxu0
    %v3942 = vadd.f32 %v3735, %v3941
    %v3943 = vpop.f32.mrf.mxu0
    %v3944 = vadd.f32 %v3739, %v3943
    %v3945 = vpop.f32.mrf.mxu0
    %v3946 = vpop.f32.mrf.mxu0
    %3947 = vdwg.mxu0
    %3948 = vmatprep.subr.bf16.mxu0 0
    %3949 = vmatpush1.bf16.msra.mxu0 %v3882
    %3950 = vmatprep.subr.bf16.mxu0 0
    %3951 = vmatpush1.bf16.msra.mxu0 %v3879
    %3952 = vmatprep.subr.bf16.mxu0 0
    %3953 = vmatpush1.bf16.msra.mxu0 %v3876
    %3954 = vmatprep.subr.bf16.mxu0 0
    %3955 = vmatpush1.bf16.msra.mxu0 %v3873
    %3956 = vmatprep.subr.bf16.mxu0 0
    %3957 = vmatpush1.bf16.msra.mxu0 %v3870
    %3958 = vmatprep.subr.bf16.mxu0 0
    %3959 = vmatpush1.bf16.msra.mxu0 %v3867
    %3960 = vmatprep.subr.bf16.mxu0 0
    %3961 = vmatpush1.bf16.msra.mxu0 %v3864
    %3962 = vmatprep.subr.bf16.mxu0 0
    %3963 = vmatpush1.bf16.msra.mxu0 %v3861
    %3964 = vmatprep.subr.bf16.mxu0 0
    %3965 = vmatpush2.bf16.msra.mxu0 0
    %3966 = vmatprep.subr.bf16.mxu0 0
    %3967 = vmatpush2.bf16.msra.mxu0 0
    %3968 = vmatprep.subr.bf16.mxu0 0
    %3969 = vmatpush2.bf16.msra.mxu0 0
    %3970 = vmatprep.subr.bf16.mxu0 0
    %3971 = vmatpush2.bf16.msra.mxu0 0
    %3972 = vmatprep.subr.bf16.mxu0 0
    %3973 = vmatpush2.bf16.msra.mxu0 0
    %3974 = vmatprep.subr.bf16.mxu0 0
    %3975 = vmatpush2.bf16.msra.mxu0 0
    %3976 = vmatprep.subr.bf16.mxu0 0
    %3977 = vmatpush2.bf16.msra.mxu0 0
    %3978 = vmatprep.subr.bf16.mxu0 0
    %3979 = vmatpush2.bf16.msra.mxu0 0
    %3980 = vmatprep.mubr.bf16.mxu0 0
    %3981 = vmatmul.mubr.bf16.gmra.mxu0 %v3777
    %v3982 = vpop.f32.mrf.mxu0
    %v3983 = vadd.f32 %v3743, %v3982
    %v3984 = vpop.f32.mrf.mxu0
    %v3985 = vpop.f32.mrf.mxu0
    %v3986 = vpop.f32.mrf.mxu0
    %3987 = vdwg.mxu0
    %v3989 = vrot.slane %v3942, 2
    %v3990 = vrot.slane %v3942, 3
    %v3991 = vrot.slane %v3942, 4
    %v3992 = vrot.slane %v3942, 5
    %v3993 = vrot.slane %v3942, 6
    %v3994 = vrot.slane %v3942, 7
    %v3995 = vrot.slane %v3942, 1
    %v4004 = vadd.f32 %v307, %v3989
    %v4005 = vadd.f32 %v311, %v3990
    %v4006 = vadd.f32 %v317, %v3991
    %v4007 = vadd.f32 %v321, %v3992
    %v4008 = vadd.f32 %v327, %v3993
    %v4009 = vadd.f32 %v331, %v3994
    %v4010 = vadd.f32 %v337, %v3942
    %v4011 = vadd.f32 %v341, %v3995
    %v4012 = vxor.u32 %v4004, 2147483648
    %v4013 = vxor.u32 %v4005, 2147483648
    %v4014 = vxor.u32 %v4006, 2147483648
    %v4015 = vxor.u32 %v4007, 2147483648
    %v4016 = vxor.u32 %v4008, 2147483648
    %v4017 = vxor.u32 %v4009, 2147483648
    %v4018 = vxor.u32 %v4010, 2147483648
    %v4019 = vxor.u32 %v4011, 2147483648
    %v4020 = vmul.f32 %v4012, 1.442695
    %v4021 = vpow.pop %v4020
    %v4022 = vmul.f32 %v4013, 1.442695
    %v4023 = vpow.pop %v4022
    %v4024 = vmul.f32 %v4014, 1.442695
    %v4025 = vpow.pop %v4024
    %v4026 = vmul.f32 %v4015, 1.442695
    %v4027 = vpow.pop %v4026
    %v4028 = vmul.f32 %v4016, 1.442695
    %v4029 = vpow.pop %v4028
    %v4030 = vmul.f32 %v4017, 1.442695
    %v4031 = vpow.pop %v4030
    %v4032 = vmul.f32 %v4018, 1.442695
    %v4033 = vpow.pop %v4032
    %v4034 = vmul.f32 %v4019, 1.442695
    %v4035 = vpow.pop %v4034
    %v4036 = vadd.f32 %v4021, 1.0
    %v4037 = vadd.f32 %v4023, 1.0
    %v4038 = vadd.f32 %v4025, 1.0
    %v4039 = vadd.f32 %v4027, 1.0
    %v4040 = vadd.f32 %v4029, 1.0
    %v4041 = vadd.f32 %v4031, 1.0
    %v4042 = vadd.f32 %v4033, 1.0
    %v4043 = vadd.f32 %v4035, 1.0
    %v4044 = vrcp.pop %v4036
    %v4045 = vmul.f32 1.0, %v4044
    %v4046 = vrcp.pop %v4037
    %v4047 = vmul.f32 1.0, %v4046
    %v4048 = vrcp.pop %v4038
    %v4049 = vmul.f32 1.0, %v4048
    %v4050 = vrcp.pop %v4039
    %v4051 = vmul.f32 1.0, %v4050
    %v4052 = vrcp.pop %v4040
    %v4053 = vmul.f32 1.0, %v4052
    %v4054 = vrcp.pop %v4041
    %v4055 = vmul.f32 1.0, %v4054
    %v4056 = vrcp.pop %v4042
    %v4057 = vmul.f32 1.0, %v4056
    %v4058 = vrcp.pop %v4043
    %v4059 = vmul.f32 1.0, %v4058
    %v4061 = vrot.slane %v3944, 2
    %v4062 = vrot.slane %v3944, 3
    %v4063 = vrot.slane %v3944, 4
    %v4064 = vrot.slane %v3944, 5
    %v4065 = vrot.slane %v3944, 6
    %v4066 = vrot.slane %v3944, 7
    %v4067 = vrot.slane %v3944, 1
    %v4076 = vadd.f32 %v309, %v4061
    %v4077 = vadd.f32 %v313, %v4062
    %v4078 = vadd.f32 %v319, %v4063
    %v4079 = vadd.f32 %v323, %v4064
    %v4080 = vadd.f32 %v329, %v4065
    %v4081 = vadd.f32 %v333, %v4066
    %v4082 = vadd.f32 %v339, %v3944
    %v4083 = vadd.f32 %v343, %v4067
    %v4084 = vxor.u32 %v4076, 2147483648
    %v4085 = vxor.u32 %v4077, 2147483648
    %v4086 = vxor.u32 %v4078, 2147483648
    %v4087 = vxor.u32 %v4079, 2147483648
    %v4088 = vxor.u32 %v4080, 2147483648
    %v4089 = vxor.u32 %v4081, 2147483648
    %v4090 = vxor.u32 %v4082, 2147483648
    %v4091 = vxor.u32 %v4083, 2147483648
    %v4092 = vmul.f32 %v4084, 1.442695
    %v4093 = vpow.pop %v4092
    %v4094 = vmul.f32 %v4085, 1.442695
    %v4095 = vpow.pop %v4094
    %v4096 = vmul.f32 %v4086, 1.442695
    %v4097 = vpow.pop %v4096
    %v4098 = vmul.f32 %v4087, 1.442695
    %v4099 = vpow.pop %v4098
    %v4100 = vmul.f32 %v4088, 1.442695
    %v4101 = vpow.pop %v4100
    %v4102 = vmul.f32 %v4089, 1.442695
    %v4103 = vpow.pop %v4102
    %v4104 = vmul.f32 %v4090, 1.442695
    %v4105 = vpow.pop %v4104
    %v4106 = vmul.f32 %v4091, 1.442695
    %v4107 = vpow.pop %v4106
    %v4108 = vadd.f32 %v4093, 1.0
    %v4109 = vadd.f32 %v4095, 1.0
    %v4110 = vadd.f32 %v4097, 1.0
    %v4111 = vadd.f32 %v4099, 1.0
    %v4112 = vadd.f32 %v4101, 1.0
    %v4113 = vadd.f32 %v4103, 1.0
    %v4114 = vadd.f32 %v4105, 1.0
    %v4115 = vadd.f32 %v4107, 1.0
    %v4116 = vrcp.pop %v4108
    %v4117 = vmul.f32 1.0, %v4116
    %v4118 = vrcp.pop %v4109
    %v4119 = vmul.f32 1.0, %v4118
    %v4120 = vrcp.pop %v4110
    %v4121 = vmul.f32 1.0, %v4120
    %v4122 = vrcp.pop %v4111
    %v4123 = vmul.f32 1.0, %v4122
    %v4124 = vrcp.pop %v4112
    %v4125 = vmul.f32 1.0, %v4124
    %v4126 = vrcp.pop %v4113
    %v4127 = vmul.f32 1.0, %v4126
    %v4128 = vrcp.pop %v4114
    %v4129 = vmul.f32 1.0, %v4128
    %v4130 = vrcp.pop %v4115
    %v4131 = vmul.f32 1.0, %v4130
    %v4133 = vrot.slane %v3983, 2
    %v4134 = vrot.slane %v3983, 3
    %v4135 = vrot.slane %v3983, 4
    %v4136 = vrot.slane %v3983, 5
    %v4137 = vrot.slane %v3983, 6
    %v4138 = vrot.slane %v3983, 7
    %v4139 = vrot.slane %v3983, 1
    %v4148 = vmul.f32 %v4045, %v4133
    %v4149 = vmul.f32 %v4047, %v4134
    %v4150 = vmul.f32 %v4049, %v4135
    %v4151 = vmul.f32 %v4051, %v4136
    %v4152 = vmul.f32 %v4053, %v4137
    %v4153 = vmul.f32 %v4055, %v4138
    %v4154 = vmul.f32 %v4057, %v3983
    %v4155 = vmul.f32 %v4059, %v4139
    %v4156 = vadd.f32 %v380, %v4148
    %v4157 = vadd.f32 %v383, %v4149
    %v4158 = vadd.f32 %v388, %v4150
    %v4159 = vadd.f32 %v391, %v4151
    %v4160 = vadd.f32 %v396, %v4152
    %v4161 = vadd.f32 %v399, %v4153
    %v4162 = vadd.f32 %v404, %v4154
    %v4163 = vadd.f32 %v407, %v4155
    %v4164 = vtanh.pop %v4156
    %v4165 = vtanh.pop %v4157
    %v4166 = vtanh.pop %v4158
    %v4167 = vtanh.pop %v4159
    %v4168 = vtanh.pop %v4160
    %v4169 = vtanh.pop %v4161
    %v4170 = vtanh.pop %v4162
    %v4171 = vtanh.pop %v4163
    %v4172 = vsub.f32 1.0, %v4117
    %v4173 = vsub.f32 1.0, %v4119
    %v4174 = vsub.f32 1.0, %v4121
    %v4175 = vsub.f32 1.0, %v4123
    %v4176 = vsub.f32 1.0, %v4125
    %v4177 = vsub.f32 1.0, %v4127
    %v4178 = vsub.f32 1.0, %v4129
    %v4179 = vsub.f32 1.0, %v4131
    %v4180 = vmul.f32 %v4172, %v4164
    %v4181 = vmul.f32 %v4173, %v4165
    %v4182 = vmul.f32 %v4174, %v4166
    %v4183 = vmul.f32 %v4175, %v4167
    %v4184 = vmul.f32 %v4176, %v4168
    %v4185 = vmul.f32 %v4177, %v4169
    %v4186 = vmul.f32 %v4178, %v4170
    %v4187 = vmul.f32 %v4179, %v4171
    %v4188 = vrot.slane %v3656, 7
    %v4189 = vrot.slane %v3658, 7
    %v4190 = vrot.slane %v3659, 7
    %v4191 = vrot.slane %v3660, 7
    %v4192 = vrot.slane %v3661, 7
    %v4193 = vrot.slane %v3662, 7
    %v4194 = vrot.slane %v3663, 7
    %v4203 = vmul.f32 %v4117, %v4188
    %v4204 = vmul.f32 %v4119, %v3672
    %v4205 = vmul.f32 %v4121, %v4189
    %v4206 = vmul.f32 %v4123, %v4190
    %v4207 = vmul.f32 %v4125, %v4191
    %v4208 = vmul.f32 %v4127, %v4192
    %v4209 = vmul.f32 %v4129, %v4193
    %v4210 = vmul.f32 %v4131, %v4194
    %v4211 = vadd.f32 %v4180, %v4203
    %v4212 = vadd.f32 %v4181, %v4204
    %v4213 = vadd.f32 %v4182, %v4205
    %v4214 = vadd.f32 %v4183, %v4206
    %v4215 = vadd.f32 %v4184, %v4207
    %v4216 = vadd.f32 %v4185, %v4208
    %v4217 = vadd.f32 %v4186, %v4209
    %v4218 = vadd.f32 %v4187, %v4210
    %v4227 = vrot.slane %v4212, 7
    %v4228 = vsel %vm911, %v4227, %v4211
    %v4229 = vrot.slane %v4213, 6
    %v4230 = vrot.slane %v4214, 5
    %v4231 = vsel %vm893, %v4230, %v4229
    %v4232 = vrot.slane %v4215, 4
    %v4233 = vsel %vm896, %v4232, %v4231
    %v4234 = vrot.slane %v4216, 3
    %v4235 = vsel %vm899, %v4234, %v4233
    %v4236 = vrot.slane %v4217, 2
    %v4237 = vsel %vm902, %v4236, %v4235
    %v4238 = vrot.slane %v4218, 1
    %v4239 = vsel %vm905, %v4238, %v4237
    %s4242 = scalar_lea.vmem [#allocation8], 48
    %4243 = vst [vmem:[%s4242 - $0x6] sm:$0xc0] %v4228
    %4244 = vst [vmem:[%s4242 + $0x2] sm:$0x3f] %v4239
    %v4245 = vpack.c.bf16 %v4211, %v4211
    %v4246 = vpack.c.bf16 %v4212, %v4212
    %v4247 = vpack.c.bf16 %v4213, %v4213
    %v4248 = vpack.c.bf16 %v4214, %v4214
    %v4249 = vpack.c.bf16 %v4215, %v4215
    %v4250 = vpack.c.bf16 %v4216, %v4216
    %v4251 = vpack.c.bf16 %v4217, %v4217
    %v4252 = vpack.c.bf16 %v4218, %v4218
    %v4253 = vld [vmem:[#allocation7] sm:$0xff]
    %v4254 = vld [vmem:[#allocation7 + $0x8] sm:$0xf]
    %v4255 = vld [vmem:[#allocation7 + $0xc] sm:$0xff]
    %v4256 = vld [vmem:[#allocation7 + $0x14] sm:$0xf]
    %v4257 = vld [vmem:[#allocation7 + $0x18] sm:$0xff]
    %v4258 = vld [vmem:[#allocation7 + $0x20] sm:$0xf]
    %v4259 = vld [vmem:[#allocation7 + $0x24] sm:$0xff]
    %v4260 = vld [vmem:[#allocation7 + $0x2c] sm:$0xf]
    %v4261 = vld [vmem:[#allocation7 + $0x30] sm:$0xff]
    %v4262 = vld [vmem:[#allocation7 + $0x38] sm:$0xf]
    %v4263 = vld [vmem:[#allocation7 + $0x3c] sm:$0xff]
    %v4264 = vld [vmem:[#allocation7 + $0x44] sm:$0xf]
    %v4265 = vld [vmem:[#allocation7 + $0x48] sm:$0xff]
    %v4266 = vld [vmem:[#allocation7 + $0x50] sm:$0xf]
    %v4267 = vld [vmem:[#allocation7 + $0x54] sm:$0xff]
    %v4268 = vld [vmem:[#allocation7 + $0x5c] sm:$0xf]
    %v4269 = vld [vmem:[#allocation7 + $0x60] sm:$0xff]
    %v4270 = vld [vmem:[#allocation7 + $0x68] sm:$0xf]
    %v4271 = vld [vmem:[#allocation7 + $0x6c] sm:$0xff]
    %v4272 = vld [vmem:[#allocation7 + $0x74] sm:$0xf]
    %v4273 = vld [vmem:[#allocation7 + $0x78] sm:$0xff]
    %v4274 = vld [vmem:[#allocation7 + $0x80] sm:$0xf]
    %v4275 = vld [vmem:[#allocation7 + $0x84] sm:$0xff]
    %v4276 = vld [vmem:[#allocation7 + $0x8c] sm:$0xf]
    %v4277 = vld [vmem:[#allocation7 + $0x90] sm:$0xff]
    %v4278 = vld [vmem:[#allocation7 + $0x98] sm:$0xf]
    %v4279 = vld [vmem:[#allocation7 + $0x9c] sm:$0xff]
    %v4280 = vld [vmem:[#allocation7 + $0xa4] sm:$0xf]
    %v4281 = vld [vmem:[#allocation7 + $0xa8] sm:$0xff]
    %v4282 = vld [vmem:[#allocation7 + $0xb0] sm:$0xf]
    %v4283 = vld [vmem:[#allocation7 + $0xb4] sm:$0xff]
    %v4284 = vld [vmem:[#allocation7 + $0xbc] sm:$0xf]
    %v4285 = vld [vmem:[%s4] sm:$0x7]
    %v4287 = vlaneseq
    %v4288 = vshrl.u32 %v4287, 7
    %v4289 = vsub.s32 0, %v4288
    %v4290 = vrot.slane %v4285, %v4289
    %v4291 = vlaneseq
    %v4292 = vshrl.u32 %v4291, 7
    %v4293 = vsub.s32 1, %v4292
    %v4294 = vrot.slane %v4285, %v4293
    %v4295 = vlaneseq
    %v4296 = vshrl.u32 %v4295, 7
    %v4297 = vsub.s32 2, %v4296
    %v4298 = vrot.slane %v4285, %v4297
    %v4310 = vunpack.c.l.b16 %v4245
    %v4311 = vunpack.c.l.b16 %v4246
    %v4312 = vunpack.c.l.b16 %v4247
    %v4313 = vunpack.c.l.b16 %v4248
    %v4314 = vunpack.c.l.b16 %v4249
    %v4315 = vunpack.c.l.b16 %v4250
    %v4316 = vunpack.c.l.b16 %v4251
    %v4317 = vunpack.c.l.b16 %v4252
    %v4318 = vrot.slane %v4310, 6
    %v4319 = vrot.slane %v4311, 5
    %v4320 = vsel %vm893, %v4319, %v4318
    %v4321 = vrot.slane %v4312, 4
    %v4322 = vsel %vm896, %v4321, %v4320
    %v4323 = vrot.slane %v4313, 3
    %v4324 = vsel %vm899, %v4323, %v4322
    %v4325 = vrot.slane %v4314, 2
    %v4326 = vsel %vm902, %v4325, %v4324
    %v4327 = vrot.slane %v4315, 1
    %v4328 = vsel %vm905, %v4327, %v4326
    %v4329 = vsel %vm908, %v4316, %v4328
    %v4330 = vrot.slane %v4317, 7
    %v4331 = vsel %vm911, %v4330, %v4329
    %v4332 = vpack.c.b16 %v4331, %v4331
    %v4366 = vunpack.c.l.b16 %v4253
    %v4367 = vunpack.c.h.b16 %v4253
    %v4368 = vunpack.c.l.b16 %v4254
    %v4369 = vunpack.c.l.b16 %v4255
    %v4370 = vunpack.c.h.b16 %v4255
    %v4371 = vunpack.c.l.b16 %v4256
    %v4372 = vunpack.c.l.b16 %v4257
    %v4373 = vunpack.c.h.b16 %v4257
    %v4374 = vunpack.c.l.b16 %v4258
    %v4375 = vunpack.c.l.b16 %v4259
    %v4376 = vunpack.c.h.b16 %v4259
    %v4377 = vunpack.c.l.b16 %v4260
    %v4378 = vunpack.c.l.b16 %v4261
    %v4379 = vunpack.c.h.b16 %v4261
    %v4380 = vunpack.c.l.b16 %v4262
    %v4381 = vunpack.c.l.b16 %v4263
    %v4382 = vunpack.c.h.b16 %v4263
    %v4383 = vunpack.c.l.b16 %v4264
    %v4384 = vunpack.c.l.b16 %v4265
    %v4385 = vunpack.c.h.b16 %v4265
    %v4386 = vunpack.c.l.b16 %v4266
    %v4387 = vunpack.c.l.b16 %v4267
    %v4388 = vunpack.c.h.b16 %v4267
    %v4389 = vunpack.c.l.b16 %v4268
    %v4390 = vunpack.c.l.b16 %v4269
    %v4391 = vunpack.c.h.b16 %v4269
    %v4392 = vunpack.c.l.b16 %v4270
    %v4393 = vunpack.c.l.b16 %v4271
    %v4394 = vunpack.c.h.b16 %v4271
    %v4395 = vunpack.c.l.b16 %v4272
    %v4396 = vunpack.c.l.b16 %v4273
    %v4397 = vunpack.c.h.b16 %v4273
    %v4398 = vunpack.c.l.b16 %v4274
    %v4399 = vunpack.c.l.b16 %v4275
    %v4400 = vunpack.c.h.b16 %v4275
    %v4401 = vunpack.c.l.b16 %v4276
    %v4402 = vunpack.c.l.b16 %v4277
    %v4403 = vunpack.c.h.b16 %v4277
    %v4404 = vunpack.c.l.b16 %v4278
    %v4405 = vunpack.c.l.b16 %v4279
    %v4406 = vunpack.c.h.b16 %v4279
    %v4407 = vunpack.c.l.b16 %v4280
    %v4408 = vunpack.c.l.b16 %v4281
    %v4409 = vunpack.c.h.b16 %v4281
    %v4410 = vunpack.c.l.b16 %v4282
    %v4411 = vunpack.c.l.b16 %v4283
    %v4412 = vunpack.c.h.b16 %v4283
    %v4413 = vunpack.c.l.b16 %v4284
    %v4414 = vpack.c.b16 %v4369, %v4366
    %v4415 = vpack.c.b16 %v4370, %v4367
    %v4416 = vpack.c.b16 %v4371, %v4368
    %v4417 = vpack.c.b16 %v4375, %v4372
    %v4418 = vpack.c.b16 %v4376, %v4373
    %v4419 = vpack.c.b16 %v4377, %v4374
    %v4420 = vpack.c.b16 %v4381, %v4378
    %v4421 = vpack.c.b16 %v4382, %v4379
    %v4422 = vpack.c.b16 %v4383, %v4380
    %v4423 = vpack.c.b16 %v4387, %v4384
    %v4424 = vpack.c.b16 %v4388, %v4385
    %v4425 = vpack.c.b16 %v4389, %v4386
    %v4426 = vpack.c.b16 %v4393, %v4390
    %v4427 = vpack.c.b16 %v4394, %v4391
    %v4428 = vpack.c.b16 %v4395, %v4392
    %v4429 = vpack.c.b16 %v4399, %v4396
    %v4430 = vpack.c.b16 %v4400, %v4397
    %v4431 = vpack.c.b16 %v4401, %v4398
    %v4432 = vpack.c.b16 %v4405, %v4402
    %v4433 = vpack.c.b16 %v4406, %v4403
    %v4434 = vpack.c.b16 %v4407, %v4404
    %v4435 = vpack.c.b16 %v4411, %v4408
    %v4436 = vpack.c.b16 %v4412, %v4409
    %v4437 = vpack.c.b16 %v4413, %v4410
    %4462 = vmatprep.subr.bf16.mxu0 %v4436
    %4463 = vmatpush1.bf16.msra.mxu0 %v4435
    %4464 = vmatprep.subr.bf16.mxu0 %v4433
    %4465 = vmatpush1.bf16.msra.mxu0 %v4432
    %4466 = vmatprep.subr.bf16.mxu0 %v4430
    %4467 = vmatpush1.bf16.msra.mxu0 %v4429
    %4468 = vmatprep.subr.bf16.mxu0 %v4427
    %4469 = vmatpush1.bf16.msra.mxu0 %v4426
    %4470 = vmatprep.subr.bf16.mxu0 %v4424
    %4471 = vmatpush1.bf16.msra.mxu0 %v4423
    %4472 = vmatprep.subr.bf16.mxu0 %v4421
    %4473 = vmatpush1.bf16.msra.mxu0 %v4420
    %4474 = vmatprep.subr.bf16.mxu0 %v4418
    %4475 = vmatpush1.bf16.msra.mxu0 %v4417
    %4476 = vmatprep.subr.bf16.mxu0 %v4415
    %4477 = vmatpush1.bf16.msra.mxu0 %v4414
    %4478 = vmatprep.subr.bf16.mxu0 0
    %4479 = vmatpush2.bf16.msra.mxu0 0
    %4480 = vmatprep.subr.bf16.mxu0 0
    %4481 = vmatpush2.bf16.msra.mxu0 0
    %4482 = vmatprep.subr.bf16.mxu0 0
    %4483 = vmatpush2.bf16.msra.mxu0 0
    %4484 = vmatprep.subr.bf16.mxu0 0
    %4485 = vmatpush2.bf16.msra.mxu0 0
    %4486 = vmatprep.subr.bf16.mxu0 0
    %4487 = vmatpush2.bf16.msra.mxu0 0
    %4488 = vmatprep.subr.bf16.mxu0 0
    %4489 = vmatpush2.bf16.msra.mxu0 0
    %4490 = vmatprep.subr.bf16.mxu0 0
    %4491 = vmatpush2.bf16.msra.mxu0 0
    %4492 = vmatprep.subr.bf16.mxu0 0
    %4493 = vmatpush2.bf16.msra.mxu0 0
    %4494 = vmatprep.mubr.bf16.mxu0 0
    %4495 = vmatmul.mubr.bf16.gmra.mxu0 %v4332
    %v4496 = vpop.f32.mrf.mxu0
    %v4497 = vadd.f32 %v4290, %v4496
    %v4498 = vpop.f32.mrf.mxu0
    %v4499 = vadd.f32 %v4294, %v4498
    %v4500 = vpop.f32.mrf.mxu0
    %v4501 = vpop.f32.mrf.mxu0
    %4502 = vdwg.mxu0
    %4503 = vmatprep.subr.bf16.mxu0 0
    %4504 = vmatpush1.bf16.msra.mxu0 %v4437
    %4505 = vmatprep.subr.bf16.mxu0 0
    %4506 = vmatpush1.bf16.msra.mxu0 %v4434
    %4507 = vmatprep.subr.bf16.mxu0 0
    %4508 = vmatpush1.bf16.msra.mxu0 %v4431
    %4509 = vmatprep.subr.bf16.mxu0 0
    %4510 = vmatpush1.bf16.msra.mxu0 %v4428
    %4511 = vmatprep.subr.bf16.mxu0 0
    %4512 = vmatpush1.bf16.msra.mxu0 %v4425
    %4513 = vmatprep.subr.bf16.mxu0 0
    %4514 = vmatpush1.bf16.msra.mxu0 %v4422
    %4515 = vmatprep.subr.bf16.mxu0 0
    %4516 = vmatpush1.bf16.msra.mxu0 %v4419
    %4517 = vmatprep.subr.bf16.mxu0 0
    %4518 = vmatpush1.bf16.msra.mxu0 %v4416
    %4519 = vmatprep.subr.bf16.mxu0 0
    %4520 = vmatpush2.bf16.msra.mxu0 0
    %4521 = vmatprep.subr.bf16.mxu0 0
    %4522 = vmatpush2.bf16.msra.mxu0 0
    %4523 = vmatprep.subr.bf16.mxu0 0
    %4524 = vmatpush2.bf16.msra.mxu0 0
    %4525 = vmatprep.subr.bf16.mxu0 0
    %4526 = vmatpush2.bf16.msra.mxu0 0
    %4527 = vmatprep.subr.bf16.mxu0 0
    %4528 = vmatpush2.bf16.msra.mxu0 0
    %4529 = vmatprep.subr.bf16.mxu0 0
    %4530 = vmatpush2.bf16.msra.mxu0 0
    %4531 = vmatprep.subr.bf16.mxu0 0
    %4532 = vmatpush2.bf16.msra.mxu0 0
    %4533 = vmatprep.subr.bf16.mxu0 0
    %4534 = vmatpush2.bf16.msra.mxu0 0
    %4535 = vmatprep.mubr.bf16.mxu0 0
    %4536 = vmatmul.mubr.bf16.gmra.mxu0 %v4332
    %v4537 = vpop.f32.mrf.mxu0
    %v4538 = vadd.f32 %v4298, %v4537
    %v4539 = vpop.f32.mrf.mxu0
    %v4540 = vpop.f32.mrf.mxu0
    %v4541 = vpop.f32.mrf.mxu0
    %4542 = vdwg.mxu0
    %v4544 = vrot.slane %v4497, 1
    %v4545 = vrot.slane %v4497, 2
    %v4546 = vrot.slane %v4497, 3
    %v4547 = vrot.slane %v4497, 4
    %v4548 = vrot.slane %v4497, 5
    %v4549 = vrot.slane %v4497, 6
    %v4550 = vrot.slane %v4497, 7
    %v4559 = vadd.f32 %v307, %v4544
    %v4560 = vadd.f32 %v311, %v4545
    %v4561 = vadd.f32 %v317, %v4546
    %v4562 = vadd.f32 %v321, %v4547
    %v4563 = vadd.f32 %v327, %v4548
    %v4564 = vadd.f32 %v331, %v4549
    %v4565 = vadd.f32 %v337, %v4550
    %v4566 = vadd.f32 %v341, %v4497
    %v4567 = vxor.u32 %v4559, 2147483648
    %v4568 = vxor.u32 %v4560, 2147483648
    %v4569 = vxor.u32 %v4561, 2147483648
    %v4570 = vxor.u32 %v4562, 2147483648
    %v4571 = vxor.u32 %v4563, 2147483648
    %v4572 = vxor.u32 %v4564, 2147483648
    %v4573 = vxor.u32 %v4565, 2147483648
    %v4574 = vxor.u32 %v4566, 2147483648
    %v4575 = vmul.f32 %v4567, 1.442695
    %v4576 = vpow.pop %v4575
    %v4577 = vmul.f32 %v4568, 1.442695
    %v4578 = vpow.pop %v4577
    %v4579 = vmul.f32 %v4569, 1.442695
    %v4580 = vpow.pop %v4579
    %v4581 = vmul.f32 %v4570, 1.442695
    %v4582 = vpow.pop %v4581
    %v4583 = vmul.f32 %v4571, 1.442695
    %v4584 = vpow.pop %v4583
    %v4585 = vmul.f32 %v4572, 1.442695
    %v4586 = vpow.pop %v4585
    %v4587 = vmul.f32 %v4573, 1.442695
    %v4588 = vpow.pop %v4587
    %v4589 = vmul.f32 %v4574, 1.442695
    %v4590 = vpow.pop %v4589
    %v4591 = vadd.f32 %v4576, 1.0
    %v4592 = vadd.f32 %v4578, 1.0
    %v4593 = vadd.f32 %v4580, 1.0
    %v4594 = vadd.f32 %v4582, 1.0
    %v4595 = vadd.f32 %v4584, 1.0
    %v4596 = vadd.f32 %v4586, 1.0
    %v4597 = vadd.f32 %v4588, 1.0
    %v4598 = vadd.f32 %v4590, 1.0
    %v4599 = vrcp.pop %v4591
    %v4600 = vmul.f32 1.0, %v4599
    %v4601 = vrcp.pop %v4592
    %v4602 = vmul.f32 1.0, %v4601
    %v4603 = vrcp.pop %v4593
    %v4604 = vmul.f32 1.0, %v4603
    %v4605 = vrcp.pop %v4594
    %v4606 = vmul.f32 1.0, %v4605
    %v4607 = vrcp.pop %v4595
    %v4608 = vmul.f32 1.0, %v4607
    %v4609 = vrcp.pop %v4596
    %v4610 = vmul.f32 1.0, %v4609
    %v4611 = vrcp.pop %v4597
    %v4612 = vmul.f32 1.0, %v4611
    %v4613 = vrcp.pop %v4598
    %v4614 = vmul.f32 1.0, %v4613
    %v4616 = vrot.slane %v4499, 1
    %v4617 = vrot.slane %v4499, 2
    %v4618 = vrot.slane %v4499, 3
    %v4619 = vrot.slane %v4499, 4
    %v4620 = vrot.slane %v4499, 5
    %v4621 = vrot.slane %v4499, 6
    %v4622 = vrot.slane %v4499, 7
    %v4631 = vadd.f32 %v309, %v4616
    %v4632 = vadd.f32 %v313, %v4617
    %v4633 = vadd.f32 %v319, %v4618
    %v4634 = vadd.f32 %v323, %v4619
    %v4635 = vadd.f32 %v329, %v4620
    %v4636 = vadd.f32 %v333, %v4621
    %v4637 = vadd.f32 %v339, %v4622
    %v4638 = vadd.f32 %v343, %v4499
    %v4639 = vxor.u32 %v4631, 2147483648
    %v4640 = vxor.u32 %v4632, 2147483648
    %v4641 = vxor.u32 %v4633, 2147483648
    %v4642 = vxor.u32 %v4634, 2147483648
    %v4643 = vxor.u32 %v4635, 2147483648
    %v4644 = vxor.u32 %v4636, 2147483648
    %v4645 = vxor.u32 %v4637, 2147483648
    %v4646 = vxor.u32 %v4638, 2147483648
    %v4647 = vmul.f32 %v4639, 1.442695
    %v4648 = vpow.pop %v4647
    %v4649 = vmul.f32 %v4640, 1.442695
    %v4650 = vpow.pop %v4649
    %v4651 = vmul.f32 %v4641, 1.442695
    %v4652 = vpow.pop %v4651
    %v4653 = vmul.f32 %v4642, 1.442695
    %v4654 = vpow.pop %v4653
    %v4655 = vmul.f32 %v4643, 1.442695
    %v4656 = vpow.pop %v4655
    %v4657 = vmul.f32 %v4644, 1.442695
    %v4658 = vpow.pop %v4657
    %v4659 = vmul.f32 %v4645, 1.442695
    %v4660 = vpow.pop %v4659
    %v4661 = vmul.f32 %v4646, 1.442695
    %v4662 = vpow.pop %v4661
    %v4663 = vadd.f32 %v4648, 1.0
    %v4664 = vadd.f32 %v4650, 1.0
    %v4665 = vadd.f32 %v4652, 1.0
    %v4666 = vadd.f32 %v4654, 1.0
    %v4667 = vadd.f32 %v4656, 1.0
    %v4668 = vadd.f32 %v4658, 1.0
    %v4669 = vadd.f32 %v4660, 1.0
    %v4670 = vadd.f32 %v4662, 1.0
    %v4671 = vrcp.pop %v4663
    %v4672 = vmul.f32 1.0, %v4671
    %v4673 = vrcp.pop %v4664
    %v4674 = vmul.f32 1.0, %v4673
    %v4675 = vrcp.pop %v4665
    %v4676 = vmul.f32 1.0, %v4675
    %v4677 = vrcp.pop %v4666
    %v4678 = vmul.f32 1.0, %v4677
    %v4679 = vrcp.pop %v4667
    %v4680 = vmul.f32 1.0, %v4679
    %v4681 = vrcp.pop %v4668
    %v4682 = vmul.f32 1.0, %v4681
    %v4683 = vrcp.pop %v4669
    %v4684 = vmul.f32 1.0, %v4683
    %v4685 = vrcp.pop %v4670
    %v4686 = vmul.f32 1.0, %v4685
    %v4688 = vrot.slane %v4538, 1
    %v4689 = vrot.slane %v4538, 2
    %v4690 = vrot.slane %v4538, 3
    %v4691 = vrot.slane %v4538, 4
    %v4692 = vrot.slane %v4538, 5
    %v4693 = vrot.slane %v4538, 6
    %v4694 = vrot.slane %v4538, 7
    %v4703 = vmul.f32 %v4600, %v4688
    %v4704 = vmul.f32 %v4602, %v4689
    %v4705 = vmul.f32 %v4604, %v4690
    %v4706 = vmul.f32 %v4606, %v4691
    %v4707 = vmul.f32 %v4608, %v4692
    %v4708 = vmul.f32 %v4610, %v4693
    %v4709 = vmul.f32 %v4612, %v4694
    %v4710 = vmul.f32 %v4614, %v4538
    %v4711 = vadd.f32 %v380, %v4703
    %v4712 = vadd.f32 %v383, %v4704
    %v4713 = vadd.f32 %v388, %v4705
    %v4714 = vadd.f32 %v391, %v4706
    %v4715 = vadd.f32 %v396, %v4707
    %v4716 = vadd.f32 %v399, %v4708
    %v4717 = vadd.f32 %v404, %v4709
    %v4718 = vadd.f32 %v407, %v4710
    %v4719 = vtanh.pop %v4711
    %v4720 = vtanh.pop %v4712
    %v4721 = vtanh.pop %v4713
    %v4722 = vtanh.pop %v4714
    %v4723 = vtanh.pop %v4715
    %v4724 = vtanh.pop %v4716
    %v4725 = vtanh.pop %v4717
    %v4726 = vtanh.pop %v4718
    %v4727 = vsub.f32 1.0, %v4672
    %v4728 = vsub.f32 1.0, %v4674
    %v4729 = vsub.f32 1.0, %v4676
    %v4730 = vsub.f32 1.0, %v4678
    %v4731 = vsub.f32 1.0, %v4680
    %v4732 = vsub.f32 1.0, %v4682
    %v4733 = vsub.f32 1.0, %v4684
    %v4734 = vsub.f32 1.0, %v4686
    %v4735 = vmul.f32 %v4727, %v4719
    %v4736 = vmul.f32 %v4728, %v4720
    %v4737 = vmul.f32 %v4729, %v4721
    %v4738 = vmul.f32 %v4730, %v4722
    %v4739 = vmul.f32 %v4731, %v4723
    %v4740 = vmul.f32 %v4732, %v4724
    %v4741 = vmul.f32 %v4733, %v4725
    %v4742 = vmul.f32 %v4734, %v4726
    %v4743 = vrot.slane %v4211, 7
    %v4744 = vrot.slane %v4213, 7
    %v4745 = vrot.slane %v4214, 7
    %v4746 = vrot.slane %v4215, 7
    %v4747 = vrot.slane %v4216, 7
    %v4748 = vrot.slane %v4217, 7
    %v4749 = vrot.slane %v4218, 7
    %v4758 = vmul.f32 %v4672, %v4743
    %v4759 = vmul.f32 %v4674, %v4227
    %v4760 = vmul.f32 %v4676, %v4744
    %v4761 = vmul.f32 %v4678, %v4745
    %v4762 = vmul.f32 %v4680, %v4746
    %v4763 = vmul.f32 %v4682, %v4747
    %v4764 = vmul.f32 %v4684, %v4748
    %v4765 = vmul.f32 %v4686, %v4749
    %v4766 = vadd.f32 %v4735, %v4758
    %v4767 = vadd.f32 %v4736, %v4759
    %v4768 = vadd.f32 %v4737, %v4760
    %v4769 = vadd.f32 %v4738, %v4761
    %v4770 = vadd.f32 %v4739, %v4762
    %v4771 = vadd.f32 %v4740, %v4763
    %v4772 = vadd.f32 %v4741, %v4764
    %v4773 = vadd.f32 %v4742, %v4765
    %v4782 = vrot.slane %v4767, 7
    %v4783 = vrot.slane %v4768, 6
    %v4784 = vsel %vm893, %v4783, %v4782
    %v4785 = vrot.slane %v4769, 5
    %v4786 = vsel %vm896, %v4785, %v4784
    %v4787 = vrot.slane %v4770, 4
    %v4788 = vsel %vm899, %v4787, %v4786
    %v4789 = vrot.slane %v4771, 3
    %v4790 = vsel %vm902, %v4789, %v4788
    %v4791 = vrot.slane %v4772, 2
    %v4792 = vsel %vm905, %v4791, %v4790
    %v4793 = vrot.slane %v4773, 1
    %v4794 = vsel %vm908, %v4793, %v4792
    %s4797 = scalar_lea.vmem [#allocation8], 56
    %4798 = vst [vmem:[%s4797 - $0x7] sm:$0x80] %v4766
    %4799 = vst [vmem:[%s4797 + $0x1] sm:$0x7f] %v4794
    // Predicated region
    $region34: #{tpu_custom_call.1} parent=1 // pred_check
      _
    $region35: #{tpu_custom_call.1} parent=1 // pred_check_branch
      %4801 = sbr.rel (0) target = $region37
    $region36: #{tpu_custom_call.1} parent=1 // pred_region
      %s4803 = ssub.s32 1024, 1024
      %4804 = vsyncadd [#allocation4], %s4803
      %s4805 = sshll.u32 [#allocation8], 4
      %s4806 = int_to_ptr.vmem [resolvable:$true] %s4805
      %4811 = dma.vmem_to_hbm [thread:$0]  %s4806, 1024, %s5, [#allocation4], 128, 128, 8
    $region37: #{tpu_custom_call.1} parent=1 // pred_fallthru
      _
    // Predicated region
    $region38: #{tpu_custom_call.1} parent=1 // pred_check
      _
    $region39: #{tpu_custom_call.1} parent=1 // pred_check_branch
      %4813 = sbr.rel (0) target = $region41
    $region40: #{tpu_custom_call.1} parent=1 // pred_region
      %4814 = dma.done [#allocation4], 1024
    $region41: #{tpu_custom_call.1} parent=1 // pred_fallthru
      _
    %4815 = vsyncpa [#allocation3], 1
    %4816 = vsyncpa [#allocation6], 1
    %4817 = vsyncpa [#allocation4], 1

</llo_original>
